<compile_context>
chip_gen: v5e
topology: v5e:2x2
jax: 0.10.0
libtpu: 0.0.40
codegen_flags: <defaults>
</compile_context>

<pallas_src>
import jax
import jax.numpy as jnp
from jax import lax
from jax.experimental import pallas as pl
from jax.experimental.pallas import tpu as pltpu


def _pair(v):
    return (v, v) if isinstance(v, int) else tuple(v)


_SQRT1_2 = 0.7071067811865476


def _gelu_exact(y):
    """Exact (erf-based) GELU via the Abramowitz–Stegun 7.1.26 polynomial."""
    z = y * _SQRT1_2
    az = jnp.abs(z)
    t = 1.0 / (1.0 + 0.3275911 * az)
    poly = t * (0.254829592
                + t * (-0.284496736
                       + t * (1.421413741
                              + t * (-1.453152027 + t * 1.061405429))))
    erf_az = 1.0 - poly * jnp.exp(-az * az)
    erf_z = jnp.where(z >= 0, erf_az, -erf_az)
    return 0.5 * y * (1.0 + erf_z)


def _pick_ctile(c):
    """Lane-dense channel tile: 128-wide tiles when possible, else the full width."""
    return 128 if (c % 128 == 0) else c


def conv_forward(x_nchw, params, *, kSize, stride=1, padding=0, dilation=(1, 1),
                 groups=1, bn_act=False, bias=False, eps=1e-5):
    """Pallas forward of `Conv` (= nn.Conv2d [+ BatchNorm2d + GELU]).  NCHW in/out."""
    N, Cin, H, W = x_nchw.shape
    KH, KW = _pair(kSize)
    sH, sW = _pair(stride)
    pH, pW = _pair(padding)
    dH, dW = _pair(dilation)

    w = params["conv_w"]                      # (Cout, Cin//groups, KH, KW)
    Cout = w.shape[0]
    HO = (H + 2 * pH - dH * (KH - 1) - 1) // sH + 1
    WO = (W + 2 * pW - dW * (KW - 1) - 1) // sW + 1

    # ---- fold conv bias + (optional) BatchNorm into the weights + ONE per-channel bias
    b0 = params["conv_b"].astype(jnp.float32) if bias else jnp.zeros((Cout,), jnp.float32)
    if bn_act:
        s = params["bn_gamma"] / jnp.sqrt(params["bn_var"] + eps)
        w_eff = w.astype(jnp.float32) * s[:, None, None, None]
        b_eff = s * (b0 - params["bn_mean"]) + params["bn_beta"]
    else:
        w_eff = w.astype(jnp.float32)
        b_eff = b0
    b_eff = b_eff.astype(jnp.float32)         # (Cout,)

    # NCHW -> NHWC (C on the lane axis).  No jnp.pad: halo handled in-kernel.
    x_nhwc = jnp.transpose(x_nchw, (0, 2, 3, 1))

    apply_act = bool(bn_act)
    use_scratch = (pH > 0) or (pW > 0) or (sH > 1) or (sW > 1)
    Hp, Wp = H + 2 * pH, W + 2 * pW

    if groups == 1:
        # ---------------- dense conv: K*K shifted-window matmuls on the MXU ----------
        TCO = _pick_ctile(Cout)
        assert Cout % TCO == 0
        # (Cout, Cin, KH, KW) -> (KH*KW, Cin, Cout); BN scale already folded in.
        w_flat = jnp.transpose(w_eff, (2, 3, 1, 0)).reshape(KH * KW, Cin, Cout)
        b_2d = b_eff.reshape(1, Cout)

        def kernel(x_ref, w_ref, b_ref, o_ref, *scratch):
            x_val = x_ref[0].astype(jnp.float32)                    # (H, W, Cin)
            if use_scratch:
                xp = scratch[0]
                # zero only the border strips (the interior is fully overwritten)
                if pH:
                    xp[pl.ds(0, pH), :, :] = jnp.zeros((pH, Wp, Cin), jnp.float32)
                    xp[pl.ds(pH + H, pH), :, :] = jnp.zeros((pH, Wp, Cin), jnp.float32)
                if pW:
                    xp[:, pl.ds(0, pW), :] = jnp.zeros((Hp, pW, Cin), jnp.float32)
                    xp[:, pl.ds(pW + W, pW), :] = jnp.zeros((Hp, pW, Cin), jnp.float32)
                xp[pl.ds(pH, H), pl.ds(pW, W), :] = x_val

            acc = jnp.zeros((HO * WO, TCO), jnp.float32)
            t = 0
            for ky in range(KH):
                for kx in range(KW):
                    r0, c0 = ky * dH, kx * dW
                    if use_scratch:
                        if sH == 1 and sW == 1:
                            patch = scratch[0][pl.ds(r0, HO), pl.ds(c0, WO), :]
                        else:
                            patch = scratch[0][pl.ds(r0, HO, sH), pl.ds(c0, WO, sW), :]
                    else:  # stride 1, no padding: slice the resident value directly
                        patch = x_val[r0:r0 + HO, c0:c0 + WO, :]
                    acc = acc + jnp.dot(patch.reshape(HO * WO, Cin), w_ref[t],
                                        preferred_element_type=jnp.float32)
                    t += 1
            y = acc + b_ref[...]                                    # single folded bias
            if apply_act:
                y = _gelu_exact(y)
            o_ref[0] = y.reshape(HO, WO, TCO).astype(o_ref.dtype)

        scratch_shapes = [pltpu.VMEM((Hp, Wp, Cin), jnp.float32)] if use_scratch else []
        out_nhwc = pl.pallas_call(
            kernel,
            out_shape=jax.ShapeDtypeStruct((N, HO, WO, Cout), x_nchw.dtype),
            grid=(N, Cout // TCO),
            in_specs=[
                pl.BlockSpec((1, H, W, Cin), lambda n, co: (n, 0, 0, 0)),
                pl.BlockSpec((KH * KW, Cin, TCO), lambda n, co: (0, 0, co)),
                pl.BlockSpec((1, TCO), lambda n, co: (0, co)),
            ],
            out_specs=pl.BlockSpec((1, HO, WO, TCO), lambda n, co: (n, 0, 0, co)),
            scratch_shapes=scratch_shapes,
            compiler_params=pltpu.CompilerParams(
                dimension_semantics=("parallel", "parallel")),
        )(x_nhwc, w_flat, b_2d)

    elif groups == Cin and Cin == Cout:
        # ---------------- depthwise conv ----------------------------------------------
        C = Cout
        # (C, 1, KH, KW) -> (KH*KW, C); BN scale already folded in.
        w_dw = jnp.transpose(w_eff[:, 0], (1, 2, 0)).reshape(KH * KW, C)

        if sW == 1:
            # Lane-dense formulation: keep (H, W*C) slabs so all 128 lanes are used and
            # the output store is unmasked lane-dense.  Weights/bias pre-tiled over W.
            WC, WOC, WpC = W * C, WO * C, Wp * C
            w_tiled = jnp.tile(w_dw, (1, WO))                    # (KH*KW, WO*C)
            b_tiled = jnp.tile(b_eff, WO).reshape(1, WOC)        # (1, WO*C)
            x_flat = x_nhwc.reshape(N, H, WC)                    # free (metadata) reshape

            def kernel(x_ref, w_ref, b_ref, o_ref, *scratch):
                x_val = x_ref[0].astype(jnp.float32)             # (H, W*C)
                if use_scratch:
                    xp = scratch[0]
                    if pH:
                        xp[pl.ds(0, pH), :] = jnp.zeros((pH, WpC), jnp.float32)
                        xp[pl.ds(pH + H, pH), :] = jnp.zeros((pH, WpC), jnp.float32)
                    if pW:
                        xp[:, pl.ds(0, pW * C)] = jnp.zeros((Hp, pW * C), jnp.float32)
                        xp[:, pl.ds((pW + W) * C, pW * C)] = jnp.zeros((Hp, pW * C),
                                                                       jnp.float32)
                    xp[pl.ds(pH, H), pl.ds(pW * C, WC)] = x_val

                w_all = w_ref[...]                               # (KH*KW, WO*C)
                acc = jnp.zeros((HO, WOC), jnp.float32)
                t = 0
                for ky in range(KH):
                    for kx in range(KW):
                        r0 = ky * dH
                        c0 = kx * dW * C
                        if use_scratch:
                            if sH == 1:
                                patch = scratch[0][pl.ds(r0, HO), pl.ds(c0, WOC)]
                            else:
                                patch = scratch[0][pl.ds(r0, HO, sH), pl.ds(c0, WOC)]
                        else:
                            patch = x_val[r0:r0 + HO, c0:c0 + WOC]
                        acc = acc + patch * w_all[t]
                        t += 1
                y = acc + b_ref[...]
                if apply_act:
                    y = _gelu_exact(y)
                o_ref[0] = y.astype(o_ref.dtype)

            scratch_shapes = [pltpu.VMEM((Hp, WpC), jnp.float32)] if use_scratch else []
            out_flat = pl.pallas_call(
                kernel,
                out_shape=jax.ShapeDtypeStruct((N, HO, WOC), x_nchw.dtype),
                grid=(N,),
                in_specs=[
                    pl.BlockSpec((1, H, WC), lambda n: (n, 0, 0)),
                    pl.BlockSpec((KH * KW, WOC), lambda n: (0, 0)),
                    pl.BlockSpec((1, WOC), lambda n: (0, 0)),
                ],
                out_specs=pl.BlockSpec((1, HO, WOC), lambda n: (n, 0, 0)),
                scratch_shapes=scratch_shapes,
                compiler_params=pltpu.CompilerParams(
                    dimension_semantics=("parallel",)),
            )(x_flat, w_tiled, b_tiled)
            out_nhwc = out_flat.reshape(N, HO, WO, C)

        else:
            # Fallback (stride_w > 1): per-channel taps on the VPU in (H, W, C) layout.
            TC = _pick_ctile(C)
            assert C % TC == 0
            b_2d = b_eff.reshape(1, C)

            def kernel(x_ref, w_ref, b_ref, o_ref, *scratch):
                x_val = x_ref[0].astype(jnp.float32)             # (H, W, TC)
                if use_scratch:
                    xp = scratch[0]
                    if pH:
                        xp[pl.ds(0, pH), :, :] = jnp.zeros((pH, Wp, TC), jnp.float32)
                        xp[pl.ds(pH + H, pH), :, :] = jnp.zeros((pH, Wp, TC), jnp.float32)
                    if pW:
                        xp[:, pl.ds(0, pW), :] = jnp.zeros((Hp, pW, TC), jnp.float32)
                        xp[:, pl.ds(pW + W, pW), :] = jnp.zeros((Hp, pW, TC), jnp.float32)
                    xp[pl.ds(pH, H), pl.ds(pW, W), :] = x_val

                w_all = w_ref[...]                               # (KH*KW, TC)
                acc = jnp.zeros((HO, WO, TC), jnp.float32)
                t = 0
                for ky in range(KH):
                    for kx in range(KW):
                        r0, c0 = ky * dH, kx * dW
                        if use_scratch:
                            patch = scratch[0][pl.ds(r0, HO, sH), pl.ds(c0, WO, sW), :]
                        else:
                            patch = x_val[r0:r0 + HO, c0:c0 + WO, :]
                        acc = acc + patch * w_all[t]
                        t += 1
                y = acc + b_ref[...]
                if apply_act:
                    y = _gelu_exact(y)
                o_ref[0] = y.astype(o_ref.dtype)

            scratch_shapes = [pltpu.VMEM((Hp, Wp, TC), jnp.float32)] if use_scratch else []
            out_nhwc = pl.pallas_call(
                kernel,
                out_shape=jax.ShapeDtypeStruct((N, HO, WO, C), x_nchw.dtype),
                grid=(N, C // TC),
                in_specs=[
                    pl.BlockSpec((1, H, W, TC), lambda n, c: (n, 0, 0, c)),
                    pl.BlockSpec((KH * KW, TC), lambda n, c: (0, c)),
                    pl.BlockSpec((1, TC), lambda n, c: (0, c)),
                ],
                out_specs=pl.BlockSpec((1, HO, WO, TC), lambda n, c: (n, 0, 0, c)),
                scratch_shapes=scratch_shapes,
                compiler_params=pltpu.CompilerParams(
                    dimension_semantics=("parallel", "parallel")),
            )(x_nhwc, w_dw, b_2d)

    else:
        # TODO(synk): general grouped conv (1 < groups < nIn) not fused into a Pallas
        #             kernel; only groups == 1 and depthwise (groups == nIn == nOut).
        raise NotImplementedError("groups must be 1 or nIn (depthwise)")

    return jnp.transpose(out_nhwc, (0, 3, 1, 2))


def _reference_forward(x_nchw, params, *, kSize, stride=1, padding=0, dilation=(1, 1),
                       groups=1, bn_act=False, bias=False, eps=1e-5):
    """Pure-JAX reference (lax.conv + eval-mode BN + exact GELU) for correctness."""
    sH, sW = _pair(stride)
    pH, pW = _pair(padding)
    dH, dW = _pair(dilation)
    y = lax.conv_general_dilated(
        x_nchw.astype(jnp.float32), params["conv_w"].astype(jnp.float32),
        window_strides=(sH, sW), padding=[(pH, pH), (pW, pW)],
        rhs_dilation=(dH, dW), dimension_numbers=("NCHW", "OIHW", "NCHW"),
        feature_group_count=groups, precision=lax.Precision.HIGHEST)
    if bias:
        y = y + params["conv_b"][None, :, None, None]
    if bn_act:
        s = params["bn_gamma"] / jnp.sqrt(params["bn_var"] + eps)
        y = (s[None, :, None, None] * (y - params["bn_mean"][None, :, None, None])
             + params["bn_beta"][None, :, None, None])
        y = jax.nn.gelu(y, approximate=False)
    return y


def init_params(key, cin, cout, k, *, groups=1, bias=False, bn_act=False):
    """Deterministic synthetic parameters with the module's __init__ shapes."""
    ks = jax.random.split(key, 6)
    p = {"conv_w": 0.1 * jax.random.normal(ks[0], (cout, cin // groups, k, k), jnp.float32)}
    if bias:
        p["conv_b"] = 0.1 * jax.random.normal(ks[1], (cout,), jnp.float32)
    if bn_act:
        p["bn_gamma"] = 1.0 + 0.1 * jax.random.normal(ks[2], (cout,), jnp.float32)
        p["bn_beta"] = 0.1 * jax.random.normal(ks[3], (cout,), jnp.float32)
        p["bn_mean"] = 0.1 * jax.random.normal(ks[4], (cout,), jnp.float32)
        p["bn_var"] = 0.5 + jnp.abs(jax.random.normal(ks[5], (cout,), jnp.float32))
    return p


def _check(x, params, cfg):
    out = jax.block_until_ready(conv_forward(x, params, **cfg))
    ref = jax.block_until_ready(_reference_forward(x, params, **cfg))
    assert out.shape == ref.shape, (out.shape, ref.shape)
    err = float(jnp.max(jnp.abs(out - ref)))
    assert jnp.allclose(out, ref, atol=5e-4, rtol=5e-4), err
    return out


if __name__ == "__main__":
    root = jax.random.PRNGKey(0)
    kx1, kp1, kx2, kp2, kx3, kp3 = jax.random.split(root, 6)

    # 1) Conv(4, 32, kSize=3, stride=1, padding=1, bn_act=True)  -- dense MXU path
    x1 = jax.random.normal(kx1, (2, 4, 16, 16), jnp.float32)          # NCHW
    cfg1 = dict(kSize=3, stride=1, padding=1, groups=1, bn_act=True, bias=False)
    p1 = init_params(kp1, 4, 32, 3, bn_act=True)
    _check(x1, p1, cfg1)

    # 2) Conv(32, 64, kSize=1, stride=1, bias=True)  -- 1x1, no BN/GELU, no padding
    x2 = jax.random.normal(kx2, (2, 32, 16, 16), jnp.float32)
    cfg2 = dict(kSize=1, stride=1, padding=0, groups=1, bn_act=False, bias=True)
    p2 = init_params(kp2, 32, 64, 1, bias=True)
    _check(x2, p2, cfg2)

    # 3) Conv(32, 32, kSize=3, padding=1, groups=32, bn_act=True)  -- depthwise,
    #    lane-dense collapsed (H, W*C) VPU path
    x3 = jax.random.normal(kx3, (2, 32, 16, 16), jnp.float32)
    cfg3 = dict(kSize=3, stride=1, padding=1, groups=32, bn_act=True, bias=False)
    p3 = init_params(kp3, 32, 32, 3, groups=32, bn_act=True)
    _check(x3, p3, cfg3)

    print("KERNEL_OK")
</pallas_src>

<mosaic_0001>
module attributes {stable_mosaic.version = 11 : i64} {
  func.func @kernel(%arg0: i32, %arg1: i32, %arg2: memref<1x16x16x4xf32, #tpu.memory_space<vmem>>, %arg3: memref<9x4x32xf32, #tpu.memory_space<vmem>>, %arg4: memref<1x32xf32, #tpu.memory_space<vmem>>, %arg5: memref<1x16x16x32xf32, #tpu.memory_space<vmem>>, %arg6: memref<18x18x4xf32, #tpu.memory_space<vmem>>) attributes {dimension_semantics = [#tpu.dimension_semantics<parallel>, #tpu.dimension_semantics<parallel>], iteration_bounds = array<i64: 2, 1>, scalar_prefetch = 0 : i64, scratch_operands = 1 : i64, tpu.core_type = #tpu.core_type<tc>, window_params = [{transform_indices = @transform_0, window_bounds = array<i64: 1, 16, 16, 4>}, {transform_indices = @transform_1, window_bounds = array<i64: 9, 4, 32>}, {transform_indices = @transform_2, window_bounds = array<i64: 1, 32>}, {transform_indices = @transform_3, window_bounds = array<i64: 1, 16, 16, 32>}]} {
    %c0 = arith.constant 0 : index
    %c0_0 = arith.constant 0 : index
    %c0_1 = arith.constant 0 : index
    %c0_2 = arith.constant 0 : index
    %0 = vector.load %arg2[%c0, %c0_0, %c0_1, %c0_2] : memref<1x16x16x4xf32, #tpu.memory_space<vmem>>, vector<1x16x16x4xf32>
    %1 = vector.shape_cast %0 : vector<1x16x16x4xf32> to vector<16x16x4xf32>
    %cst = arith.constant 0.000000e+00 : f32
    %2 = vector.broadcast %cst : f32 to vector<1x18x4xf32>
    %c0_3 = arith.constant 0 : index
    %c0_4 = arith.constant 0 : index
    %c0_5 = arith.constant 0 : index
    %3 = vector.load %arg6[%c0_3, %c0_4, %c0_5] : memref<18x18x4xf32, #tpu.memory_space<vmem>>, vector<1x18x4xf32>
    tpu.vector_store %arg6[%c0_3, %c0_4, %c0_5], %2 {strides = array<i32>} : memref<18x18x4xf32, #tpu.memory_space<vmem>>, vector<1x18x4xf32>,
    %cst_6 = arith.constant 0.000000e+00 : f32
    %4 = vector.broadcast %cst_6 : f32 to vector<1x18x4xf32>
    %c17 = arith.constant 17 : index
    %c0_7 = arith.constant 0 : index
    %c0_8 = arith.constant 0 : index
    %5 = vector.load %arg6[%c17, %c0_7, %c0_8] : memref<18x18x4xf32, #tpu.memory_space<vmem>>, vector<1x18x4xf32>
    tpu.vector_store %arg6[%c17, %c0_7, %c0_8], %4 {strides = array<i32>} : memref<18x18x4xf32, #tpu.memory_space<vmem>>, vector<1x18x4xf32>,
    %cst_9 = arith.constant 0.000000e+00 : f32
    %6 = vector.broadcast %cst_9 : f32 to vector<18x1x4xf32>
    %c0_10 = arith.constant 0 : index
    %c0_11 = arith.constant 0 : index
    %c0_12 = arith.constant 0 : index
    %7 = vector.load %arg6[%c0_10, %c0_11, %c0_12] : memref<18x18x4xf32, #tpu.memory_space<vmem>>, vector<18x1x4xf32>
    tpu.vector_store %arg6[%c0_10, %c0_11, %c0_12], %6 {strides = array<i32>} : memref<18x18x4xf32, #tpu.memory_space<vmem>>, vector<18x1x4xf32>,
    %cst_13 = arith.constant 0.000000e+00 : f32
    %8 = vector.broadcast %cst_13 : f32 to vector<18x1x4xf32>
    %c0_14 = arith.constant 0 : index
    %c17_15 = arith.constant 17 : index
    %c0_16 = arith.constant 0 : index
    %9 = vector.load %arg6[%c0_14, %c17_15, %c0_16] : memref<18x18x4xf32, #tpu.memory_space<vmem>>, vector<18x1x4xf32>
    tpu.vector_store %arg6[%c0_14, %c17_15, %c0_16], %8 {strides = array<i32>} : memref<18x18x4xf32, #tpu.memory_space<vmem>>, vector<18x1x4xf32>,
    %c1 = arith.constant 1 : index
    %c1_17 = arith.constant 1 : index
    %c0_18 = arith.constant 0 : index
    %10 = vector.load %arg6[%c1, %c1_17, %c0_18] : memref<18x18x4xf32, #tpu.memory_space<vmem>>, vector<16x16x4xf32>
    tpu.vector_store %arg6[%c1, %c1_17, %c0_18], %1 {strides = array<i32>} : memref<18x18x4xf32, #tpu.memory_space<vmem>>, vector<16x16x4xf32>,
    %cst_19 = arith.constant 0.000000e+00 : f32
    %11 = vector.broadcast %cst_19 : f32 to vector<256x32xf32>
    %c0_20 = arith.constant 0 : index
    %c0_21 = arith.constant 0 : index
    %c0_22 = arith.constant 0 : index
    %12 = vector.load %arg6[%c0_20, %c0_21, %c0_22] : memref<18x18x4xf32, #tpu.memory_space<vmem>>, vector<16x16x4xf32>
    %13 = vector.shape_cast %12 : vector<16x16x4xf32> to vector<256x4xf32>
    %c0_23 = arith.constant 0 : index
    %c0_24 = arith.constant 0 : index
    %c0_25 = arith.constant 0 : index
    %14 = vector.load %arg3[%c0_23, %c0_24, %c0_25] : memref<9x4x32xf32, #tpu.memory_space<vmem>>, vector<1x4x32xf32>
    %15 = vector.shape_cast %14 : vector<1x4x32xf32> to vector<4x32xf32>
    %cst_26 = arith.constant dense<0.000000e+00> : vector<256x32xf32>
    %16 = tpu.matmul %13, %15, %cst_26 {dimension_numbers = #tpu.dot_dimension_numbers<[1], [0], [0], [1], [0, 0, 1, 1], [], []>} : vector<256x4xf32>, vector<4x32xf32>, vector<256x32xf32> -> vector<256x32xf32>
    %17 = arith.addf %11, %16 : vector<256x32xf32>
    %c0_27 = arith.constant 0 : index
    %c1_28 = arith.constant 1 : index
    %c0_29 = arith.constant 0 : index
    %18 = vector.load %arg6[%c0_27, %c1_28, %c0_29] : memref<18x18x4xf32, #tpu.memory_space<vmem>>, vector<16x16x4xf32>
    %19 = vector.shape_cast %18 : vector<16x16x4xf32> to vector<256x4xf32>
    %c1_30 = arith.constant 1 : index
    %c0_31 = arith.constant 0 : index
    %c0_32 = arith.constant 0 : index
    %20 = vector.load %arg3[%c1_30, %c0_31, %c0_32] : memref<9x4x32xf32, #tpu.memory_space<vmem>>, vector<1x4x32xf32>
    %21 = vector.shape_cast %20 : vector<1x4x32xf32> to vector<4x32xf32>
    %cst_33 = arith.constant dense<0.000000e+00> : vector<256x32xf32>
    %22 = tpu.matmul %19, %21, %cst_33 {dimension_numbers = #tpu.dot_dimension_numbers<[1], [0], [0], [1], [0, 0, 1, 1], [], []>} : vector<256x4xf32>, vector<4x32xf32>, vector<256x32xf32> -> vector<256x32xf32>
    %23 = arith.addf %17, %22 : vector<256x32xf32>
    %c0_34 = arith.constant 0 : index
    %c2 = arith.constant 2 : index
    %c0_35 = arith.constant 0 : index
    %24 = vector.load %arg6[%c0_34, %c2, %c0_35] : memref<18x18x4xf32, #tpu.memory_space<vmem>>, vector<16x16x4xf32>
    %25 = vector.shape_cast %24 : vector<16x16x4xf32> to vector<256x4xf32>
    %c2_36 = arith.constant 2 : index
    %c0_37 = arith.constant 0 : index
    %c0_38 = arith.constant 0 : index
    %26 = vector.load %arg3[%c2_36, %c0_37, %c0_38] : memref<9x4x32xf32, #tpu.memory_space<vmem>>, vector<1x4x32xf32>
    %27 = vector.shape_cast %26 : vector<1x4x32xf32> to vector<4x32xf32>
    %cst_39 = arith.constant dense<0.000000e+00> : vector<256x32xf32>
    %28 = tpu.matmul %25, %27, %cst_39 {dimension_numbers = #tpu.dot_dimension_numbers<[1], [0], [0], [1], [0, 0, 1, 1], [], []>} : vector<256x4xf32>, vector<4x32xf32>, vector<256x32xf32> -> vector<256x32xf32>
    %29 = arith.addf %23, %28 : vector<256x32xf32>
    %c1_40 = arith.constant 1 : index
    %c0_41 = arith.constant 0 : index
    %c0_42 = arith.constant 0 : index
    %30 = vector.load %arg6[%c1_40, %c0_41, %c0_42] : memref<18x18x4xf32, #tpu.memory_space<vmem>>, vector<16x16x4xf32>
    %31 = vector.shape_cast %30 : vector<16x16x4xf32> to vector<256x4xf32>
    %c3 = arith.constant 3 : index
    %c0_43 = arith.constant 0 : index
    %c0_44 = arith.constant 0 : index
    %32 = vector.load %arg3[%c3, %c0_43, %c0_44] : memref<9x4x32xf32, #tpu.memory_space<vmem>>, vector<1x4x32xf32>
    %33 = vector.shape_cast %32 : vector<1x4x32xf32> to vector<4x32xf32>
    %cst_45 = arith.constant dense<0.000000e+00> : vector<256x32xf32>
    %34 = tpu.matmul %31, %33, %cst_45 {dimension_numbers = #tpu.dot_dimension_numbers<[1], [0], [0], [1], [0, 0, 1, 1], [], []>} : vector<256x4xf32>, vector<4x32xf32>, vector<256x32xf32> -> vector<256x32xf32>
    %35 = arith.addf %29, %34 : vector<256x32xf32>
    %c1_46 = arith.constant 1 : index
    %c1_47 = arith.constant 1 : index
    %c0_48 = arith.constant 0 : index
    %36 = vector.load %arg6[%c1_46, %c1_47, %c0_48] : memref<18x18x4xf32, #tpu.memory_space<vmem>>, vector<16x16x4xf32>
    %37 = vector.shape_cast %36 : vector<16x16x4xf32> to vector<256x4xf32>
    %c4 = arith.constant 4 : index
    %c0_49 = arith.constant 0 : index
    %c0_50 = arith.constant 0 : index
    %38 = vector.load %arg3[%c4, %c0_49, %c0_50] : memref<9x4x32xf32, #tpu.memory_space<vmem>>, vector<1x4x32xf32>
    %39 = vector.shape_cast %38 : vector<1x4x32xf32> to vector<4x32xf32>
    %cst_51 = arith.constant dense<0.000000e+00> : vector<256x32xf32>
    %40 = tpu.matmul %37, %39, %cst_51 {dimension_numbers = #tpu.dot_dimension_numbers<[1], [0], [0], [1], [0, 0, 1, 1], [], []>} : vector<256x4xf32>, vector<4x32xf32>, vector<256x32xf32> -> vector<256x32xf32>
    %41 = arith.addf %35, %40 : vector<256x32xf32>
    %c1_52 = arith.constant 1 : index
    %c2_53 = arith.constant 2 : index
    %c0_54 = arith.constant 0 : index
    %42 = vector.load %arg6[%c1_52, %c2_53, %c0_54] : memref<18x18x4xf32, #tpu.memory_space<vmem>>, vector<16x16x4xf32>
    %43 = vector.shape_cast %42 : vector<16x16x4xf32> to vector<256x4xf32>
    %c5 = arith.constant 5 : index
    %c0_55 = arith.constant 0 : index
    %c0_56 = arith.constant 0 : index
    %44 = vector.load %arg3[%c5, %c0_55, %c0_56] : memref<9x4x32xf32, #tpu.memory_space<vmem>>, vector<1x4x32xf32>
    %45 = vector.shape_cast %44 : vector<1x4x32xf32> to vector<4x32xf32>
    %cst_57 = arith.constant dense<0.000000e+00> : vector<256x32xf32>
    %46 = tpu.matmul %43, %45, %cst_57 {dimension_numbers = #tpu.dot_dimension_numbers<[1], [0], [0], [1], [0, 0, 1, 1], [], []>} : vector<256x4xf32>, vector<4x32xf32>, vector<256x32xf32> -> vector<256x32xf32>
    %47 = arith.addf %41, %46 : vector<256x32xf32>
    %c2_58 = arith.constant 2 : index
    %c0_59 = arith.constant 0 : index
    %c0_60 = arith.constant 0 : index
    %48 = vector.load %arg6[%c2_58, %c0_59, %c0_60] : memref<18x18x4xf32, #tpu.memory_space<vmem>>, vector<16x16x4xf32>
    %49 = vector.shape_cast %48 : vector<16x16x4xf32> to vector<256x4xf32>
    %c6 = arith.constant 6 : index
    %c0_61 = arith.constant 0 : index
    %c0_62 = arith.constant 0 : index
    %50 = vector.load %arg3[%c6, %c0_61, %c0_62] : memref<9x4x32xf32, #tpu.memory_space<vmem>>, vector<1x4x32xf32>
    %51 = vector.shape_cast %50 : vector<1x4x32xf32> to vector<4x32xf32>
    %cst_63 = arith.constant dense<0.000000e+00> : vector<256x32xf32>
    %52 = tpu.matmul %49, %51, %cst_63 {dimension_numbers = #tpu.dot_dimension_numbers<[1], [0], [0], [1], [0, 0, 1, 1], [], []>} : vector<256x4xf32>, vector<4x32xf32>, vector<256x32xf32> -> vector<256x32xf32>
    %53 = arith.addf %47, %52 : vector<256x32xf32>
    %c2_64 = arith.constant 2 : index
    %c1_65 = arith.constant 1 : index
    %c0_66 = arith.constant 0 : index
    %54 = vector.load %arg6[%c2_64, %c1_65, %c0_66] : memref<18x18x4xf32, #tpu.memory_space<vmem>>, vector<16x16x4xf32>
    %55 = vector.shape_cast %54 : vector<16x16x4xf32> to vector<256x4xf32>
    %c7 = arith.constant 7 : index
    %c0_67 = arith.constant 0 : index
    %c0_68 = arith.constant 0 : index
    %56 = vector.load %arg3[%c7, %c0_67, %c0_68] : memref<9x4x32xf32, #tpu.memory_space<vmem>>, vector<1x4x32xf32>
    %57 = vector.shape_cast %56 : vector<1x4x32xf32> to vector<4x32xf32>
    %cst_69 = arith.constant dense<0.000000e+00> : vector<256x32xf32>
    %58 = tpu.matmul %55, %57, %cst_69 {dimension_numbers = #tpu.dot_dimension_numbers<[1], [0], [0], [1], [0, 0, 1, 1], [], []>} : vector<256x4xf32>, vector<4x32xf32>, vector<256x32xf32> -> vector<256x32xf32>
    %59 = arith.addf %53, %58 : vector<256x32xf32>
    %c2_70 = arith.constant 2 : index
    %c2_71 = arith.constant 2 : index
    %c0_72 = arith.constant 0 : index
    %60 = vector.load %arg6[%c2_70, %c2_71, %c0_72] : memref<18x18x4xf32, #tpu.memory_space<vmem>>, vector<16x16x4xf32>
    %61 = vector.shape_cast %60 : vector<16x16x4xf32> to vector<256x4xf32>
    %c8 = arith.constant 8 : index
    %c0_73 = arith.constant 0 : index
    %c0_74 = arith.constant 0 : index
    %62 = vector.load %arg3[%c8, %c0_73, %c0_74] : memref<9x4x32xf32, #tpu.memory_space<vmem>>, vector<1x4x32xf32>
    %63 = vector.shape_cast %62 : vector<1x4x32xf32> to vector<4x32xf32>
    %cst_75 = arith.constant dense<0.000000e+00> : vector<256x32xf32>
    %64 = tpu.matmul %61, %63, %cst_75 {dimension_numbers = #tpu.dot_dimension_numbers<[1], [0], [0], [1], [0, 0, 1, 1], [], []>} : vector<256x4xf32>, vector<4x32xf32>, vector<256x32xf32> -> vector<256x32xf32>
    %65 = arith.addf %59, %64 : vector<256x32xf32>
    %c0_76 = arith.constant 0 : index
    %c0_77 = arith.constant 0 : index
    %66 = vector.load %arg4[%c0_76, %c0_77] : memref<1x32xf32, #tpu.memory_space<vmem>>, vector<1x32xf32>
    %67 = vector.broadcast %66 : vector<1x32xf32> to vector<256x32xf32>
    %68 = arith.addf %65, %67 : vector<256x32xf32>
    %cst_78 = arith.constant 0.707106769 : f32
    %69 = vector.broadcast %cst_78 : f32 to vector<256x32xf32>
    %70 = arith.mulf %68, %69 : vector<256x32xf32>
    %71 = math.absf %70 : vector<256x32xf32>
    %cst_79 = arith.constant 0.327591091 : f32
    %72 = vector.broadcast %cst_79 : f32 to vector<256x32xf32>
    %73 = arith.mulf %72, %71 : vector<256x32xf32>
    %cst_80 = arith.constant 1.000000e+00 : f32
    %74 = vector.broadcast %cst_80 : f32 to vector<256x32xf32>
    %75 = arith.addf %74, %73 : vector<256x32xf32>
    %cst_81 = arith.constant 1.000000e+00 : f32
    %76 = vector.broadcast %cst_81 : f32 to vector<256x32xf32>
    %77 = arith.divf %76, %75 : vector<256x32xf32>
    %cst_82 = arith.constant 1.06140542 : f32
    %78 = vector.broadcast %cst_82 : f32 to vector<256x32xf32>
    %79 = arith.mulf %77, %78 : vector<256x32xf32>
    %cst_83 = arith.constant -1.45315206 : f32
    %80 = vector.broadcast %cst_83 : f32 to vector<256x32xf32>
    %81 = arith.addf %80, %79 : vector<256x32xf32>
    %82 = arith.mulf %77, %81 : vector<256x32xf32>
    %cst_84 = arith.constant 1.42141378 : f32
    %83 = vector.broadcast %cst_84 : f32 to vector<256x32xf32>
    %84 = arith.addf %83, %82 : vector<256x32xf32>
    %85 = arith.mulf %77, %84 : vector<256x32xf32>
    %cst_85 = arith.constant -0.284496725 : f32
    %86 = vector.broadcast %cst_85 : f32 to vector<256x32xf32>
    %87 = arith.addf %86, %85 : vector<256x32xf32>
    %88 = arith.mulf %77, %87 : vector<256x32xf32>
    %cst_86 = arith.constant 0.254829586 : f32
    %89 = vector.broadcast %cst_86 : f32 to vector<256x32xf32>
    %90 = arith.addf %89, %88 : vector<256x32xf32>
    %91 = arith.mulf %77, %90 : vector<256x32xf32>
    %cst_87 = arith.constant 0.000000e+00 : f32
    %92 = vector.broadcast %cst_87 : f32 to vector<256x32xf32>
    %93 = arith.subf %92, %71 : vector<256x32xf32>
    %94 = arith.mulf %93, %71 : vector<256x32xf32>
    %95 = math.exp %94 : vector<256x32xf32>
    %96 = arith.mulf %91, %95 : vector<256x32xf32>
    %cst_88 = arith.constant 1.000000e+00 : f32
    %97 = vector.broadcast %cst_88 : f32 to vector<256x32xf32>
    %98 = arith.subf %97, %96 : vector<256x32xf32>
    %cst_89 = arith.constant 0.000000e+00 : f32
    %99 = vector.broadcast %cst_89 : f32 to vector<256x32xf32>
    %100 = arith.cmpf oge, %70, %99 : vector<256x32xf32>
    %cst_90 = arith.constant 0.000000e+00 : f32
    %101 = vector.broadcast %cst_90 : f32 to vector<256x32xf32>
    %102 = arith.subf %101, %98 : vector<256x32xf32>
    %103 = arith.select %100, %98, %102 : vector<256x32xi1>, vector<256x32xf32>
    %cst_91 = arith.constant 5.000000e-01 : f32
    %104 = vector.broadcast %cst_91 : f32 to vector<256x32xf32>
    %105 = arith.mulf %104, %68 : vector<256x32xf32>
    %cst_92 = arith.constant 1.000000e+00 : f32
    %106 = vector.broadcast %cst_92 : f32 to vector<256x32xf32>
    %107 = arith.addf %106, %103 : vector<256x32xf32>
    %108 = arith.mulf %105, %107 : vector<256x32xf32>
    %109 = vector.shape_cast %108 : vector<256x32xf32> to vector<16x16x32xf32>
    %c0_93 = arith.constant 0 : index
    %c0_94 = arith.constant 0 : index
    %c0_95 = arith.constant 0 : index
    %c0_96 = arith.constant 0 : index
    %110 = vector.load %arg5[%c0_93, %c0_94, %c0_95, %c0_96] : memref<1x16x16x32xf32, #tpu.memory_space<vmem>>, vector<1x16x16x32xf32>
    %111 = vector.shape_cast %110 : vector<1x16x16x32xf32> to vector<16x16x32xf32>
    %112 = vector.shape_cast %109 : vector<16x16x32xf32> to vector<1x16x16x32xf32>
    tpu.vector_store %arg5[%c0_93, %c0_94, %c0_95, %c0_96], %112 {strides = array<i32>} : memref<1x16x16x32xf32, #tpu.memory_space<vmem>>, vector<1x16x16x32xf32>,
    return
  }
  func.func @transform_0(%arg0: i32, %arg1: i32) -> (i32, i32, i32, i32) {
    %c0_i32 = arith.constant 0 : i32
    %c0_i32_0 = arith.constant 0 : i32
    %c0_i32_1 = arith.constant 0 : i32
    %c0_i32_2 = arith.constant 0 : i32
    return %arg0, %c0_i32, %c0_i32_0, %c0_i32_1 : i32, i32, i32, i32
  }
  func.func @transform_1(%arg0: i32, %arg1: i32) -> (i32, i32, i32) {
    %c0_i32 = arith.constant 0 : i32
    %c0_i32_0 = arith.constant 0 : i32
    %c0_i32_1 = arith.constant 0 : i32
    return %c0_i32, %c0_i32_0, %arg1 : i32, i32, i32
  }
  func.func @transform_2(%arg0: i32, %arg1: i32) -> (i32, i32) {
    %c0_i32 = arith.constant 0 : i32
    %c0_i32_0 = arith.constant 0 : i32
    return %c0_i32, %arg1 : i32, i32
  }
  func.func @transform_3(%arg0: i32, %arg1: i32) -> (i32, i32, i32, i32) {
    %c0_i32 = arith.constant 0 : i32
    %c0_i32_0 = arith.constant 0 : i32
    %c0_i32_1 = arith.constant 0 : i32
    return %arg0, %c0_i32, %c0_i32_0, %arg1 : i32, i32, i32, i32
  }
}

</mosaic_0001>

<llo_original>
// kernel: tpu_custom_call.1
$region0: #{tpu_custom_call.1}
  #allocation0 [shape = 'u32[]', space=smem, size = 0x4, offset = 0x4, fixed_abs, tag = 'smem constant byte address 0x4 - core index']
  #allocation1 [shape = 'u32[72,128]{1,0:T(1,128)}', space=vmem, size = 0x9000, scoped, tag = 'internal scratch']
  #allocation2 [shape = 'f32[18,18,4]{2,1,0:T(8,128)}', space=vmem, size = 0x36000, scoped, tag = 'scratch operand']
  %s0 = inlined_call_operand.vmem [shape: f32[2,16,16,4], index: 0, kind: input, shape index: {}]
  %s1 = inlined_call_operand.vmem [shape: f32[9,4,32], index: 1, kind: input, shape index: {}]
  %s2 = inlined_call_operand.vmem [shape: f32[1,32], index: 2, kind: input, shape index: {}]
  %s3 = inlined_call_operand.hbm [shape: f32[2,16,16,32], index: 3, kind: output, shape index: {}]
  %s4 = sld [smem:[#allocation0]]
  $region45: #{tpu_custom_call.1} parent=0
    _
  %s6 = ssub.s32 1, %s4
  %s7 = scalar_select 0, %s6, %s4
  $region1: #{tpu_custom_call.1} parent=0
    #allocation3 [shape = 'u8[262144]{0}', space=vmem, size = 0x40000, scoped, tag = 'output window, operand 0']
    #allocation4 [shape = 's32[2]{0}', space=sflag, size = 0x8, scoped, tag = 'scoped memory for tpu_custom_call.1']
    %8 = vsyncpa [#allocation4], 0
    %s9 = scalar_lea.sflag [#allocation4], 1
    %10 = vsyncpa %s9, 0
    loop: start=0, step=1, limit=4
    $region2: #{tpu_custom_call.1} parent=1 // loop_pre_header
      _
    $region3: #{tpu_custom_call.1} parent=1 // loop_header
      %s12 = sphi 0, %s16
      %p13 = scmp.ge.s32.totalorder %s12, 4
      %s19 = sphi 0, %s31
      %s20 = sphi 0, %s27
      %s21 = sphi 0, %s19
      %s22 = sphi 0, %s20
      %s23 = sphi 0, %s21
      %s24 = sphi 0, %s22
      %s34 = sphi 0, %s36
      %s37 = sphi 0, %s34
      %s38 = sphi 0, %s37
      %s54 = sphi 0, %s38
      %s60 = sphi 0, %s62
      %s63 = sphi 0, %s60
      %s64 = sphi 0, %s63
      %s80 = sphi 0, %s64
      %s86 = sphi 0, %s88
      %s89 = sphi 0, %s86
      %s90 = sphi 0, %s89
      %s106 = sphi 0, %s90
      %s114 = sphi 0, %s116
      %s117 = sphi 0, %s114
      %s118 = sphi 0, %s117
      %s134 = sphi 0, %s118
    $region4: #{tpu_custom_call.1} parent=1 // loop_header_branch
      %15 = sbr.rel (%p13) target = $region8
    $region5: #{tpu_custom_call.1} parent=1 // loop_body
      %s17 = ssub.s32 %s12, 1
      %s18 = ssub.s32 %s12, 2
      %s25 = sadd.s32 1, %s20
      %p26 = scmp.ge.s32.totalorder %s25, 1
      %s27 = scalar_select %p26, 0, %s25
      %s28 = sadd.s32 1, %s19
      %s29 = scalar_select %p26, %s28, %s19
      %p30 = scmp.ge.s32.totalorder %s29, 2
      %s31 = scalar_select %p30, 0, %s29
      %s32 = ssub.s32 %s19, %s31
      %p33 = scmp.eq.s32.totalorder %s32, 0
      %s35 = sadd.s32 %s34, 1
      %s36 = scalar_select %p33, %s34, %s35
      %p39 = pneg %p33
      %p40 = scmp.eq.s32.totalorder %s12, 1
      %p41 = por %p39, %p40
      %p42 = scmp.ne.s32.totalorder %s34, %s37
      %p43 = scmp.eq.s32.totalorder %s12, 0
      %p44 = por %p42, %p43
      %p45 = scmp.ne.s32.totalorder %s34, %s37
      %p46 = scmp.eq.s32.totalorder %s17, 1
      %p47 = por %p45, %p46
      %p48 = scmp.ne.s32.totalorder %s37, %s38
      %p49 = scmp.eq.s32.totalorder %s17, 0
      %p50 = por %p48, %p49
      %p51 = scmp.ne.s32.totalorder %s37, %s38
      %p52 = scmp.eq.s32.totalorder %s18, 1
      %p53 = por %p51, %p52
      %p55 = scmp.ne.s32.totalorder %s38, %s54
      %p56 = scmp.eq.s32.totalorder %s18, 0
      %p57 = por %p55, %p56
      %s58 = ssub.s32 %s20, %s27
      %p59 = scmp.eq.s32.totalorder %s58, 0
      %s61 = sadd.s32 %s60, 1
      %s62 = scalar_select %p59, %s60, %s61
      %p65 = pneg %p59
      %p66 = scmp.eq.s32.totalorder %s12, 1
      %p67 = por %p65, %p66
      %p68 = scmp.ne.s32.totalorder %s60, %s63
      %p69 = scmp.eq.s32.totalorder %s12, 0
      %p70 = por %p68, %p69
      %p71 = scmp.ne.s32.totalorder %s60, %s63
      %p72 = scmp.eq.s32.totalorder %s17, 1
      %p73 = por %p71, %p72
      %p74 = scmp.ne.s32.totalorder %s63, %s64
      %p75 = scmp.eq.s32.totalorder %s17, 0
      %p76 = por %p74, %p75
      %p77 = scmp.ne.s32.totalorder %s63, %s64
      %p78 = scmp.eq.s32.totalorder %s18, 1
      %p79 = por %p77, %p78
      %p81 = scmp.ne.s32.totalorder %s64, %s80
      %p82 = scmp.eq.s32.totalorder %s18, 0
      %p83 = por %p81, %p82
      %s84 = ssub.s32 %s20, %s27
      %p85 = scmp.eq.s32.totalorder %s84, 0
      %s87 = sadd.s32 %s86, 1
      %s88 = scalar_select %p85, %s86, %s87
      %p91 = pneg %p85
      %p92 = scmp.eq.s32.totalorder %s12, 1
      %p93 = por %p91, %p92
      %p94 = scmp.ne.s32.totalorder %s86, %s89
      %p95 = scmp.eq.s32.totalorder %s12, 0
      %p96 = por %p94, %p95
      %p97 = scmp.ne.s32.totalorder %s86, %s89
      %p98 = scmp.eq.s32.totalorder %s17, 1
      %p99 = por %p97, %p98
      %p100 = scmp.ne.s32.totalorder %s89, %s90
      %p101 = scmp.eq.s32.totalorder %s17, 0
      %p102 = por %p100, %p101
      %p103 = scmp.ne.s32.totalorder %s89, %s90
      %p104 = scmp.eq.s32.totalorder %s18, 1
      %p105 = por %p103, %p104
      %p107 = scmp.ne.s32.totalorder %s90, %s106
      %p108 = scmp.eq.s32.totalorder %s18, 0
      %p109 = por %p107, %p108
      %s110 = ssub.s32 %s19, %s31
      %s111 = ssub.s32 %s20, %s27
      %s112 = sor.u32 %s110, %s111
      %p113 = scmp.eq.s32.totalorder %s112, 0
      %s115 = sadd.s32 %s114, 1
      %s116 = scalar_select %p113, %s114, %s115
      %p119 = pneg %p113
      %p120 = scmp.eq.s32.totalorder %s12, 1
      %p121 = por %p119, %p120
      %p122 = scmp.ne.s32.totalorder %s114, %s117
      %p123 = scmp.eq.s32.totalorder %s12, 0
      %p124 = por %p122, %p123
      %p125 = scmp.ne.s32.totalorder %s114, %s117
      %p126 = scmp.eq.s32.totalorder %s17, 1
      %p127 = por %p125, %p126
      %p128 = scmp.ne.s32.totalorder %s117, %s118
      %p129 = scmp.eq.s32.totalorder %s17, 0
      %p130 = por %p128, %p129
      %p131 = scmp.ne.s32.totalorder %s117, %s118
      %p132 = scmp.eq.s32.totalorder %s18, 1
      %p133 = por %p131, %p132
      %p135 = scmp.ne.s32.totalorder %s118, %s134
      %p136 = scmp.eq.s32.totalorder %s18, 0
      %p137 = por %p135, %p136
      %p138 = scmp.le.s32.totalorder 1, %s12
      %p139 = scmp.lt.s32.totalorder %s12, 3
      %p140 = pnand %p138, %p139
      %p141 = pneg %p140
      // Predicated region
      $region9: #{tpu_custom_call.1} parent=5 // pred_check
        _
      $region10: #{tpu_custom_call.1} parent=5 // pred_check_branch
        %143 = sbr.rel (%p140) target = $region12
      $region11: #{tpu_custom_call.1} parent=5 // pred_region
        %s144 = ssub.s32 %s12, 1
        // Predicated region
        $region13: #{tpu_custom_call.1} parent=11 // pred_check
          %p145 = pneg %p76
        $region14: #{tpu_custom_call.1} parent=11 // pred_check_branch
          %147 = sbr.rel (%p145) target = $region16
        $region15: #{tpu_custom_call.1} parent=11 // pred_region
          %p148 = scmp.lt.s32.totalorder %s22, 0
          %s149 = scalar_select %p148, %s22, 0
          %s150 = smul.addr %s149, 4
          %s151 = scalar_lea.vmem %s1, %s150
        $region16: #{tpu_custom_call.1} parent=11 // pred_fallthru
          _
        // Predicated region
        $region17: #{tpu_custom_call.1} parent=11 // pred_check
          %p152 = pneg %p102
        $region18: #{tpu_custom_call.1} parent=11 // pred_check_branch
          %154 = sbr.rel (%p152) target = $region20
        $region19: #{tpu_custom_call.1} parent=11 // pred_region
          %p155 = scmp.lt.s32.totalorder %s22, 0
          %s156 = scalar_select %p155, %s22, 0
          %s157 = scalar_lea.vmem %s2, %s156
        $region20: #{tpu_custom_call.1} parent=11 // pred_fallthru
          _
      $region12: #{tpu_custom_call.1} parent=5 // pred_fallthru
        _
      %p158 = scmp.lt.s32.totalorder %s12, 2
      // Predicated region
      $region21: #{tpu_custom_call.1} parent=5 // pred_check
        %p159 = pneg %p158
      $region22: #{tpu_custom_call.1} parent=5 // pred_check_branch
        %161 = sbr.rel (%p159) target = $region24
      $region23: #{tpu_custom_call.1} parent=5 // pred_region
        // Predicated region
        $region25: #{tpu_custom_call.1} parent=23 // pred_check
          %p162 = pneg %p44
        $region26: #{tpu_custom_call.1} parent=23 // pred_check_branch
          %164 = sbr.rel (%p162) target = $region28
        $region27: #{tpu_custom_call.1} parent=23 // pred_region
          %p165 = scmp.lt.s32.totalorder %s19, 1
          %s166 = scalar_select %p165, %s19, 1
          %s167 = smul.addr %s166, 32
          %s168 = smul.addr %s167, 8
          %s169 = scalar_lea.vmem %s0, %s168
        $region28: #{tpu_custom_call.1} parent=23 // pred_fallthru
          _
      $region24: #{tpu_custom_call.1} parent=5 // pred_fallthru
        _
      %p170 = scmp.le.s32.totalorder 1, %s12
      %p171 = scmp.lt.s32.totalorder %s12, 3
      %p172 = pnand %p170, %p171
      %p173 = pneg %p172
      // Predicated region
      $region29: #{tpu_custom_call.1} parent=5 // pred_check
        _
      $region30: #{tpu_custom_call.1} parent=5 // pred_check_branch
        %175 = sbr.rel (%p172) target = $region32
      $region31: #{tpu_custom_call.1} parent=5 // pred_region
        %s176 = ssub.s32 %s12, 1
        %p177 = scmp.lt.s32.totalorder %s21, 1
        %s178 = scalar_select %p177, %s21, 1
        %s179 = smul.addr %s178, 32
        %s180 = smul.addr %s179, 8
        %s181 = scalar_lea.vmem %s0, %s180
        %p182 = pneg %p50
        %p183 = pneg %p47
        %p184 = scmp.lt.s32.totalorder %s22, 0
        %s185 = scalar_select %p184, %s22, 0
        %s186 = smul.addr %s185, 4
        %s187 = scalar_lea.vmem %s1, %s186
        %p188 = pneg %p76
        %p189 = pneg %p73
        %p190 = scmp.lt.s32.totalorder %s22, 0
        %s191 = scalar_select %p190, %s22, 0
        %s192 = scalar_lea.vmem %s2, %s191
        %p193 = pneg %p102
        %p194 = pneg %p99
        %p195 = pneg %p130
        %p196 = pneg %p127
        %s197 = sand.u32 %s117, 1
        %s198 = scalar_lea.sflag [#allocation4], %s197
        %s199 = sand.u32 %s117, 1
        %s200 = smul.addr %s199, 256
        %s201 = scalar_lea.vmem [#allocation3], %s200
        %p202 = scmp.lt.s32.totalorder %s21, 1
        %s203 = scalar_select %p202, %s21, 1
        %s204 = smul.addr %s203, 32
        %s205 = smul.addr %s204, 8
        %s206 = scalar_lea.vmem %s0, %s205
        %p207 = scmp.lt.s32.totalorder %s22, 0
        %s208 = scalar_select %p207, %s22, 0
        %s209 = smul.addr %s208, 4
        %s210 = scalar_lea.vmem %s1, %s209
        %p211 = scmp.lt.s32.totalorder %s22, 0
        %s212 = scalar_select %p211, %s22, 0
        %s213 = scalar_lea.vmem %s2, %s212
        %v214 = vld [vmem:[%s206] sm:$0xff]
        %v215 = vld [vmem:[%s206 + $0x8] sm:$0xff]
        %v216 = vld [vmem:[%s206 + $0x10] sm:$0xff]
        %v217 = vld [vmem:[%s206 + $0x18] sm:$0xff]
        %v218 = vld [vmem:[%s206 + $0x20] sm:$0xff]
        %v219 = vld [vmem:[%s206 + $0x28] sm:$0xff]
        %v220 = vld [vmem:[%s206 + $0x30] sm:$0xff]
        %v221 = vld [vmem:[%s206 + $0x38] sm:$0xff]
        %v222 = vld [vmem:[%s206 + $0x40] sm:$0xff]
        %v223 = vld [vmem:[%s206 + $0x48] sm:$0xff]
        %v224 = vld [vmem:[%s206 + $0x50] sm:$0xff]
        %v225 = vld [vmem:[%s206 + $0x58] sm:$0xff]
        %v226 = vld [vmem:[%s206 + $0x60] sm:$0xff]
        %v227 = vld [vmem:[%s206 + $0x68] sm:$0xff]
        %v228 = vld [vmem:[%s206 + $0x70] sm:$0xff]
        %v229 = vld [vmem:[%s206 + $0x78] sm:$0xff]
        %v230 = vld [vmem:[%s206 + $0x80] sm:$0xff]
        %v231 = vld [vmem:[%s206 + $0x88] sm:$0xff]
        %v232 = vld [vmem:[%s206 + $0x90] sm:$0xff]
        %v233 = vld [vmem:[%s206 + $0x98] sm:$0xff]
        %v234 = vld [vmem:[%s206 + $0xa0] sm:$0xff]
        %v235 = vld [vmem:[%s206 + $0xa8] sm:$0xff]
        %v236 = vld [vmem:[%s206 + $0xb0] sm:$0xff]
        %v237 = vld [vmem:[%s206 + $0xb8] sm:$0xff]
        %v238 = vld [vmem:[%s206 + $0xc0] sm:$0xff]
        %v239 = vld [vmem:[%s206 + $0xc8] sm:$0xff]
        %v240 = vld [vmem:[%s206 + $0xd0] sm:$0xff]
        %v241 = vld [vmem:[%s206 + $0xd8] sm:$0xff]
        %v242 = vld [vmem:[%s206 + $0xe0] sm:$0xff]
        %v243 = vld [vmem:[%s206 + $0xe8] sm:$0xff]
        %v244 = vld [vmem:[%s206 + $0xf0] sm:$0xff]
        %v245 = vld [vmem:[%s206 + $0xf8] sm:$0xff]
        %vm246 = vcmask 31744
        %247 = vst.msk [vmem:[#allocation2] sm:$0xff] %vm246, 0.0
        %248 = vst.msk [vmem:[#allocation2 + $0x8] sm:$0xff] %vm246, 0.0
        %vm249 = vcmask 25600
        %250 = vst.msk [vmem:[#allocation2 + $0x10] sm:$0x3] %vm249, 0.0
        %s251 = scalar_lea.vmem [#allocation2], 408
        %252 = vst.msk [vmem:[%s251] sm:$0xff] %vm246, 0.0
        %253 = vst.msk [vmem:[%s251 + $0x8] sm:$0xff] %vm246, 0.0
        %254 = vst.msk [vmem:[%s251 + $0x10] sm:$0x3] %vm249, 0.0
        %vm255 = vcmask 24576
        %256 = vst.msk [vmem:[#allocation2] sm:$0x1] %vm255, 0.0
        %257 = vst.msk [vmem:[#allocation2 + $0x18] sm:$0x1] %vm255, 0.0
        %258 = vst.msk [vmem:[#allocation2 + $0x30] sm:$0x1] %vm255, 0.0
        %259 = vst.msk [vmem:[#allocation2 + $0x48] sm:$0x1] %vm255, 0.0
        %260 = vst.msk [vmem:[#allocation2 + $0x60] sm:$0x1] %vm255, 0.0
        %261 = vst.msk [vmem:[#allocation2 + $0x78] sm:$0x1] %vm255, 0.0
        %262 = vst.msk [vmem:[#allocation2 + $0x90] sm:$0x1] %vm255, 0.0
        %263 = vst.msk [vmem:[#allocation2 + $0xa8] sm:$0x1] %vm255, 0.0
        %264 = vst.msk [vmem:[#allocation2 + $0xc0] sm:$0x1] %vm255, 0.0
        %265 = vst.msk [vmem:[#allocation2 + $0xd8] sm:$0x1] %vm255, 0.0
        %266 = vst.msk [vmem:[#allocation2 + $0xf0] sm:$0x1] %vm255, 0.0
        %267 = vst.msk [vmem:[#allocation2 + $0x108] sm:$0x1] %vm255, 0.0
        %268 = vst.msk [vmem:[#allocation2 + $0x120] sm:$0x1] %vm255, 0.0
        %269 = vst.msk [vmem:[#allocation2 + $0x138] sm:$0x1] %vm255, 0.0
        %270 = vst.msk [vmem:[#allocation2 + $0x150] sm:$0x1] %vm255, 0.0
        %271 = vst.msk [vmem:[#allocation2 + $0x168] sm:$0x1] %vm255, 0.0
        %272 = vst.msk [vmem:[#allocation2 + $0x180] sm:$0x1] %vm255, 0.0
        %273 = vst.msk [vmem:[#allocation2 + $0x198] sm:$0x1] %vm255, 0.0
        %274 = vst.msk [vmem:[#allocation2 + $0x11] sm:$0x1] %vm255, 0.0
        %275 = vst.msk [vmem:[#allocation2 + $0x29] sm:$0x1] %vm255, 0.0
        %276 = vst.msk [vmem:[#allocation2 + $0x41] sm:$0x1] %vm255, 0.0
        %277 = vst.msk [vmem:[#allocation2 + $0x59] sm:$0x1] %vm255, 0.0
        %278 = vst.msk [vmem:[#allocation2 + $0x71] sm:$0x1] %vm255, 0.0
        %279 = vst.msk [vmem:[#allocation2 + $0x89] sm:$0x1] %vm255, 0.0
        %280 = vst.msk [vmem:[#allocation2 + $0xa1] sm:$0x1] %vm255, 0.0
        %281 = vst.msk [vmem:[#allocation2 + $0xb9] sm:$0x1] %vm255, 0.0
        %282 = vst.msk [vmem:[#allocation2 + $0xd1] sm:$0x1] %vm255, 0.0
        %283 = vst.msk [vmem:[#allocation2 + $0xe9] sm:$0x1] %vm255, 0.0
        %284 = vst.msk [vmem:[#allocation2 + $0x101] sm:$0x1] %vm255, 0.0
        %285 = vst.msk [vmem:[#allocation2 + $0x119] sm:$0x1] %vm255, 0.0
        %286 = vst.msk [vmem:[#allocation2 + $0x131] sm:$0x1] %vm255, 0.0
        %287 = vst.msk [vmem:[#allocation2 + $0x149] sm:$0x1] %vm255, 0.0
        %288 = vst.msk [vmem:[#allocation2 + $0x161] sm:$0x1] %vm255, 0.0
        %289 = vst.msk [vmem:[#allocation2 + $0x179] sm:$0x1] %vm255, 0.0
        %290 = vst.msk [vmem:[#allocation2 + $0x191] sm:$0x1] %vm255, 0.0
        %291 = vst.msk [vmem:[#allocation2 + $0x1a9] sm:$0x1] %vm255, 0.0
        %s292 = scalar_lea.vmem [#allocation2], 24
        %293 = vst.msk [vmem:[%s292 + $0x1] sm:$0xff] %vm246, %v214
        %294 = vst.msk [vmem:[%s292 + $0x9] sm:$0xff] %vm246, %v215
        %295 = vst.msk [vmem:[%s292 + $0x19] sm:$0xff] %vm246, %v216
        %296 = vst.msk [vmem:[%s292 + $0x21] sm:$0xff] %vm246, %v217
        %297 = vst.msk [vmem:[%s292 + $0x31] sm:$0xff] %vm246, %v218
        %298 = vst.msk [vmem:[%s292 + $0x39] sm:$0xff] %vm246, %v219
        %299 = vst.msk [vmem:[%s292 + $0x49] sm:$0xff] %vm246, %v220
        %300 = vst.msk [vmem:[%s292 + $0x51] sm:$0xff] %vm246, %v221
        %301 = vst.msk [vmem:[%s292 + $0x61] sm:$0xff] %vm246, %v222
        %302 = vst.msk [vmem:[%s292 + $0x69] sm:$0xff] %vm246, %v223
        %303 = vst.msk [vmem:[%s292 + $0x79] sm:$0xff] %vm246, %v224
        %304 = vst.msk [vmem:[%s292 + $0x81] sm:$0xff] %vm246, %v225
        %305 = vst.msk [vmem:[%s292 + $0x91] sm:$0xff] %vm246, %v226
        %306 = vst.msk [vmem:[%s292 + $0x99] sm:$0xff] %vm246, %v227
        %307 = vst.msk [vmem:[%s292 + $0xa9] sm:$0xff] %vm246, %v228
        %308 = vst.msk [vmem:[%s292 + $0xb1] sm:$0xff] %vm246, %v229
        %309 = vst.msk [vmem:[%s292 + $0xc1] sm:$0xff] %vm246, %v230
        %310 = vst.msk [vmem:[%s292 + $0xc9] sm:$0xff] %vm246, %v231
        %311 = vst.msk [vmem:[%s292 + $0xd9] sm:$0xff] %vm246, %v232
        %312 = vst.msk [vmem:[%s292 + $0xe1] sm:$0xff] %vm246, %v233
        %313 = vst.msk [vmem:[%s292 + $0xf1] sm:$0xff] %vm246, %v234
        %314 = vst.msk [vmem:[%s292 + $0xf9] sm:$0xff] %vm246, %v235
        %315 = vst.msk [vmem:[%s292 + $0x109] sm:$0xff] %vm246, %v236
        %316 = vst.msk [vmem:[%s292 + $0x111] sm:$0xff] %vm246, %v237
        %317 = vst.msk [vmem:[%s292 + $0x121] sm:$0xff] %vm246, %v238
        %318 = vst.msk [vmem:[%s292 + $0x129] sm:$0xff] %vm246, %v239
        %319 = vst.msk [vmem:[%s292 + $0x139] sm:$0xff] %vm246, %v240
        %320 = vst.msk [vmem:[%s292 + $0x141] sm:$0xff] %vm246, %v241
        %321 = vst.msk [vmem:[%s292 + $0x151] sm:$0xff] %vm246, %v242
        %322 = vst.msk [vmem:[%s292 + $0x159] sm:$0xff] %vm246, %v243
        %323 = vst.msk [vmem:[%s292 + $0x169] sm:$0xff] %vm246, %v244
        %324 = vst.msk [vmem:[%s292 + $0x171] sm:$0xff] %vm246, %v245
        %v325 = vld [vmem:[#allocation2] sm:$0xff]
        %v326 = vld [vmem:[#allocation2 + $0x8] sm:$0xff]
        %v327 = vld [vmem:[#allocation2 + $0x18] sm:$0xff]
        %v328 = vld [vmem:[#allocation2 + $0x20] sm:$0xff]
        %v329 = vld [vmem:[#allocation2 + $0x30] sm:$0xff]
        %v330 = vld [vmem:[#allocation2 + $0x38] sm:$0xff]
        %v331 = vld [vmem:[#allocation2 + $0x48] sm:$0xff]
        %v332 = vld [vmem:[#allocation2 + $0x50] sm:$0xff]
        %v333 = vld [vmem:[#allocation2 + $0x60] sm:$0xff]
        %v334 = vld [vmem:[#allocation2 + $0x68] sm:$0xff]
        %v335 = vld [vmem:[#allocation2 + $0x78] sm:$0xff]
        %v336 = vld [vmem:[#allocation2 + $0x80] sm:$0xff]
        %v337 = vld [vmem:[#allocation2 + $0x90] sm:$0xff]
        %v338 = vld [vmem:[#allocation2 + $0x98] sm:$0xff]
        %v339 = vld [vmem:[#allocation2 + $0xa8] sm:$0xff]
        %v340 = vld [vmem:[#allocation2 + $0xb0] sm:$0xff]
        %v341 = vld [vmem:[#allocation2 + $0xc0] sm:$0xff]
        %v342 = vld [vmem:[#allocation2 + $0xc8] sm:$0xff]
        %v343 = vld [vmem:[#allocation2 + $0xd8] sm:$0xff]
        %v344 = vld [vmem:[#allocation2 + $0xe0] sm:$0xff]
        %v345 = vld [vmem:[#allocation2 + $0xf0] sm:$0xff]
        %v346 = vld [vmem:[#allocation2 + $0xf8] sm:$0xff]
        %v347 = vld [vmem:[#allocation2 + $0x108] sm:$0xff]
        %v348 = vld [vmem:[#allocation2 + $0x110] sm:$0xff]
        %v349 = vld [vmem:[#allocation2 + $0x120] sm:$0xff]
        %v350 = vld [vmem:[#allocation2 + $0x128] sm:$0xff]
        %v351 = vld [vmem:[#allocation2 + $0x138] sm:$0xff]
        %v352 = vld [vmem:[#allocation2 + $0x140] sm:$0xff]
        %v353 = vld [vmem:[#allocation2 + $0x150] sm:$0xff]
        %v354 = vld [vmem:[#allocation2 + $0x158] sm:$0xff]
        %v355 = vld [vmem:[#allocation2 + $0x168] sm:$0xff]
        %v356 = vld [vmem:[#allocation2 + $0x170] sm:$0xff]
        %v357 = vld [vmem:[%s210] sm:$0xf]
        %v358 = vld [vmem:[#allocation2 + $0x1] sm:$0xff]
        %v359 = vld [vmem:[#allocation2 + $0x9] sm:$0xff]
        %v360 = vld [vmem:[#allocation2 + $0x19] sm:$0xff]
        %v361 = vld [vmem:[#allocation2 + $0x21] sm:$0xff]
        %v362 = vld [vmem:[#allocation2 + $0x31] sm:$0xff]
        %v363 = vld [vmem:[#allocation2 + $0x39] sm:$0xff]
        %v364 = vld [vmem:[#allocation2 + $0x49] sm:$0xff]
        %v365 = vld [vmem:[#allocation2 + $0x51] sm:$0xff]
        %v366 = vld [vmem:[#allocation2 + $0x61] sm:$0xff]
        %v367 = vld [vmem:[#allocation2 + $0x69] sm:$0xff]
        %v368 = vld [vmem:[#allocation2 + $0x79] sm:$0xff]
        %v369 = vld [vmem:[#allocation2 + $0x81] sm:$0xff]
        %v370 = vld [vmem:[#allocation2 + $0x91] sm:$0xff]
        %v371 = vld [vmem:[#allocation2 + $0x99] sm:$0xff]
        %v372 = vld [vmem:[#allocation2 + $0xa9] sm:$0xff]
        %v373 = vld [vmem:[#allocation2 + $0xb1] sm:$0xff]
        %v374 = vld [vmem:[#allocation2 + $0xc1] sm:$0xff]
        %v375 = vld [vmem:[#allocation2 + $0xc9] sm:$0xff]
        %v376 = vld [vmem:[#allocation2 + $0xd9] sm:$0xff]
        %v377 = vld [vmem:[#allocation2 + $0xe1] sm:$0xff]
        %v378 = vld [vmem:[#allocation2 + $0xf1] sm:$0xff]
        %v379 = vld [vmem:[#allocation2 + $0xf9] sm:$0xff]
        %v380 = vld [vmem:[#allocation2 + $0x109] sm:$0xff]
        %v381 = vld [vmem:[#allocation2 + $0x111] sm:$0xff]
        %v382 = vld [vmem:[#allocation2 + $0x121] sm:$0xff]
        %v383 = vld [vmem:[#allocation2 + $0x129] sm:$0xff]
        %v384 = vld [vmem:[#allocation2 + $0x139] sm:$0xff]
        %v385 = vld [vmem:[#allocation2 + $0x141] sm:$0xff]
        %v386 = vld [vmem:[#allocation2 + $0x151] sm:$0xff]
        %v387 = vld [vmem:[#allocation2 + $0x159] sm:$0xff]
        %v388 = vld [vmem:[#allocation2 + $0x169] sm:$0xff]
        %v389 = vld [vmem:[#allocation2 + $0x171] sm:$0xff]
        %s390 = scalar_lea.vmem %s210, 4
        %v391 = vld [vmem:[%s390] sm:$0xf]
        %v393 = vsel %vm246, %v358, 0
        %v396 = vsel %vm246, %v359, 0
        %v399 = vsel %vm246, %v360, 0
        %v402 = vsel %vm246, %v361, 0
        %v405 = vsel %vm246, %v362, 0
        %v408 = vsel %vm246, %v363, 0
        %v411 = vsel %vm246, %v364, 0
        %v414 = vsel %vm246, %v365, 0
        %v417 = vsel %vm246, %v366, 0
        %v420 = vsel %vm246, %v367, 0
        %v423 = vsel %vm246, %v368, 0
        %v426 = vsel %vm246, %v369, 0
        %v429 = vsel %vm246, %v370, 0
        %v432 = vsel %vm246, %v371, 0
        %v435 = vsel %vm246, %v372, 0
        %v438 = vsel %vm246, %v373, 0
        %v441 = vsel %vm246, %v374, 0
        %v444 = vsel %vm246, %v375, 0
        %v447 = vsel %vm246, %v376, 0
        %v450 = vsel %vm246, %v377, 0
        %v453 = vsel %vm246, %v378, 0
        %v456 = vsel %vm246, %v379, 0
        %v459 = vsel %vm246, %v380, 0
        %v462 = vsel %vm246, %v381, 0
        %v465 = vsel %vm246, %v382, 0
        %v468 = vsel %vm246, %v383, 0
        %v471 = vsel %vm246, %v384, 0
        %v474 = vsel %vm246, %v385, 0
        %v477 = vsel %vm246, %v386, 0
        %v480 = vsel %vm246, %v387, 0
        %v483 = vsel %vm246, %v388, 0
        %v486 = vsel %vm246, %v389, 0
        %vm488 = vcmask 1043456
        %v490 = vsel %vm488, %v391, 0
        %492 = vmatpush.msra.mxu0 0.0
        %493 = vmatpush.msra.mxu0 0.0
        %494 = vmatpush.msra.mxu0 0.0
        %495 = vmatpush.msra.mxu0 0.0
        %496 = vmatpush.msra.mxu0 0.0
        %497 = vmatpush.msra.mxu0 0.0
        %498 = vmatpush.msra.mxu0 0.0
        %499 = vmatpush.msra.mxu0 0.0
        %500 = vmatpush.msra.mxu0 0.0
        %501 = vmatpush.msra.mxu0 0.0
        %502 = vmatpush.msra.mxu0 0.0
        %503 = vmatpush.msra.mxu0 0.0
        %504 = vmatpush.msra.mxu0 0.0
        %505 = vmatpush.msra.mxu0 0.0
        %506 = vmatpush.msra.mxu0 0.0
        %507 = vmatpush.msra.mxu0 %v490
        %508 = vmatmul.f32.gmra.mxu0 %v393
        %v509 = vpop.f32.mrf.mxu0
        %v510 = vadd.f32 0.0, %v509
        %511 = vmatmul.f32.gmra.mxu0 %v396
        %v512 = vpop.f32.mrf.mxu0
        %v513 = vadd.f32 0.0, %v512
        %514 = vmatmul.f32.gmra.mxu0 %v399
        %v515 = vpop.f32.mrf.mxu0
        %v516 = vadd.f32 0.0, %v515
        %517 = vmatmul.f32.gmra.mxu0 %v402
        %v518 = vpop.f32.mrf.mxu0
        %v519 = vadd.f32 0.0, %v518
        %520 = vmatmul.f32.gmra.mxu0 %v405
        %v521 = vpop.f32.mrf.mxu0
        %v522 = vadd.f32 0.0, %v521
        %523 = vmatmul.f32.gmra.mxu0 %v408
        %v524 = vpop.f32.mrf.mxu0
        %v525 = vadd.f32 0.0, %v524
        %526 = vmatmul.f32.gmra.mxu0 %v411
        %v527 = vpop.f32.mrf.mxu0
        %v528 = vadd.f32 0.0, %v527
        %529 = vmatmul.f32.gmra.mxu0 %v414
        %v530 = vpop.f32.mrf.mxu0
        %v531 = vadd.f32 0.0, %v530
        %532 = vmatmul.f32.gmra.mxu0 %v417
        %v533 = vpop.f32.mrf.mxu0
        %v534 = vadd.f32 0.0, %v533
        %535 = vmatmul.f32.gmra.mxu0 %v420
        %v536 = vpop.f32.mrf.mxu0
        %v537 = vadd.f32 0.0, %v536
        %538 = vmatmul.f32.gmra.mxu0 %v423
        %v539 = vpop.f32.mrf.mxu0
        %v540 = vadd.f32 0.0, %v539
        %541 = vmatmul.f32.gmra.mxu0 %v426
        %v542 = vpop.f32.mrf.mxu0
        %v543 = vadd.f32 0.0, %v542
        %544 = vmatmul.f32.gmra.mxu0 %v429
        %v545 = vpop.f32.mrf.mxu0
        %v546 = vadd.f32 0.0, %v545
        %547 = vmatmul.f32.gmra.mxu0 %v432
        %v548 = vpop.f32.mrf.mxu0
        %v549 = vadd.f32 0.0, %v548
        %550 = vmatmul.f32.gmra.mxu0 %v435
        %v551 = vpop.f32.mrf.mxu0
        %v552 = vadd.f32 0.0, %v551
        %553 = vmatmul.f32.gmra.mxu0 %v438
        %v554 = vpop.f32.mrf.mxu0
        %v555 = vadd.f32 0.0, %v554
        %556 = vmatmul.f32.gmra.mxu0 %v441
        %v557 = vpop.f32.mrf.mxu0
        %v558 = vadd.f32 0.0, %v557
        %559 = vmatmul.f32.gmra.mxu0 %v444
        %v560 = vpop.f32.mrf.mxu0
        %v561 = vadd.f32 0.0, %v560
        %562 = vmatmul.f32.gmra.mxu0 %v447
        %v563 = vpop.f32.mrf.mxu0
        %v564 = vadd.f32 0.0, %v563
        %565 = vmatmul.f32.gmra.mxu0 %v450
        %v566 = vpop.f32.mrf.mxu0
        %v567 = vadd.f32 0.0, %v566
        %568 = vmatmul.f32.gmra.mxu0 %v453
        %v569 = vpop.f32.mrf.mxu0
        %v570 = vadd.f32 0.0, %v569
        %571 = vmatmul.f32.gmra.mxu0 %v456
        %v572 = vpop.f32.mrf.mxu0
        %v573 = vadd.f32 0.0, %v572
        %574 = vmatmul.f32.gmra.mxu0 %v459
        %v575 = vpop.f32.mrf.mxu0
        %v576 = vadd.f32 0.0, %v575
        %577 = vmatmul.f32.gmra.mxu0 %v462
        %v578 = vpop.f32.mrf.mxu0
        %v579 = vadd.f32 0.0, %v578
        %580 = vmatmul.f32.gmra.mxu0 %v465
        %v581 = vpop.f32.mrf.mxu0
        %v582 = vadd.f32 0.0, %v581
        %583 = vmatmul.f32.gmra.mxu0 %v468
        %v584 = vpop.f32.mrf.mxu0
        %v585 = vadd.f32 0.0, %v584
        %586 = vmatmul.f32.gmra.mxu0 %v471
        %v587 = vpop.f32.mrf.mxu0
        %v588 = vadd.f32 0.0, %v587
        %589 = vmatmul.f32.gmra.mxu0 %v474
        %v590 = vpop.f32.mrf.mxu0
        %v591 = vadd.f32 0.0, %v590
        %592 = vmatmul.f32.gmra.mxu0 %v477
        %v593 = vpop.f32.mrf.mxu0
        %v594 = vadd.f32 0.0, %v593
        %595 = vmatmul.f32.gmra.mxu0 %v480
        %v596 = vpop.f32.mrf.mxu0
        %v597 = vadd.f32 0.0, %v596
        %598 = vmatmul.f32.gmra.mxu0 %v483
        %v599 = vpop.f32.mrf.mxu0
        %v600 = vadd.f32 0.0, %v599
        %601 = vmatmul.f32.gmra.mxu0 %v486
        %v602 = vpop.f32.mrf.mxu0
        %v603 = vadd.f32 0.0, %v602
        %604 = vdwg.mxu0
        %v606 = vsel %vm246, %v325, 0
        %v609 = vsel %vm246, %v326, 0
        %v612 = vsel %vm246, %v327, 0
        %v615 = vsel %vm246, %v328, 0
        %v618 = vsel %vm246, %v329, 0
        %v621 = vsel %vm246, %v330, 0
        %v624 = vsel %vm246, %v331, 0
        %v627 = vsel %vm246, %v332, 0
        %v630 = vsel %vm246, %v333, 0
        %v633 = vsel %vm246, %v334, 0
        %v636 = vsel %vm246, %v335, 0
        %v639 = vsel %vm246, %v336, 0
        %v642 = vsel %vm246, %v337, 0
        %v645 = vsel %vm246, %v338, 0
        %v648 = vsel %vm246, %v339, 0
        %v651 = vsel %vm246, %v340, 0
        %v654 = vsel %vm246, %v341, 0
        %v657 = vsel %vm246, %v342, 0
        %v660 = vsel %vm246, %v343, 0
        %v663 = vsel %vm246, %v344, 0
        %v666 = vsel %vm246, %v345, 0
        %v669 = vsel %vm246, %v346, 0
        %v672 = vsel %vm246, %v347, 0
        %v675 = vsel %vm246, %v348, 0
        %v678 = vsel %vm246, %v349, 0
        %v681 = vsel %vm246, %v350, 0
        %v684 = vsel %vm246, %v351, 0
        %v687 = vsel %vm246, %v352, 0
        %v690 = vsel %vm246, %v353, 0
        %v693 = vsel %vm246, %v354, 0
        %v696 = vsel %vm246, %v355, 0
        %v699 = vsel %vm246, %v356, 0
        %v702 = vsel %vm488, %v357, 0
        %704 = vmatpush.msra.mxu0 0.0
        %705 = vmatpush.msra.mxu0 0.0
        %706 = vmatpush.msra.mxu0 0.0
        %707 = vmatpush.msra.mxu0 0.0
        %708 = vmatpush.msra.mxu0 0.0
        %709 = vmatpush.msra.mxu0 0.0
        %710 = vmatpush.msra.mxu0 0.0
        %711 = vmatpush.msra.mxu0 0.0
        %712 = vmatpush.msra.mxu0 0.0
        %713 = vmatpush.msra.mxu0 0.0
        %714 = vmatpush.msra.mxu0 0.0
        %715 = vmatpush.msra.mxu0 0.0
        %716 = vmatpush.msra.mxu0 0.0
        %717 = vmatpush.msra.mxu0 0.0
        %718 = vmatpush.msra.mxu0 0.0
        %719 = vmatpush.msra.mxu0 %v702
        %720 = vmatmul.f32.gmra.mxu0 %v606
        %v721 = vpop.f32.mrf.mxu0
        %v722 = vadd.f32 %v510, %v721
        %723 = vmatmul.f32.gmra.mxu0 %v609
        %v724 = vpop.f32.mrf.mxu0
        %v725 = vadd.f32 %v513, %v724
        %726 = vmatmul.f32.gmra.mxu0 %v612
        %v727 = vpop.f32.mrf.mxu0
        %v728 = vadd.f32 %v516, %v727
        %729 = vmatmul.f32.gmra.mxu0 %v615
        %v730 = vpop.f32.mrf.mxu0
        %v731 = vadd.f32 %v519, %v730
        %732 = vmatmul.f32.gmra.mxu0 %v618
        %v733 = vpop.f32.mrf.mxu0
        %v734 = vadd.f32 %v522, %v733
        %735 = vmatmul.f32.gmra.mxu0 %v621
        %v736 = vpop.f32.mrf.mxu0
        %v737 = vadd.f32 %v525, %v736
        %738 = vmatmul.f32.gmra.mxu0 %v624
        %v739 = vpop.f32.mrf.mxu0
        %v740 = vadd.f32 %v528, %v739
        %741 = vmatmul.f32.gmra.mxu0 %v627
        %v742 = vpop.f32.mrf.mxu0
        %v743 = vadd.f32 %v531, %v742
        %744 = vmatmul.f32.gmra.mxu0 %v630
        %v745 = vpop.f32.mrf.mxu0
        %v746 = vadd.f32 %v534, %v745
        %747 = vmatmul.f32.gmra.mxu0 %v633
        %v748 = vpop.f32.mrf.mxu0
        %v749 = vadd.f32 %v537, %v748
        %750 = vmatmul.f32.gmra.mxu0 %v636
        %v751 = vpop.f32.mrf.mxu0
        %v752 = vadd.f32 %v540, %v751
        %753 = vmatmul.f32.gmra.mxu0 %v639
        %v754 = vpop.f32.mrf.mxu0
        %v755 = vadd.f32 %v543, %v754
        %756 = vmatmul.f32.gmra.mxu0 %v642
        %v757 = vpop.f32.mrf.mxu0
        %v758 = vadd.f32 %v546, %v757
        %759 = vmatmul.f32.gmra.mxu0 %v645
        %v760 = vpop.f32.mrf.mxu0
        %v761 = vadd.f32 %v549, %v760
        %762 = vmatmul.f32.gmra.mxu0 %v648
        %v763 = vpop.f32.mrf.mxu0
        %v764 = vadd.f32 %v552, %v763
        %765 = vmatmul.f32.gmra.mxu0 %v651
        %v766 = vpop.f32.mrf.mxu0
        %v767 = vadd.f32 %v555, %v766
        %768 = vmatmul.f32.gmra.mxu0 %v654
        %v769 = vpop.f32.mrf.mxu0
        %v770 = vadd.f32 %v558, %v769
        %771 = vmatmul.f32.gmra.mxu0 %v657
        %v772 = vpop.f32.mrf.mxu0
        %v773 = vadd.f32 %v561, %v772
        %774 = vmatmul.f32.gmra.mxu0 %v660
        %v775 = vpop.f32.mrf.mxu0
        %v776 = vadd.f32 %v564, %v775
        %777 = vmatmul.f32.gmra.mxu0 %v663
        %v778 = vpop.f32.mrf.mxu0
        %v779 = vadd.f32 %v567, %v778
        %780 = vmatmul.f32.gmra.mxu0 %v666
        %v781 = vpop.f32.mrf.mxu0
        %v782 = vadd.f32 %v570, %v781
        %783 = vmatmul.f32.gmra.mxu0 %v669
        %v784 = vpop.f32.mrf.mxu0
        %v785 = vadd.f32 %v573, %v784
        %786 = vmatmul.f32.gmra.mxu0 %v672
        %v787 = vpop.f32.mrf.mxu0
        %v788 = vadd.f32 %v576, %v787
        %789 = vmatmul.f32.gmra.mxu0 %v675
        %v790 = vpop.f32.mrf.mxu0
        %v791 = vadd.f32 %v579, %v790
        %792 = vmatmul.f32.gmra.mxu0 %v678
        %v793 = vpop.f32.mrf.mxu0
        %v794 = vadd.f32 %v582, %v793
        %795 = vmatmul.f32.gmra.mxu0 %v681
        %v796 = vpop.f32.mrf.mxu0
        %v797 = vadd.f32 %v585, %v796
        %798 = vmatmul.f32.gmra.mxu0 %v684
        %v799 = vpop.f32.mrf.mxu0
        %v800 = vadd.f32 %v588, %v799
        %801 = vmatmul.f32.gmra.mxu0 %v687
        %v802 = vpop.f32.mrf.mxu0
        %v803 = vadd.f32 %v591, %v802
        %804 = vmatmul.f32.gmra.mxu0 %v690
        %v805 = vpop.f32.mrf.mxu0
        %v806 = vadd.f32 %v594, %v805
        %807 = vmatmul.f32.gmra.mxu0 %v693
        %v808 = vpop.f32.mrf.mxu0
        %v809 = vadd.f32 %v597, %v808
        %810 = vmatmul.f32.gmra.mxu0 %v696
        %v811 = vpop.f32.mrf.mxu0
        %v812 = vadd.f32 %v600, %v811
        %813 = vmatmul.f32.gmra.mxu0 %v699
        %v814 = vpop.f32.mrf.mxu0
        %v815 = vadd.f32 %v603, %v814
        %816 = vdwg.mxu0
        %v817 = vld [vmem:[#allocation2 + $0x2] sm:$0xff]
        %v818 = vld [vmem:[#allocation2 + $0xa] sm:$0xff]
        %v819 = vld [vmem:[#allocation2 + $0x1a] sm:$0xff]
        %v820 = vld [vmem:[#allocation2 + $0x22] sm:$0xff]
        %v821 = vld [vmem:[#allocation2 + $0x32] sm:$0xff]
        %v822 = vld [vmem:[#allocation2 + $0x3a] sm:$0xff]
        %v823 = vld [vmem:[#allocation2 + $0x4a] sm:$0xff]
        %v824 = vld [vmem:[#allocation2 + $0x52] sm:$0xff]
        %v825 = vld [vmem:[#allocation2 + $0x62] sm:$0xff]
        %v826 = vld [vmem:[#allocation2 + $0x6a] sm:$0xff]
        %v827 = vld [vmem:[#allocation2 + $0x7a] sm:$0xff]
        %v828 = vld [vmem:[#allocation2 + $0x82] sm:$0xff]
        %v829 = vld [vmem:[#allocation2 + $0x92] sm:$0xff]
        %v830 = vld [vmem:[#allocation2 + $0x9a] sm:$0xff]
        %v831 = vld [vmem:[#allocation2 + $0xaa] sm:$0xff]
        %v832 = vld [vmem:[#allocation2 + $0xb2] sm:$0xff]
        %v833 = vld [vmem:[#allocation2 + $0xc2] sm:$0xff]
        %v834 = vld [vmem:[#allocation2 + $0xca] sm:$0xff]
        %v835 = vld [vmem:[#allocation2 + $0xda] sm:$0xff]
        %v836 = vld [vmem:[#allocation2 + $0xe2] sm:$0xff]
        %v837 = vld [vmem:[#allocation2 + $0xf2] sm:$0xff]
        %v838 = vld [vmem:[#allocation2 + $0xfa] sm:$0xff]
        %v839 = vld [vmem:[#allocation2 + $0x10a] sm:$0xff]
        %v840 = vld [vmem:[#allocation2 + $0x112] sm:$0xff]
        %v841 = vld [vmem:[#allocation2 + $0x122] sm:$0xff]
        %v842 = vld [vmem:[#allocation2 + $0x12a] sm:$0xff]
        %v843 = vld [vmem:[#allocation2 + $0x13a] sm:$0xff]
        %v844 = vld [vmem:[#allocation2 + $0x142] sm:$0xff]
        %v845 = vld [vmem:[#allocation2 + $0x152] sm:$0xff]
        %v846 = vld [vmem:[#allocation2 + $0x15a] sm:$0xff]
        %v847 = vld [vmem:[#allocation2 + $0x16a] sm:$0xff]
        %v848 = vld [vmem:[#allocation2 + $0x172] sm:$0xff]
        %s849 = scalar_lea.vmem %s210, 8
        %v850 = vld [vmem:[%s849] sm:$0xf]
        %v852 = vsel %vm246, %v817, 0
        %v855 = vsel %vm246, %v818, 0
        %v858 = vsel %vm246, %v819, 0
        %v861 = vsel %vm246, %v820, 0
        %v864 = vsel %vm246, %v821, 0
        %v867 = vsel %vm246, %v822, 0
        %v870 = vsel %vm246, %v823, 0
        %v873 = vsel %vm246, %v824, 0
        %v876 = vsel %vm246, %v825, 0
        %v879 = vsel %vm246, %v826, 0
        %v882 = vsel %vm246, %v827, 0
        %v885 = vsel %vm246, %v828, 0
        %v888 = vsel %vm246, %v829, 0
        %v891 = vsel %vm246, %v830, 0
        %v894 = vsel %vm246, %v831, 0
        %v897 = vsel %vm246, %v832, 0
        %v900 = vsel %vm246, %v833, 0
        %v903 = vsel %vm246, %v834, 0
        %v906 = vsel %vm246, %v835, 0
        %v909 = vsel %vm246, %v836, 0
        %v912 = vsel %vm246, %v837, 0
        %v915 = vsel %vm246, %v838, 0
        %v918 = vsel %vm246, %v839, 0
        %v921 = vsel %vm246, %v840, 0
        %v924 = vsel %vm246, %v841, 0
        %v927 = vsel %vm246, %v842, 0
        %v930 = vsel %vm246, %v843, 0
        %v933 = vsel %vm246, %v844, 0
        %v936 = vsel %vm246, %v845, 0
        %v939 = vsel %vm246, %v846, 0
        %v942 = vsel %vm246, %v847, 0
        %v945 = vsel %vm246, %v848, 0
        %v948 = vsel %vm488, %v850, 0
        %950 = vmatpush.msra.mxu0 0.0
        %951 = vmatpush.msra.mxu0 0.0
        %952 = vmatpush.msra.mxu0 0.0
        %953 = vmatpush.msra.mxu0 0.0
        %954 = vmatpush.msra.mxu0 0.0
        %955 = vmatpush.msra.mxu0 0.0
        %956 = vmatpush.msra.mxu0 0.0
        %957 = vmatpush.msra.mxu0 0.0
        %958 = vmatpush.msra.mxu0 0.0
        %959 = vmatpush.msra.mxu0 0.0
        %960 = vmatpush.msra.mxu0 0.0
        %961 = vmatpush.msra.mxu0 0.0
        %962 = vmatpush.msra.mxu0 0.0
        %963 = vmatpush.msra.mxu0 0.0
        %964 = vmatpush.msra.mxu0 0.0
        %965 = vmatpush.msra.mxu0 %v948
        %966 = vmatmul.f32.gmra.mxu0 %v852
        %v967 = vpop.f32.mrf.mxu0
        %v968 = vadd.f32 0.0, %v967
        %969 = vmatmul.f32.gmra.mxu0 %v855
        %v970 = vpop.f32.mrf.mxu0
        %v971 = vadd.f32 0.0, %v970
        %972 = vmatmul.f32.gmra.mxu0 %v858
        %v973 = vpop.f32.mrf.mxu0
        %v974 = vadd.f32 0.0, %v973
        %975 = vmatmul.f32.gmra.mxu0 %v861
        %v976 = vpop.f32.mrf.mxu0
        %v977 = vadd.f32 0.0, %v976
        %978 = vmatmul.f32.gmra.mxu0 %v864
        %v979 = vpop.f32.mrf.mxu0
        %v980 = vadd.f32 0.0, %v979
        %981 = vmatmul.f32.gmra.mxu0 %v867
        %v982 = vpop.f32.mrf.mxu0
        %v983 = vadd.f32 0.0, %v982
        %984 = vmatmul.f32.gmra.mxu0 %v870
        %v985 = vpop.f32.mrf.mxu0
        %v986 = vadd.f32 0.0, %v985
        %987 = vmatmul.f32.gmra.mxu0 %v873
        %v988 = vpop.f32.mrf.mxu0
        %v989 = vadd.f32 0.0, %v988
        %990 = vmatmul.f32.gmra.mxu0 %v876
        %v991 = vpop.f32.mrf.mxu0
        %v992 = vadd.f32 0.0, %v991
        %993 = vmatmul.f32.gmra.mxu0 %v879
        %v994 = vpop.f32.mrf.mxu0
        %v995 = vadd.f32 0.0, %v994
        %996 = vmatmul.f32.gmra.mxu0 %v882
        %v997 = vpop.f32.mrf.mxu0
        %v998 = vadd.f32 0.0, %v997
        %999 = vmatmul.f32.gmra.mxu0 %v885
        %v1000 = vpop.f32.mrf.mxu0
        %v1001 = vadd.f32 0.0, %v1000
        %1002 = vmatmul.f32.gmra.mxu0 %v888
        %v1003 = vpop.f32.mrf.mxu0
        %v1004 = vadd.f32 0.0, %v1003
        %1005 = vmatmul.f32.gmra.mxu0 %v891
        %v1006 = vpop.f32.mrf.mxu0
        %v1007 = vadd.f32 0.0, %v1006
        %1008 = vmatmul.f32.gmra.mxu0 %v894
        %v1009 = vpop.f32.mrf.mxu0
        %v1010 = vadd.f32 0.0, %v1009
        %1011 = vmatmul.f32.gmra.mxu0 %v897
        %v1012 = vpop.f32.mrf.mxu0
        %v1013 = vadd.f32 0.0, %v1012
        %1014 = vmatmul.f32.gmra.mxu0 %v900
        %v1015 = vpop.f32.mrf.mxu0
        %v1016 = vadd.f32 0.0, %v1015
        %1017 = vmatmul.f32.gmra.mxu0 %v903
        %v1018 = vpop.f32.mrf.mxu0
        %v1019 = vadd.f32 0.0, %v1018
        %1020 = vmatmul.f32.gmra.mxu0 %v906
        %v1021 = vpop.f32.mrf.mxu0
        %v1022 = vadd.f32 0.0, %v1021
        %1023 = vmatmul.f32.gmra.mxu0 %v909
        %v1024 = vpop.f32.mrf.mxu0
        %v1025 = vadd.f32 0.0, %v1024
        %1026 = vmatmul.f32.gmra.mxu0 %v912
        %v1027 = vpop.f32.mrf.mxu0
        %v1028 = vadd.f32 0.0, %v1027
        %1029 = vmatmul.f32.gmra.mxu0 %v915
        %v1030 = vpop.f32.mrf.mxu0
        %v1031 = vadd.f32 0.0, %v1030
        %1032 = vmatmul.f32.gmra.mxu0 %v918
        %v1033 = vpop.f32.mrf.mxu0
        %v1034 = vadd.f32 0.0, %v1033
        %1035 = vmatmul.f32.gmra.mxu0 %v921
        %v1036 = vpop.f32.mrf.mxu0
        %v1037 = vadd.f32 0.0, %v1036
        %1038 = vmatmul.f32.gmra.mxu0 %v924
        %v1039 = vpop.f32.mrf.mxu0
        %v1040 = vadd.f32 0.0, %v1039
        %1041 = vmatmul.f32.gmra.mxu0 %v927
        %v1042 = vpop.f32.mrf.mxu0
        %v1043 = vadd.f32 0.0, %v1042
        %1044 = vmatmul.f32.gmra.mxu0 %v930
        %v1045 = vpop.f32.mrf.mxu0
        %v1046 = vadd.f32 0.0, %v1045
        %1047 = vmatmul.f32.gmra.mxu0 %v933
        %v1048 = vpop.f32.mrf.mxu0
        %v1049 = vadd.f32 0.0, %v1048
        %1050 = vmatmul.f32.gmra.mxu0 %v936
        %v1051 = vpop.f32.mrf.mxu0
        %v1052 = vadd.f32 0.0, %v1051
        %1053 = vmatmul.f32.gmra.mxu0 %v939
        %v1054 = vpop.f32.mrf.mxu0
        %v1055 = vadd.f32 0.0, %v1054
        %1056 = vmatmul.f32.gmra.mxu0 %v942
        %v1057 = vpop.f32.mrf.mxu0
        %v1058 = vadd.f32 0.0, %v1057
        %1059 = vmatmul.f32.gmra.mxu0 %v945
        %v1060 = vpop.f32.mrf.mxu0
        %v1061 = vadd.f32 0.0, %v1060
        %1062 = vdwg.mxu0
        %v1063 = vadd.f32 %v722, %v968
        %v1064 = vadd.f32 %v725, %v971
        %v1065 = vadd.f32 %v728, %v974
        %v1066 = vadd.f32 %v731, %v977
        %v1067 = vadd.f32 %v734, %v980
        %v1068 = vadd.f32 %v737, %v983
        %v1069 = vadd.f32 %v740, %v986
        %v1070 = vadd.f32 %v743, %v989
        %v1071 = vadd.f32 %v746, %v992
        %v1072 = vadd.f32 %v749, %v995
        %v1073 = vadd.f32 %v752, %v998
        %v1074 = vadd.f32 %v755, %v1001
        %v1075 = vadd.f32 %v758, %v1004
        %v1076 = vadd.f32 %v761, %v1007
        %v1077 = vadd.f32 %v764, %v1010
        %v1078 = vadd.f32 %v767, %v1013
        %v1079 = vadd.f32 %v770, %v1016
        %v1080 = vadd.f32 %v773, %v1019
        %v1081 = vadd.f32 %v776, %v1022
        %v1082 = vadd.f32 %v779, %v1025
        %v1083 = vadd.f32 %v782, %v1028
        %v1084 = vadd.f32 %v785, %v1031
        %v1085 = vadd.f32 %v788, %v1034
        %v1086 = vadd.f32 %v791, %v1037
        %v1087 = vadd.f32 %v794, %v1040
        %v1088 = vadd.f32 %v797, %v1043
        %v1089 = vadd.f32 %v800, %v1046
        %v1090 = vadd.f32 %v803, %v1049
        %v1091 = vadd.f32 %v806, %v1052
        %v1092 = vadd.f32 %v809, %v1055
        %v1093 = vadd.f32 %v812, %v1058
        %v1094 = vadd.f32 %v815, %v1061
        %v1095 = vld [vmem:[%s292] sm:$0xff]
        %v1096 = vld [vmem:[%s292 + $0x8] sm:$0xff]
        %v1097 = vld [vmem:[%s292 + $0x18] sm:$0xff]
        %v1098 = vld [vmem:[%s292 + $0x20] sm:$0xff]
        %v1099 = vld [vmem:[%s292 + $0x30] sm:$0xff]
        %v1100 = vld [vmem:[%s292 + $0x38] sm:$0xff]
        %v1101 = vld [vmem:[%s292 + $0x48] sm:$0xff]
        %v1102 = vld [vmem:[%s292 + $0x50] sm:$0xff]
        %v1103 = vld [vmem:[%s292 + $0x60] sm:$0xff]
        %v1104 = vld [vmem:[%s292 + $0x68] sm:$0xff]
        %v1105 = vld [vmem:[%s292 + $0x78] sm:$0xff]
        %v1106 = vld [vmem:[%s292 + $0x80] sm:$0xff]
        %v1107 = vld [vmem:[%s292 + $0x90] sm:$0xff]
        %v1108 = vld [vmem:[%s292 + $0x98] sm:$0xff]
        %v1109 = vld [vmem:[%s292 + $0xa8] sm:$0xff]
        %v1110 = vld [vmem:[%s292 + $0xb0] sm:$0xff]
        %v1111 = vld [vmem:[%s292 + $0xc0] sm:$0xff]
        %v1112 = vld [vmem:[%s292 + $0xc8] sm:$0xff]
        %v1113 = vld [vmem:[%s292 + $0xd8] sm:$0xff]
        %v1114 = vld [vmem:[%s292 + $0xe0] sm:$0xff]
        %v1115 = vld [vmem:[%s292 + $0xf0] sm:$0xff]
        %v1116 = vld [vmem:[%s292 + $0xf8] sm:$0xff]
        %v1117 = vld [vmem:[%s292 + $0x108] sm:$0xff]
        %v1118 = vld [vmem:[%s292 + $0x110] sm:$0xff]
        %v1119 = vld [vmem:[%s292 + $0x120] sm:$0xff]
        %v1120 = vld [vmem:[%s292 + $0x128] sm:$0xff]
        %v1121 = vld [vmem:[%s292 + $0x138] sm:$0xff]
        %v1122 = vld [vmem:[%s292 + $0x140] sm:$0xff]
        %v1123 = vld [vmem:[%s292 + $0x150] sm:$0xff]
        %v1124 = vld [vmem:[%s292 + $0x158] sm:$0xff]
        %v1125 = vld [vmem:[%s292 + $0x168] sm:$0xff]
        %v1126 = vld [vmem:[%s292 + $0x170] sm:$0xff]
        %s1127 = scalar_lea.vmem %s210, 12
        %v1128 = vld [vmem:[%s1127] sm:$0xf]
        %v1130 = vsel %vm246, %v1095, 0
        %v1133 = vsel %vm246, %v1096, 0
        %v1136 = vsel %vm246, %v1097, 0
        %v1139 = vsel %vm246, %v1098, 0
        %v1142 = vsel %vm246, %v1099, 0
        %v1145 = vsel %vm246, %v1100, 0
        %v1148 = vsel %vm246, %v1101, 0
        %v1151 = vsel %vm246, %v1102, 0
        %v1154 = vsel %vm246, %v1103, 0
        %v1157 = vsel %vm246, %v1104, 0
        %v1160 = vsel %vm246, %v1105, 0
        %v1163 = vsel %vm246, %v1106, 0
        %v1166 = vsel %vm246, %v1107, 0
        %v1169 = vsel %vm246, %v1108, 0
        %v1172 = vsel %vm246, %v1109, 0
        %v1175 = vsel %vm246, %v1110, 0
        %v1178 = vsel %vm246, %v1111, 0
        %v1181 = vsel %vm246, %v1112, 0
        %v1184 = vsel %vm246, %v1113, 0
        %v1187 = vsel %vm246, %v1114, 0
        %v1190 = vsel %vm246, %v1115, 0
        %v1193 = vsel %vm246, %v1116, 0
        %v1196 = vsel %vm246, %v1117, 0
        %v1199 = vsel %vm246, %v1118, 0
        %v1202 = vsel %vm246, %v1119, 0
        %v1205 = vsel %vm246, %v1120, 0
        %v1208 = vsel %vm246, %v1121, 0
        %v1211 = vsel %vm246, %v1122, 0
        %v1214 = vsel %vm246, %v1123, 0
        %v1217 = vsel %vm246, %v1124, 0
        %v1220 = vsel %vm246, %v1125, 0
        %v1223 = vsel %vm246, %v1126, 0
        %v1226 = vsel %vm488, %v1128, 0
        %1228 = vmatpush.msra.mxu0 0.0
        %1229 = vmatpush.msra.mxu0 0.0
        %1230 = vmatpush.msra.mxu0 0.0
        %1231 = vmatpush.msra.mxu0 0.0
        %1232 = vmatpush.msra.mxu0 0.0
        %1233 = vmatpush.msra.mxu0 0.0
        %1234 = vmatpush.msra.mxu0 0.0
        %1235 = vmatpush.msra.mxu0 0.0
        %1236 = vmatpush.msra.mxu0 0.0
        %1237 = vmatpush.msra.mxu0 0.0
        %1238 = vmatpush.msra.mxu0 0.0
        %1239 = vmatpush.msra.mxu0 0.0
        %1240 = vmatpush.msra.mxu0 0.0
        %1241 = vmatpush.msra.mxu0 0.0
        %1242 = vmatpush.msra.mxu0 0.0
        %1243 = vmatpush.msra.mxu0 %v1226
        %1244 = vmatmul.f32.gmra.mxu0 %v1130
        %v1245 = vpop.f32.mrf.mxu0
        %v1246 = vadd.f32 0.0, %v1245
        %1247 = vmatmul.f32.gmra.mxu0 %v1133
        %v1248 = vpop.f32.mrf.mxu0
        %v1249 = vadd.f32 0.0, %v1248
        %1250 = vmatmul.f32.gmra.mxu0 %v1136
        %v1251 = vpop.f32.mrf.mxu0
        %v1252 = vadd.f32 0.0, %v1251
        %1253 = vmatmul.f32.gmra.mxu0 %v1139
        %v1254 = vpop.f32.mrf.mxu0
        %v1255 = vadd.f32 0.0, %v1254
        %1256 = vmatmul.f32.gmra.mxu0 %v1142
        %v1257 = vpop.f32.mrf.mxu0
        %v1258 = vadd.f32 0.0, %v1257
        %1259 = vmatmul.f32.gmra.mxu0 %v1145
        %v1260 = vpop.f32.mrf.mxu0
        %v1261 = vadd.f32 0.0, %v1260
        %1262 = vmatmul.f32.gmra.mxu0 %v1148
        %v1263 = vpop.f32.mrf.mxu0
        %v1264 = vadd.f32 0.0, %v1263
        %1265 = vmatmul.f32.gmra.mxu0 %v1151
        %v1266 = vpop.f32.mrf.mxu0
        %v1267 = vadd.f32 0.0, %v1266
        %1268 = vmatmul.f32.gmra.mxu0 %v1154
        %v1269 = vpop.f32.mrf.mxu0
        %v1270 = vadd.f32 0.0, %v1269
        %1271 = vmatmul.f32.gmra.mxu0 %v1157
        %v1272 = vpop.f32.mrf.mxu0
        %v1273 = vadd.f32 0.0, %v1272
        %1274 = vmatmul.f32.gmra.mxu0 %v1160
        %v1275 = vpop.f32.mrf.mxu0
        %v1276 = vadd.f32 0.0, %v1275
        %1277 = vmatmul.f32.gmra.mxu0 %v1163
        %v1278 = vpop.f32.mrf.mxu0
        %v1279 = vadd.f32 0.0, %v1278
        %1280 = vmatmul.f32.gmra.mxu0 %v1166
        %v1281 = vpop.f32.mrf.mxu0
        %v1282 = vadd.f32 0.0, %v1281
        %1283 = vmatmul.f32.gmra.mxu0 %v1169
        %v1284 = vpop.f32.mrf.mxu0
        %v1285 = vadd.f32 0.0, %v1284
        %1286 = vmatmul.f32.gmra.mxu0 %v1172
        %v1287 = vpop.f32.mrf.mxu0
        %v1288 = vadd.f32 0.0, %v1287
        %1289 = vmatmul.f32.gmra.mxu0 %v1175
        %v1290 = vpop.f32.mrf.mxu0
        %v1291 = vadd.f32 0.0, %v1290
        %1292 = vmatmul.f32.gmra.mxu0 %v1178
        %v1293 = vpop.f32.mrf.mxu0
        %v1294 = vadd.f32 0.0, %v1293
        %1295 = vmatmul.f32.gmra.mxu0 %v1181
        %v1296 = vpop.f32.mrf.mxu0
        %v1297 = vadd.f32 0.0, %v1296
        %1298 = vmatmul.f32.gmra.mxu0 %v1184
        %v1299 = vpop.f32.mrf.mxu0
        %v1300 = vadd.f32 0.0, %v1299
        %1301 = vmatmul.f32.gmra.mxu0 %v1187
        %v1302 = vpop.f32.mrf.mxu0
        %v1303 = vadd.f32 0.0, %v1302
        %1304 = vmatmul.f32.gmra.mxu0 %v1190
        %v1305 = vpop.f32.mrf.mxu0
        %v1306 = vadd.f32 0.0, %v1305
        %1307 = vmatmul.f32.gmra.mxu0 %v1193
        %v1308 = vpop.f32.mrf.mxu0
        %v1309 = vadd.f32 0.0, %v1308
        %1310 = vmatmul.f32.gmra.mxu0 %v1196
        %v1311 = vpop.f32.mrf.mxu0
        %v1312 = vadd.f32 0.0, %v1311
        %1313 = vmatmul.f32.gmra.mxu0 %v1199
        %v1314 = vpop.f32.mrf.mxu0
        %v1315 = vadd.f32 0.0, %v1314
        %1316 = vmatmul.f32.gmra.mxu0 %v1202
        %v1317 = vpop.f32.mrf.mxu0
        %v1318 = vadd.f32 0.0, %v1317
        %1319 = vmatmul.f32.gmra.mxu0 %v1205
        %v1320 = vpop.f32.mrf.mxu0
        %v1321 = vadd.f32 0.0, %v1320
        %1322 = vmatmul.f32.gmra.mxu0 %v1208
        %v1323 = vpop.f32.mrf.mxu0
        %v1324 = vadd.f32 0.0, %v1323
        %1325 = vmatmul.f32.gmra.mxu0 %v1211
        %v1326 = vpop.f32.mrf.mxu0
        %v1327 = vadd.f32 0.0, %v1326
        %1328 = vmatmul.f32.gmra.mxu0 %v1214
        %v1329 = vpop.f32.mrf.mxu0
        %v1330 = vadd.f32 0.0, %v1329
        %1331 = vmatmul.f32.gmra.mxu0 %v1217
        %v1332 = vpop.f32.mrf.mxu0
        %v1333 = vadd.f32 0.0, %v1332
        %1334 = vmatmul.f32.gmra.mxu0 %v1220
        %v1335 = vpop.f32.mrf.mxu0
        %v1336 = vadd.f32 0.0, %v1335
        %1337 = vmatmul.f32.gmra.mxu0 %v1223
        %v1338 = vpop.f32.mrf.mxu0
        %v1339 = vadd.f32 0.0, %v1338
        %1340 = vdwg.mxu0
        %v1341 = vadd.f32 %v1063, %v1246
        %v1342 = vadd.f32 %v1064, %v1249
        %v1343 = vadd.f32 %v1065, %v1252
        %v1344 = vadd.f32 %v1066, %v1255
        %v1345 = vadd.f32 %v1067, %v1258
        %v1346 = vadd.f32 %v1068, %v1261
        %v1347 = vadd.f32 %v1069, %v1264
        %v1348 = vadd.f32 %v1070, %v1267
        %v1349 = vadd.f32 %v1071, %v1270
        %v1350 = vadd.f32 %v1072, %v1273
        %v1351 = vadd.f32 %v1073, %v1276
        %v1352 = vadd.f32 %v1074, %v1279
        %v1353 = vadd.f32 %v1075, %v1282
        %v1354 = vadd.f32 %v1076, %v1285
        %v1355 = vadd.f32 %v1077, %v1288
        %v1356 = vadd.f32 %v1078, %v1291
        %v1357 = vadd.f32 %v1079, %v1294
        %v1358 = vadd.f32 %v1080, %v1297
        %v1359 = vadd.f32 %v1081, %v1300
        %v1360 = vadd.f32 %v1082, %v1303
        %v1361 = vadd.f32 %v1083, %v1306
        %v1362 = vadd.f32 %v1084, %v1309
        %v1363 = vadd.f32 %v1085, %v1312
        %v1364 = vadd.f32 %v1086, %v1315
        %v1365 = vadd.f32 %v1087, %v1318
        %v1366 = vadd.f32 %v1088, %v1321
        %v1367 = vadd.f32 %v1089, %v1324
        %v1368 = vadd.f32 %v1090, %v1327
        %v1369 = vadd.f32 %v1091, %v1330
        %v1370 = vadd.f32 %v1092, %v1333
        %v1371 = vadd.f32 %v1093, %v1336
        %v1372 = vadd.f32 %v1094, %v1339
        %v1373 = vld [vmem:[%s292 + $0x1] sm:$0xff]
        %v1374 = vld [vmem:[%s292 + $0x9] sm:$0xff]
        %v1375 = vld [vmem:[%s292 + $0x19] sm:$0xff]
        %v1376 = vld [vmem:[%s292 + $0x21] sm:$0xff]
        %v1377 = vld [vmem:[%s292 + $0x31] sm:$0xff]
        %v1378 = vld [vmem:[%s292 + $0x39] sm:$0xff]
        %v1379 = vld [vmem:[%s292 + $0x49] sm:$0xff]
        %v1380 = vld [vmem:[%s292 + $0x51] sm:$0xff]
        %v1381 = vld [vmem:[%s292 + $0x61] sm:$0xff]
        %v1382 = vld [vmem:[%s292 + $0x69] sm:$0xff]
        %v1383 = vld [vmem:[%s292 + $0x79] sm:$0xff]
        %v1384 = vld [vmem:[%s292 + $0x81] sm:$0xff]
        %v1385 = vld [vmem:[%s292 + $0x91] sm:$0xff]
        %v1386 = vld [vmem:[%s292 + $0x99] sm:$0xff]
        %v1387 = vld [vmem:[%s292 + $0xa9] sm:$0xff]
        %v1388 = vld [vmem:[%s292 + $0xb1] sm:$0xff]
        %v1389 = vld [vmem:[%s292 + $0xc1] sm:$0xff]
        %v1390 = vld [vmem:[%s292 + $0xc9] sm:$0xff]
        %v1391 = vld [vmem:[%s292 + $0xd9] sm:$0xff]
        %v1392 = vld [vmem:[%s292 + $0xe1] sm:$0xff]
        %v1393 = vld [vmem:[%s292 + $0xf1] sm:$0xff]
        %v1394 = vld [vmem:[%s292 + $0xf9] sm:$0xff]
        %v1395 = vld [vmem:[%s292 + $0x109] sm:$0xff]
        %v1396 = vld [vmem:[%s292 + $0x111] sm:$0xff]
        %v1397 = vld [vmem:[%s292 + $0x121] sm:$0xff]
        %v1398 = vld [vmem:[%s292 + $0x129] sm:$0xff]
        %v1399 = vld [vmem:[%s292 + $0x139] sm:$0xff]
        %v1400 = vld [vmem:[%s292 + $0x141] sm:$0xff]
        %v1401 = vld [vmem:[%s292 + $0x151] sm:$0xff]
        %v1402 = vld [vmem:[%s292 + $0x159] sm:$0xff]
        %v1403 = vld [vmem:[%s292 + $0x169] sm:$0xff]
        %v1404 = vld [vmem:[%s292 + $0x171] sm:$0xff]
        %s1405 = scalar_lea.vmem %s210, 16
        %v1406 = vld [vmem:[%s1405] sm:$0xf]
        %v1408 = vsel %vm246, %v1373, 0
        %v1411 = vsel %vm246, %v1374, 0
        %v1414 = vsel %vm246, %v1375, 0
        %v1417 = vsel %vm246, %v1376, 0
        %v1420 = vsel %vm246, %v1377, 0
        %v1423 = vsel %vm246, %v1378, 0
        %v1426 = vsel %vm246, %v1379, 0
        %v1429 = vsel %vm246, %v1380, 0
        %v1432 = vsel %vm246, %v1381, 0
        %v1435 = vsel %vm246, %v1382, 0
        %v1438 = vsel %vm246, %v1383, 0
        %v1441 = vsel %vm246, %v1384, 0
        %v1444 = vsel %vm246, %v1385, 0
        %v1447 = vsel %vm246, %v1386, 0
        %v1450 = vsel %vm246, %v1387, 0
        %v1453 = vsel %vm246, %v1388, 0
        %v1456 = vsel %vm246, %v1389, 0
        %v1459 = vsel %vm246, %v1390, 0
        %v1462 = vsel %vm246, %v1391, 0
        %v1465 = vsel %vm246, %v1392, 0
        %v1468 = vsel %vm246, %v1393, 0
        %v1471 = vsel %vm246, %v1394, 0
        %v1474 = vsel %vm246, %v1395, 0
        %v1477 = vsel %vm246, %v1396, 0
        %v1480 = vsel %vm246, %v1397, 0
        %v1483 = vsel %vm246, %v1398, 0
        %v1486 = vsel %vm246, %v1399, 0
        %v1489 = vsel %vm246, %v1400, 0
        %v1492 = vsel %vm246, %v1401, 0
        %v1495 = vsel %vm246, %v1402, 0
        %v1498 = vsel %vm246, %v1403, 0
        %v1501 = vsel %vm246, %v1404, 0
        %v1504 = vsel %vm488, %v1406, 0
        %1506 = vmatpush.msra.mxu0 0.0
        %1507 = vmatpush.msra.mxu0 0.0
        %1508 = vmatpush.msra.mxu0 0.0
        %1509 = vmatpush.msra.mxu0 0.0
        %1510 = vmatpush.msra.mxu0 0.0
        %1511 = vmatpush.msra.mxu0 0.0
        %1512 = vmatpush.msra.mxu0 0.0
        %1513 = vmatpush.msra.mxu0 0.0
        %1514 = vmatpush.msra.mxu0 0.0
        %1515 = vmatpush.msra.mxu0 0.0
        %1516 = vmatpush.msra.mxu0 0.0
        %1517 = vmatpush.msra.mxu0 0.0
        %1518 = vmatpush.msra.mxu0 0.0
        %1519 = vmatpush.msra.mxu0 0.0
        %1520 = vmatpush.msra.mxu0 0.0
        %1521 = vmatpush.msra.mxu0 %v1504
        %1522 = vmatmul.f32.gmra.mxu0 %v1408
        %v1523 = vpop.f32.mrf.mxu0
        %v1524 = vadd.f32 0.0, %v1523
        %1525 = vmatmul.f32.gmra.mxu0 %v1411
        %v1526 = vpop.f32.mrf.mxu0
        %v1527 = vadd.f32 0.0, %v1526
        %1528 = vmatmul.f32.gmra.mxu0 %v1414
        %v1529 = vpop.f32.mrf.mxu0
        %v1530 = vadd.f32 0.0, %v1529
        %1531 = vmatmul.f32.gmra.mxu0 %v1417
        %v1532 = vpop.f32.mrf.mxu0
        %v1533 = vadd.f32 0.0, %v1532
        %1534 = vmatmul.f32.gmra.mxu0 %v1420
        %v1535 = vpop.f32.mrf.mxu0
        %v1536 = vadd.f32 0.0, %v1535
        %1537 = vmatmul.f32.gmra.mxu0 %v1423
        %v1538 = vpop.f32.mrf.mxu0
        %v1539 = vadd.f32 0.0, %v1538
        %1540 = vmatmul.f32.gmra.mxu0 %v1426
        %v1541 = vpop.f32.mrf.mxu0
        %v1542 = vadd.f32 0.0, %v1541
        %1543 = vmatmul.f32.gmra.mxu0 %v1429
        %v1544 = vpop.f32.mrf.mxu0
        %v1545 = vadd.f32 0.0, %v1544
        %1546 = vmatmul.f32.gmra.mxu0 %v1432
        %v1547 = vpop.f32.mrf.mxu0
        %v1548 = vadd.f32 0.0, %v1547
        %1549 = vmatmul.f32.gmra.mxu0 %v1435
        %v1550 = vpop.f32.mrf.mxu0
        %v1551 = vadd.f32 0.0, %v1550
        %1552 = vmatmul.f32.gmra.mxu0 %v1438
        %v1553 = vpop.f32.mrf.mxu0
        %v1554 = vadd.f32 0.0, %v1553
        %1555 = vmatmul.f32.gmra.mxu0 %v1441
        %v1556 = vpop.f32.mrf.mxu0
        %v1557 = vadd.f32 0.0, %v1556
        %1558 = vmatmul.f32.gmra.mxu0 %v1444
        %v1559 = vpop.f32.mrf.mxu0
        %v1560 = vadd.f32 0.0, %v1559
        %1561 = vmatmul.f32.gmra.mxu0 %v1447
        %v1562 = vpop.f32.mrf.mxu0
        %v1563 = vadd.f32 0.0, %v1562
        %1564 = vmatmul.f32.gmra.mxu0 %v1450
        %v1565 = vpop.f32.mrf.mxu0
        %v1566 = vadd.f32 0.0, %v1565
        %1567 = vmatmul.f32.gmra.mxu0 %v1453
        %v1568 = vpop.f32.mrf.mxu0
        %v1569 = vadd.f32 0.0, %v1568
        %1570 = vmatmul.f32.gmra.mxu0 %v1456
        %v1571 = vpop.f32.mrf.mxu0
        %v1572 = vadd.f32 0.0, %v1571
        %1573 = vmatmul.f32.gmra.mxu0 %v1459
        %v1574 = vpop.f32.mrf.mxu0
        %v1575 = vadd.f32 0.0, %v1574
        %1576 = vmatmul.f32.gmra.mxu0 %v1462
        %v1577 = vpop.f32.mrf.mxu0
        %v1578 = vadd.f32 0.0, %v1577
        %1579 = vmatmul.f32.gmra.mxu0 %v1465
        %v1580 = vpop.f32.mrf.mxu0
        %v1581 = vadd.f32 0.0, %v1580
        %1582 = vmatmul.f32.gmra.mxu0 %v1468
        %v1583 = vpop.f32.mrf.mxu0
        %v1584 = vadd.f32 0.0, %v1583
        %1585 = vmatmul.f32.gmra.mxu0 %v1471
        %v1586 = vpop.f32.mrf.mxu0
        %v1587 = vadd.f32 0.0, %v1586
        %1588 = vmatmul.f32.gmra.mxu0 %v1474
        %v1589 = vpop.f32.mrf.mxu0
        %v1590 = vadd.f32 0.0, %v1589
        %1591 = vmatmul.f32.gmra.mxu0 %v1477
        %v1592 = vpop.f32.mrf.mxu0
        %v1593 = vadd.f32 0.0, %v1592
        %1594 = vmatmul.f32.gmra.mxu0 %v1480
        %v1595 = vpop.f32.mrf.mxu0
        %v1596 = vadd.f32 0.0, %v1595
        %1597 = vmatmul.f32.gmra.mxu0 %v1483
        %v1598 = vpop.f32.mrf.mxu0
        %v1599 = vadd.f32 0.0, %v1598
        %1600 = vmatmul.f32.gmra.mxu0 %v1486
        %v1601 = vpop.f32.mrf.mxu0
        %v1602 = vadd.f32 0.0, %v1601
        %1603 = vmatmul.f32.gmra.mxu0 %v1489
        %v1604 = vpop.f32.mrf.mxu0
        %v1605 = vadd.f32 0.0, %v1604
        %1606 = vmatmul.f32.gmra.mxu0 %v1492
        %v1607 = vpop.f32.mrf.mxu0
        %v1608 = vadd.f32 0.0, %v1607
        %1609 = vmatmul.f32.gmra.mxu0 %v1495
        %v1610 = vpop.f32.mrf.mxu0
        %v1611 = vadd.f32 0.0, %v1610
        %1612 = vmatmul.f32.gmra.mxu0 %v1498
        %v1613 = vpop.f32.mrf.mxu0
        %v1614 = vadd.f32 0.0, %v1613
        %1615 = vmatmul.f32.gmra.mxu0 %v1501
        %v1616 = vpop.f32.mrf.mxu0
        %v1617 = vadd.f32 0.0, %v1616
        %1618 = vdwg.mxu0
        %v1619 = vadd.f32 %v1341, %v1524
        %v1620 = vadd.f32 %v1342, %v1527
        %v1621 = vadd.f32 %v1343, %v1530
        %v1622 = vadd.f32 %v1344, %v1533
        %v1623 = vadd.f32 %v1345, %v1536
        %v1624 = vadd.f32 %v1346, %v1539
        %v1625 = vadd.f32 %v1347, %v1542
        %v1626 = vadd.f32 %v1348, %v1545
        %v1627 = vadd.f32 %v1349, %v1548
        %v1628 = vadd.f32 %v1350, %v1551
        %v1629 = vadd.f32 %v1351, %v1554
        %v1630 = vadd.f32 %v1352, %v1557
        %v1631 = vadd.f32 %v1353, %v1560
        %v1632 = vadd.f32 %v1354, %v1563
        %v1633 = vadd.f32 %v1355, %v1566
        %v1634 = vadd.f32 %v1356, %v1569
        %v1635 = vadd.f32 %v1357, %v1572
        %v1636 = vadd.f32 %v1358, %v1575
        %v1637 = vadd.f32 %v1359, %v1578
        %v1638 = vadd.f32 %v1360, %v1581
        %v1639 = vadd.f32 %v1361, %v1584
        %v1640 = vadd.f32 %v1362, %v1587
        %v1641 = vadd.f32 %v1363, %v1590
        %v1642 = vadd.f32 %v1364, %v1593
        %v1643 = vadd.f32 %v1365, %v1596
        %v1644 = vadd.f32 %v1366, %v1599
        %v1645 = vadd.f32 %v1367, %v1602
        %v1646 = vadd.f32 %v1368, %v1605
        %v1647 = vadd.f32 %v1369, %v1608
        %v1648 = vadd.f32 %v1370, %v1611
        %v1649 = vadd.f32 %v1371, %v1614
        %v1650 = vadd.f32 %v1372, %v1617
        %v1651 = vld [vmem:[%s292 + $0x2] sm:$0xff]
        %v1652 = vld [vmem:[%s292 + $0xa] sm:$0xff]
        %v1653 = vld [vmem:[%s292 + $0x1a] sm:$0xff]
        %v1654 = vld [vmem:[%s292 + $0x22] sm:$0xff]
        %v1655 = vld [vmem:[%s292 + $0x32] sm:$0xff]
        %v1656 = vld [vmem:[%s292 + $0x3a] sm:$0xff]
        %v1657 = vld [vmem:[%s292 + $0x4a] sm:$0xff]
        %v1658 = vld [vmem:[%s292 + $0x52] sm:$0xff]
        %v1659 = vld [vmem:[%s292 + $0x62] sm:$0xff]
        %v1660 = vld [vmem:[%s292 + $0x6a] sm:$0xff]
        %v1661 = vld [vmem:[%s292 + $0x7a] sm:$0xff]
        %v1662 = vld [vmem:[%s292 + $0x82] sm:$0xff]
        %v1663 = vld [vmem:[%s292 + $0x92] sm:$0xff]
        %v1664 = vld [vmem:[%s292 + $0x9a] sm:$0xff]
        %v1665 = vld [vmem:[%s292 + $0xaa] sm:$0xff]
        %v1666 = vld [vmem:[%s292 + $0xb2] sm:$0xff]
        %v1667 = vld [vmem:[%s292 + $0xc2] sm:$0xff]
        %v1668 = vld [vmem:[%s292 + $0xca] sm:$0xff]
        %v1669 = vld [vmem:[%s292 + $0xda] sm:$0xff]
        %v1670 = vld [vmem:[%s292 + $0xe2] sm:$0xff]
        %v1671 = vld [vmem:[%s292 + $0xf2] sm:$0xff]
        %v1672 = vld [vmem:[%s292 + $0xfa] sm:$0xff]
        %v1673 = vld [vmem:[%s292 + $0x10a] sm:$0xff]
        %v1674 = vld [vmem:[%s292 + $0x112] sm:$0xff]
        %v1675 = vld [vmem:[%s292 + $0x122] sm:$0xff]
        %v1676 = vld [vmem:[%s292 + $0x12a] sm:$0xff]
        %v1677 = vld [vmem:[%s292 + $0x13a] sm:$0xff]
        %v1678 = vld [vmem:[%s292 + $0x142] sm:$0xff]
        %v1679 = vld [vmem:[%s292 + $0x152] sm:$0xff]
        %v1680 = vld [vmem:[%s292 + $0x15a] sm:$0xff]
        %v1681 = vld [vmem:[%s292 + $0x16a] sm:$0xff]
        %v1682 = vld [vmem:[%s292 + $0x172] sm:$0xff]
        %s1683 = scalar_lea.vmem %s210, 20
        %v1684 = vld [vmem:[%s1683] sm:$0xf]
        %v1686 = vsel %vm246, %v1651, 0
        %v1689 = vsel %vm246, %v1652, 0
        %v1692 = vsel %vm246, %v1653, 0
        %v1695 = vsel %vm246, %v1654, 0
        %v1698 = vsel %vm246, %v1655, 0
        %v1701 = vsel %vm246, %v1656, 0
        %v1704 = vsel %vm246, %v1657, 0
        %v1707 = vsel %vm246, %v1658, 0
        %v1710 = vsel %vm246, %v1659, 0
        %v1713 = vsel %vm246, %v1660, 0
        %v1716 = vsel %vm246, %v1661, 0
        %v1719 = vsel %vm246, %v1662, 0
        %v1722 = vsel %vm246, %v1663, 0
        %v1725 = vsel %vm246, %v1664, 0
        %v1728 = vsel %vm246, %v1665, 0
        %v1731 = vsel %vm246, %v1666, 0
        %v1734 = vsel %vm246, %v1667, 0
        %v1737 = vsel %vm246, %v1668, 0
        %v1740 = vsel %vm246, %v1669, 0
        %v1743 = vsel %vm246, %v1670, 0
        %v1746 = vsel %vm246, %v1671, 0
        %v1749 = vsel %vm246, %v1672, 0
        %v1752 = vsel %vm246, %v1673, 0
        %v1755 = vsel %vm246, %v1674, 0
        %v1758 = vsel %vm246, %v1675, 0
        %v1761 = vsel %vm246, %v1676, 0
        %v1764 = vsel %vm246, %v1677, 0
        %v1767 = vsel %vm246, %v1678, 0
        %v1770 = vsel %vm246, %v1679, 0
        %v1773 = vsel %vm246, %v1680, 0
        %v1776 = vsel %vm246, %v1681, 0
        %v1779 = vsel %vm246, %v1682, 0
        %v1782 = vsel %vm488, %v1684, 0
        %1784 = vmatpush.msra.mxu0 0.0
        %1785 = vmatpush.msra.mxu0 0.0
        %1786 = vmatpush.msra.mxu0 0.0
        %1787 = vmatpush.msra.mxu0 0.0
        %1788 = vmatpush.msra.mxu0 0.0
        %1789 = vmatpush.msra.mxu0 0.0
        %1790 = vmatpush.msra.mxu0 0.0
        %1791 = vmatpush.msra.mxu0 0.0
        %1792 = vmatpush.msra.mxu0 0.0
        %1793 = vmatpush.msra.mxu0 0.0
        %1794 = vmatpush.msra.mxu0 0.0
        %1795 = vmatpush.msra.mxu0 0.0
        %1796 = vmatpush.msra.mxu0 0.0
        %1797 = vmatpush.msra.mxu0 0.0
        %1798 = vmatpush.msra.mxu0 0.0
        %1799 = vmatpush.msra.mxu0 %v1782
        %1800 = vmatmul.f32.gmra.mxu0 %v1686
        %v1801 = vpop.f32.mrf.mxu0
        %v1802 = vadd.f32 0.0, %v1801
        %1803 = vmatmul.f32.gmra.mxu0 %v1689
        %v1804 = vpop.f32.mrf.mxu0
        %v1805 = vadd.f32 0.0, %v1804
        %1806 = vmatmul.f32.gmra.mxu0 %v1692
        %v1807 = vpop.f32.mrf.mxu0
        %v1808 = vadd.f32 0.0, %v1807
        %1809 = vmatmul.f32.gmra.mxu0 %v1695
        %v1810 = vpop.f32.mrf.mxu0
        %v1811 = vadd.f32 0.0, %v1810
        %1812 = vmatmul.f32.gmra.mxu0 %v1698
        %v1813 = vpop.f32.mrf.mxu0
        %v1814 = vadd.f32 0.0, %v1813
        %1815 = vmatmul.f32.gmra.mxu0 %v1701
        %v1816 = vpop.f32.mrf.mxu0
        %v1817 = vadd.f32 0.0, %v1816
        %1818 = vmatmul.f32.gmra.mxu0 %v1704
        %v1819 = vpop.f32.mrf.mxu0
        %v1820 = vadd.f32 0.0, %v1819
        %1821 = vmatmul.f32.gmra.mxu0 %v1707
        %v1822 = vpop.f32.mrf.mxu0
        %v1823 = vadd.f32 0.0, %v1822
        %1824 = vmatmul.f32.gmra.mxu0 %v1710
        %v1825 = vpop.f32.mrf.mxu0
        %v1826 = vadd.f32 0.0, %v1825
        %1827 = vmatmul.f32.gmra.mxu0 %v1713
        %v1828 = vpop.f32.mrf.mxu0
        %v1829 = vadd.f32 0.0, %v1828
        %1830 = vmatmul.f32.gmra.mxu0 %v1716
        %v1831 = vpop.f32.mrf.mxu0
        %v1832 = vadd.f32 0.0, %v1831
        %1833 = vmatmul.f32.gmra.mxu0 %v1719
        %v1834 = vpop.f32.mrf.mxu0
        %v1835 = vadd.f32 0.0, %v1834
        %1836 = vmatmul.f32.gmra.mxu0 %v1722
        %v1837 = vpop.f32.mrf.mxu0
        %v1838 = vadd.f32 0.0, %v1837
        %1839 = vmatmul.f32.gmra.mxu0 %v1725
        %v1840 = vpop.f32.mrf.mxu0
        %v1841 = vadd.f32 0.0, %v1840
        %1842 = vmatmul.f32.gmra.mxu0 %v1728
        %v1843 = vpop.f32.mrf.mxu0
        %v1844 = vadd.f32 0.0, %v1843
        %1845 = vmatmul.f32.gmra.mxu0 %v1731
        %v1846 = vpop.f32.mrf.mxu0
        %v1847 = vadd.f32 0.0, %v1846
        %1848 = vmatmul.f32.gmra.mxu0 %v1734
        %v1849 = vpop.f32.mrf.mxu0
        %v1850 = vadd.f32 0.0, %v1849
        %1851 = vmatmul.f32.gmra.mxu0 %v1737
        %v1852 = vpop.f32.mrf.mxu0
        %v1853 = vadd.f32 0.0, %v1852
        %1854 = vmatmul.f32.gmra.mxu0 %v1740
        %v1855 = vpop.f32.mrf.mxu0
        %v1856 = vadd.f32 0.0, %v1855
        %1857 = vmatmul.f32.gmra.mxu0 %v1743
        %v1858 = vpop.f32.mrf.mxu0
        %v1859 = vadd.f32 0.0, %v1858
        %1860 = vmatmul.f32.gmra.mxu0 %v1746
        %v1861 = vpop.f32.mrf.mxu0
        %v1862 = vadd.f32 0.0, %v1861
        %1863 = vmatmul.f32.gmra.mxu0 %v1749
        %v1864 = vpop.f32.mrf.mxu0
        %v1865 = vadd.f32 0.0, %v1864
        %1866 = vmatmul.f32.gmra.mxu0 %v1752
        %v1867 = vpop.f32.mrf.mxu0
        %v1868 = vadd.f32 0.0, %v1867
        %1869 = vmatmul.f32.gmra.mxu0 %v1755
        %v1870 = vpop.f32.mrf.mxu0
        %v1871 = vadd.f32 0.0, %v1870
        %1872 = vmatmul.f32.gmra.mxu0 %v1758
        %v1873 = vpop.f32.mrf.mxu0
        %v1874 = vadd.f32 0.0, %v1873
        %1875 = vmatmul.f32.gmra.mxu0 %v1761
        %v1876 = vpop.f32.mrf.mxu0
        %v1877 = vadd.f32 0.0, %v1876
        %1878 = vmatmul.f32.gmra.mxu0 %v1764
        %v1879 = vpop.f32.mrf.mxu0
        %v1880 = vadd.f32 0.0, %v1879
        %1881 = vmatmul.f32.gmra.mxu0 %v1767
        %v1882 = vpop.f32.mrf.mxu0
        %v1883 = vadd.f32 0.0, %v1882
        %1884 = vmatmul.f32.gmra.mxu0 %v1770
        %v1885 = vpop.f32.mrf.mxu0
        %v1886 = vadd.f32 0.0, %v1885
        %1887 = vmatmul.f32.gmra.mxu0 %v1773
        %v1888 = vpop.f32.mrf.mxu0
        %v1889 = vadd.f32 0.0, %v1888
        %1890 = vmatmul.f32.gmra.mxu0 %v1776
        %v1891 = vpop.f32.mrf.mxu0
        %v1892 = vadd.f32 0.0, %v1891
        %1893 = vmatmul.f32.gmra.mxu0 %v1779
        %v1894 = vpop.f32.mrf.mxu0
        %v1895 = vadd.f32 0.0, %v1894
        %1896 = vdwg.mxu0
        %v1897 = vadd.f32 %v1619, %v1802
        %v1898 = vadd.f32 %v1620, %v1805
        %v1899 = vadd.f32 %v1621, %v1808
        %v1900 = vadd.f32 %v1622, %v1811
        %v1901 = vadd.f32 %v1623, %v1814
        %v1902 = vadd.f32 %v1624, %v1817
        %v1903 = vadd.f32 %v1625, %v1820
        %v1904 = vadd.f32 %v1626, %v1823
        %v1905 = vadd.f32 %v1627, %v1826
        %v1906 = vadd.f32 %v1628, %v1829
        %v1907 = vadd.f32 %v1629, %v1832
        %v1908 = vadd.f32 %v1630, %v1835
        %v1909 = vadd.f32 %v1631, %v1838
        %v1910 = vadd.f32 %v1632, %v1841
        %v1911 = vadd.f32 %v1633, %v1844
        %v1912 = vadd.f32 %v1634, %v1847
        %v1913 = vadd.f32 %v1635, %v1850
        %v1914 = vadd.f32 %v1636, %v1853
        %v1915 = vadd.f32 %v1637, %v1856
        %v1916 = vadd.f32 %v1638, %v1859
        %v1917 = vadd.f32 %v1639, %v1862
        %v1918 = vadd.f32 %v1640, %v1865
        %v1919 = vadd.f32 %v1641, %v1868
        %v1920 = vadd.f32 %v1642, %v1871
        %v1921 = vadd.f32 %v1643, %v1874
        %v1922 = vadd.f32 %v1644, %v1877
        %v1923 = vadd.f32 %v1645, %v1880
        %v1924 = vadd.f32 %v1646, %v1883
        %v1925 = vadd.f32 %v1647, %v1886
        %v1926 = vadd.f32 %v1648, %v1889
        %v1927 = vadd.f32 %v1649, %v1892
        %v1928 = vadd.f32 %v1650, %v1895
        %s1929 = scalar_lea.vmem [#allocation2], 48
        %v1930 = vld [vmem:[%s1929] sm:$0xff]
        %v1931 = vld [vmem:[%s1929 + $0x8] sm:$0xff]
        %v1932 = vld [vmem:[%s1929 + $0x18] sm:$0xff]
        %v1933 = vld [vmem:[%s1929 + $0x20] sm:$0xff]
        %v1934 = vld [vmem:[%s1929 + $0x30] sm:$0xff]
        %v1935 = vld [vmem:[%s1929 + $0x38] sm:$0xff]
        %v1936 = vld [vmem:[%s1929 + $0x48] sm:$0xff]
        %v1937 = vld [vmem:[%s1929 + $0x50] sm:$0xff]
        %v1938 = vld [vmem:[%s1929 + $0x60] sm:$0xff]
        %v1939 = vld [vmem:[%s1929 + $0x68] sm:$0xff]
        %v1940 = vld [vmem:[%s1929 + $0x78] sm:$0xff]
        %v1941 = vld [vmem:[%s1929 + $0x80] sm:$0xff]
        %v1942 = vld [vmem:[%s1929 + $0x90] sm:$0xff]
        %v1943 = vld [vmem:[%s1929 + $0x98] sm:$0xff]
        %v1944 = vld [vmem:[%s1929 + $0xa8] sm:$0xff]
        %v1945 = vld [vmem:[%s1929 + $0xb0] sm:$0xff]
        %v1946 = vld [vmem:[%s1929 + $0xc0] sm:$0xff]
        %v1947 = vld [vmem:[%s1929 + $0xc8] sm:$0xff]
        %v1948 = vld [vmem:[%s1929 + $0xd8] sm:$0xff]
        %v1949 = vld [vmem:[%s1929 + $0xe0] sm:$0xff]
        %v1950 = vld [vmem:[%s1929 + $0xf0] sm:$0xff]
        %v1951 = vld [vmem:[%s1929 + $0xf8] sm:$0xff]
        %v1952 = vld [vmem:[%s1929 + $0x108] sm:$0xff]
        %v1953 = vld [vmem:[%s1929 + $0x110] sm:$0xff]
        %v1954 = vld [vmem:[%s1929 + $0x120] sm:$0xff]
        %v1955 = vld [vmem:[%s1929 + $0x128] sm:$0xff]
        %v1956 = vld [vmem:[%s1929 + $0x138] sm:$0xff]
        %v1957 = vld [vmem:[%s1929 + $0x140] sm:$0xff]
        %v1958 = vld [vmem:[%s1929 + $0x150] sm:$0xff]
        %v1959 = vld [vmem:[%s1929 + $0x158] sm:$0xff]
        %v1960 = vld [vmem:[%s1929 + $0x168] sm:$0xff]
        %v1961 = vld [vmem:[%s1929 + $0x170] sm:$0xff]
        %s1962 = scalar_lea.vmem %s210, 24
        %v1963 = vld [vmem:[%s1962] sm:$0xf]
        %v1965 = vsel %vm246, %v1930, 0
        %v1968 = vsel %vm246, %v1931, 0
        %v1971 = vsel %vm246, %v1932, 0
        %v1974 = vsel %vm246, %v1933, 0
        %v1977 = vsel %vm246, %v1934, 0
        %v1980 = vsel %vm246, %v1935, 0
        %v1983 = vsel %vm246, %v1936, 0
        %v1986 = vsel %vm246, %v1937, 0
        %v1989 = vsel %vm246, %v1938, 0
        %v1992 = vsel %vm246, %v1939, 0
        %v1995 = vsel %vm246, %v1940, 0
        %v1998 = vsel %vm246, %v1941, 0
        %v2001 = vsel %vm246, %v1942, 0
        %v2004 = vsel %vm246, %v1943, 0
        %v2007 = vsel %vm246, %v1944, 0
        %v2010 = vsel %vm246, %v1945, 0
        %v2013 = vsel %vm246, %v1946, 0
        %v2016 = vsel %vm246, %v1947, 0
        %v2019 = vsel %vm246, %v1948, 0
        %v2022 = vsel %vm246, %v1949, 0
        %v2025 = vsel %vm246, %v1950, 0
        %v2028 = vsel %vm246, %v1951, 0
        %v2031 = vsel %vm246, %v1952, 0
        %v2034 = vsel %vm246, %v1953, 0
        %v2037 = vsel %vm246, %v1954, 0
        %v2040 = vsel %vm246, %v1955, 0
        %v2043 = vsel %vm246, %v1956, 0
        %v2046 = vsel %vm246, %v1957, 0
        %v2049 = vsel %vm246, %v1958, 0
        %v2052 = vsel %vm246, %v1959, 0
        %v2055 = vsel %vm246, %v1960, 0
        %v2058 = vsel %vm246, %v1961, 0
        %v2061 = vsel %vm488, %v1963, 0
        %2063 = vmatpush.msra.mxu0 0.0
        %2064 = vmatpush.msra.mxu0 0.0
        %2065 = vmatpush.msra.mxu0 0.0
        %2066 = vmatpush.msra.mxu0 0.0
        %2067 = vmatpush.msra.mxu0 0.0
        %2068 = vmatpush.msra.mxu0 0.0
        %2069 = vmatpush.msra.mxu0 0.0
        %2070 = vmatpush.msra.mxu0 0.0
        %2071 = vmatpush.msra.mxu0 0.0
        %2072 = vmatpush.msra.mxu0 0.0
        %2073 = vmatpush.msra.mxu0 0.0
        %2074 = vmatpush.msra.mxu0 0.0
        %2075 = vmatpush.msra.mxu0 0.0
        %2076 = vmatpush.msra.mxu0 0.0
        %2077 = vmatpush.msra.mxu0 0.0
        %2078 = vmatpush.msra.mxu0 %v2061
        %2079 = vmatmul.f32.gmra.mxu0 %v1965
        %v2080 = vpop.f32.mrf.mxu0
        %v2081 = vadd.f32 0.0, %v2080
        %2082 = vmatmul.f32.gmra.mxu0 %v1968
        %v2083 = vpop.f32.mrf.mxu0
        %v2084 = vadd.f32 0.0, %v2083
        %2085 = vmatmul.f32.gmra.mxu0 %v1971
        %v2086 = vpop.f32.mrf.mxu0
        %v2087 = vadd.f32 0.0, %v2086
        %2088 = vmatmul.f32.gmra.mxu0 %v1974
        %v2089 = vpop.f32.mrf.mxu0
        %v2090 = vadd.f32 0.0, %v2089
        %2091 = vmatmul.f32.gmra.mxu0 %v1977
        %v2092 = vpop.f32.mrf.mxu0
        %v2093 = vadd.f32 0.0, %v2092
        %2094 = vmatmul.f32.gmra.mxu0 %v1980
        %v2095 = vpop.f32.mrf.mxu0
        %v2096 = vadd.f32 0.0, %v2095
        %2097 = vmatmul.f32.gmra.mxu0 %v1983
        %v2098 = vpop.f32.mrf.mxu0
        %v2099 = vadd.f32 0.0, %v2098
        %2100 = vmatmul.f32.gmra.mxu0 %v1986
        %v2101 = vpop.f32.mrf.mxu0
        %v2102 = vadd.f32 0.0, %v2101
        %2103 = vmatmul.f32.gmra.mxu0 %v1989
        %v2104 = vpop.f32.mrf.mxu0
        %v2105 = vadd.f32 0.0, %v2104
        %2106 = vmatmul.f32.gmra.mxu0 %v1992
        %v2107 = vpop.f32.mrf.mxu0
        %v2108 = vadd.f32 0.0, %v2107
        %2109 = vmatmul.f32.gmra.mxu0 %v1995
        %v2110 = vpop.f32.mrf.mxu0
        %v2111 = vadd.f32 0.0, %v2110
        %2112 = vmatmul.f32.gmra.mxu0 %v1998
        %v2113 = vpop.f32.mrf.mxu0
        %v2114 = vadd.f32 0.0, %v2113
        %2115 = vmatmul.f32.gmra.mxu0 %v2001
        %v2116 = vpop.f32.mrf.mxu0
        %v2117 = vadd.f32 0.0, %v2116
        %2118 = vmatmul.f32.gmra.mxu0 %v2004
        %v2119 = vpop.f32.mrf.mxu0
        %v2120 = vadd.f32 0.0, %v2119
        %2121 = vmatmul.f32.gmra.mxu0 %v2007
        %v2122 = vpop.f32.mrf.mxu0
        %v2123 = vadd.f32 0.0, %v2122
        %2124 = vmatmul.f32.gmra.mxu0 %v2010
        %v2125 = vpop.f32.mrf.mxu0
        %v2126 = vadd.f32 0.0, %v2125
        %2127 = vmatmul.f32.gmra.mxu0 %v2013
        %v2128 = vpop.f32.mrf.mxu0
        %v2129 = vadd.f32 0.0, %v2128
        %2130 = vmatmul.f32.gmra.mxu0 %v2016
        %v2131 = vpop.f32.mrf.mxu0
        %v2132 = vadd.f32 0.0, %v2131
        %2133 = vmatmul.f32.gmra.mxu0 %v2019
        %v2134 = vpop.f32.mrf.mxu0
        %v2135 = vadd.f32 0.0, %v2134
        %2136 = vmatmul.f32.gmra.mxu0 %v2022
        %v2137 = vpop.f32.mrf.mxu0
        %v2138 = vadd.f32 0.0, %v2137
        %2139 = vmatmul.f32.gmra.mxu0 %v2025
        %v2140 = vpop.f32.mrf.mxu0
        %v2141 = vadd.f32 0.0, %v2140
        %2142 = vmatmul.f32.gmra.mxu0 %v2028
        %v2143 = vpop.f32.mrf.mxu0
        %v2144 = vadd.f32 0.0, %v2143
        %2145 = vmatmul.f32.gmra.mxu0 %v2031
        %v2146 = vpop.f32.mrf.mxu0
        %v2147 = vadd.f32 0.0, %v2146
        %2148 = vmatmul.f32.gmra.mxu0 %v2034
        %v2149 = vpop.f32.mrf.mxu0
        %v2150 = vadd.f32 0.0, %v2149
        %2151 = vmatmul.f32.gmra.mxu0 %v2037
        %v2152 = vpop.f32.mrf.mxu0
        %v2153 = vadd.f32 0.0, %v2152
        %2154 = vmatmul.f32.gmra.mxu0 %v2040
        %v2155 = vpop.f32.mrf.mxu0
        %v2156 = vadd.f32 0.0, %v2155
        %2157 = vmatmul.f32.gmra.mxu0 %v2043
        %v2158 = vpop.f32.mrf.mxu0
        %v2159 = vadd.f32 0.0, %v2158
        %2160 = vmatmul.f32.gmra.mxu0 %v2046
        %v2161 = vpop.f32.mrf.mxu0
        %v2162 = vadd.f32 0.0, %v2161
        %2163 = vmatmul.f32.gmra.mxu0 %v2049
        %v2164 = vpop.f32.mrf.mxu0
        %v2165 = vadd.f32 0.0, %v2164
        %2166 = vmatmul.f32.gmra.mxu0 %v2052
        %v2167 = vpop.f32.mrf.mxu0
        %v2168 = vadd.f32 0.0, %v2167
        %2169 = vmatmul.f32.gmra.mxu0 %v2055
        %v2170 = vpop.f32.mrf.mxu0
        %v2171 = vadd.f32 0.0, %v2170
        %2172 = vmatmul.f32.gmra.mxu0 %v2058
        %v2173 = vpop.f32.mrf.mxu0
        %v2174 = vadd.f32 0.0, %v2173
        %2175 = vdwg.mxu0
        %v2176 = vadd.f32 %v1897, %v2081
        %v2177 = vadd.f32 %v1898, %v2084
        %v2178 = vadd.f32 %v1899, %v2087
        %v2179 = vadd.f32 %v1900, %v2090
        %v2180 = vadd.f32 %v1901, %v2093
        %v2181 = vadd.f32 %v1902, %v2096
        %v2182 = vadd.f32 %v1903, %v2099
        %v2183 = vadd.f32 %v1904, %v2102
        %v2184 = vadd.f32 %v1905, %v2105
        %v2185 = vadd.f32 %v1906, %v2108
        %v2186 = vadd.f32 %v1907, %v2111
        %v2187 = vadd.f32 %v1908, %v2114
        %v2188 = vadd.f32 %v1909, %v2117
        %v2189 = vadd.f32 %v1910, %v2120
        %v2190 = vadd.f32 %v1911, %v2123
        %v2191 = vadd.f32 %v1912, %v2126
        %v2192 = vadd.f32 %v1913, %v2129
        %v2193 = vadd.f32 %v1914, %v2132
        %v2194 = vadd.f32 %v1915, %v2135
        %v2195 = vadd.f32 %v1916, %v2138
        %v2196 = vadd.f32 %v1917, %v2141
        %v2197 = vadd.f32 %v1918, %v2144
        %v2198 = vadd.f32 %v1919, %v2147
        %v2199 = vadd.f32 %v1920, %v2150
        %v2200 = vadd.f32 %v1921, %v2153
        %v2201 = vadd.f32 %v1922, %v2156
        %v2202 = vadd.f32 %v1923, %v2159
        %v2203 = vadd.f32 %v1924, %v2162
        %v2204 = vadd.f32 %v1925, %v2165
        %v2205 = vadd.f32 %v1926, %v2168
        %v2206 = vadd.f32 %v1927, %v2171
        %v2207 = vadd.f32 %v1928, %v2174
        %v2208 = vld [vmem:[%s1929 + $0x1] sm:$0xff]
        %v2209 = vld [vmem:[%s1929 + $0x9] sm:$0xff]
        %v2210 = vld [vmem:[%s1929 + $0x19] sm:$0xff]
        %v2211 = vld [vmem:[%s1929 + $0x21] sm:$0xff]
        %v2212 = vld [vmem:[%s1929 + $0x31] sm:$0xff]
        %v2213 = vld [vmem:[%s1929 + $0x39] sm:$0xff]
        %v2214 = vld [vmem:[%s1929 + $0x49] sm:$0xff]
        %v2215 = vld [vmem:[%s1929 + $0x51] sm:$0xff]
        %v2216 = vld [vmem:[%s1929 + $0x61] sm:$0xff]
        %v2217 = vld [vmem:[%s1929 + $0x69] sm:$0xff]
        %v2218 = vld [vmem:[%s1929 + $0x79] sm:$0xff]
        %v2219 = vld [vmem:[%s1929 + $0x81] sm:$0xff]
        %v2220 = vld [vmem:[%s1929 + $0x91] sm:$0xff]
        %v2221 = vld [vmem:[%s1929 + $0x99] sm:$0xff]
        %v2222 = vld [vmem:[%s1929 + $0xa9] sm:$0xff]
        %v2223 = vld [vmem:[%s1929 + $0xb1] sm:$0xff]
        %v2224 = vld [vmem:[%s1929 + $0xc1] sm:$0xff]
        %v2225 = vld [vmem:[%s1929 + $0xc9] sm:$0xff]
        %v2226 = vld [vmem:[%s1929 + $0xd9] sm:$0xff]
        %v2227 = vld [vmem:[%s1929 + $0xe1] sm:$0xff]
        %v2228 = vld [vmem:[%s1929 + $0xf1] sm:$0xff]
        %v2229 = vld [vmem:[%s1929 + $0xf9] sm:$0xff]
        %v2230 = vld [vmem:[%s1929 + $0x109] sm:$0xff]
        %v2231 = vld [vmem:[%s1929 + $0x111] sm:$0xff]
        %v2232 = vld [vmem:[%s1929 + $0x121] sm:$0xff]
        %v2233 = vld [vmem:[%s1929 + $0x129] sm:$0xff]
        %v2234 = vld [vmem:[%s1929 + $0x139] sm:$0xff]
        %v2235 = vld [vmem:[%s1929 + $0x141] sm:$0xff]
        %v2236 = vld [vmem:[%s1929 + $0x151] sm:$0xff]
        %v2237 = vld [vmem:[%s1929 + $0x159] sm:$0xff]
        %v2238 = vld [vmem:[%s1929 + $0x169] sm:$0xff]
        %v2239 = vld [vmem:[%s1929 + $0x171] sm:$0xff]
        %s2240 = scalar_lea.vmem %s210, 28
        %v2241 = vld [vmem:[%s2240] sm:$0xf]
        %v2243 = vsel %vm246, %v2208, 0
        %v2246 = vsel %vm246, %v2209, 0
        %v2249 = vsel %vm246, %v2210, 0
        %v2252 = vsel %vm246, %v2211, 0
        %v2255 = vsel %vm246, %v2212, 0
        %v2258 = vsel %vm246, %v2213, 0
        %v2261 = vsel %vm246, %v2214, 0
        %v2264 = vsel %vm246, %v2215, 0
        %v2267 = vsel %vm246, %v2216, 0
        %v2270 = vsel %vm246, %v2217, 0
        %v2273 = vsel %vm246, %v2218, 0
        %v2276 = vsel %vm246, %v2219, 0
        %v2279 = vsel %vm246, %v2220, 0
        %v2282 = vsel %vm246, %v2221, 0
        %v2285 = vsel %vm246, %v2222, 0
        %v2288 = vsel %vm246, %v2223, 0
        %v2291 = vsel %vm246, %v2224, 0
        %v2294 = vsel %vm246, %v2225, 0
        %v2297 = vsel %vm246, %v2226, 0
        %v2300 = vsel %vm246, %v2227, 0
        %v2303 = vsel %vm246, %v2228, 0
        %v2306 = vsel %vm246, %v2229, 0
        %v2309 = vsel %vm246, %v2230, 0
        %v2312 = vsel %vm246, %v2231, 0
        %v2315 = vsel %vm246, %v2232, 0
        %v2318 = vsel %vm246, %v2233, 0
        %v2321 = vsel %vm246, %v2234, 0
        %v2324 = vsel %vm246, %v2235, 0
        %v2327 = vsel %vm246, %v2236, 0
        %v2330 = vsel %vm246, %v2237, 0
        %v2333 = vsel %vm246, %v2238, 0
        %v2336 = vsel %vm246, %v2239, 0
        %v2339 = vsel %vm488, %v2241, 0
        %2341 = vmatpush.msra.mxu0 0.0
        %2342 = vmatpush.msra.mxu0 0.0
        %2343 = vmatpush.msra.mxu0 0.0
        %2344 = vmatpush.msra.mxu0 0.0
        %2345 = vmatpush.msra.mxu0 0.0
        %2346 = vmatpush.msra.mxu0 0.0
        %2347 = vmatpush.msra.mxu0 0.0
        %2348 = vmatpush.msra.mxu0 0.0
        %2349 = vmatpush.msra.mxu0 0.0
        %2350 = vmatpush.msra.mxu0 0.0
        %2351 = vmatpush.msra.mxu0 0.0
        %2352 = vmatpush.msra.mxu0 0.0
        %2353 = vmatpush.msra.mxu0 0.0
        %2354 = vmatpush.msra.mxu0 0.0
        %2355 = vmatpush.msra.mxu0 0.0
        %2356 = vmatpush.msra.mxu0 %v2339
        %2357 = vmatmul.f32.gmra.mxu0 %v2243
        %v2358 = vpop.f32.mrf.mxu0
        %v2359 = vadd.f32 0.0, %v2358
        %2360 = vmatmul.f32.gmra.mxu0 %v2246
        %v2361 = vpop.f32.mrf.mxu0
        %v2362 = vadd.f32 0.0, %v2361
        %2363 = vmatmul.f32.gmra.mxu0 %v2249
        %v2364 = vpop.f32.mrf.mxu0
        %v2365 = vadd.f32 0.0, %v2364
        %2366 = vmatmul.f32.gmra.mxu0 %v2252
        %v2367 = vpop.f32.mrf.mxu0
        %v2368 = vadd.f32 0.0, %v2367
        %2369 = vmatmul.f32.gmra.mxu0 %v2255
        %v2370 = vpop.f32.mrf.mxu0
        %v2371 = vadd.f32 0.0, %v2370
        %2372 = vmatmul.f32.gmra.mxu0 %v2258
        %v2373 = vpop.f32.mrf.mxu0
        %v2374 = vadd.f32 0.0, %v2373
        %2375 = vmatmul.f32.gmra.mxu0 %v2261
        %v2376 = vpop.f32.mrf.mxu0
        %v2377 = vadd.f32 0.0, %v2376
        %2378 = vmatmul.f32.gmra.mxu0 %v2264
        %v2379 = vpop.f32.mrf.mxu0
        %v2380 = vadd.f32 0.0, %v2379
        %2381 = vmatmul.f32.gmra.mxu0 %v2267
        %v2382 = vpop.f32.mrf.mxu0
        %v2383 = vadd.f32 0.0, %v2382
        %2384 = vmatmul.f32.gmra.mxu0 %v2270
        %v2385 = vpop.f32.mrf.mxu0
        %v2386 = vadd.f32 0.0, %v2385
        %2387 = vmatmul.f32.gmra.mxu0 %v2273
        %v2388 = vpop.f32.mrf.mxu0
        %v2389 = vadd.f32 0.0, %v2388
        %2390 = vmatmul.f32.gmra.mxu0 %v2276
        %v2391 = vpop.f32.mrf.mxu0
        %v2392 = vadd.f32 0.0, %v2391
        %2393 = vmatmul.f32.gmra.mxu0 %v2279
        %v2394 = vpop.f32.mrf.mxu0
        %v2395 = vadd.f32 0.0, %v2394
        %2396 = vmatmul.f32.gmra.mxu0 %v2282
        %v2397 = vpop.f32.mrf.mxu0
        %v2398 = vadd.f32 0.0, %v2397
        %2399 = vmatmul.f32.gmra.mxu0 %v2285
        %v2400 = vpop.f32.mrf.mxu0
        %v2401 = vadd.f32 0.0, %v2400
        %2402 = vmatmul.f32.gmra.mxu0 %v2288
        %v2403 = vpop.f32.mrf.mxu0
        %v2404 = vadd.f32 0.0, %v2403
        %2405 = vmatmul.f32.gmra.mxu0 %v2291
        %v2406 = vpop.f32.mrf.mxu0
        %v2407 = vadd.f32 0.0, %v2406
        %2408 = vmatmul.f32.gmra.mxu0 %v2294
        %v2409 = vpop.f32.mrf.mxu0
        %v2410 = vadd.f32 0.0, %v2409
        %2411 = vmatmul.f32.gmra.mxu0 %v2297
        %v2412 = vpop.f32.mrf.mxu0
        %v2413 = vadd.f32 0.0, %v2412
        %2414 = vmatmul.f32.gmra.mxu0 %v2300
        %v2415 = vpop.f32.mrf.mxu0
        %v2416 = vadd.f32 0.0, %v2415
        %2417 = vmatmul.f32.gmra.mxu0 %v2303
        %v2418 = vpop.f32.mrf.mxu0
        %v2419 = vadd.f32 0.0, %v2418
        %2420 = vmatmul.f32.gmra.mxu0 %v2306
        %v2421 = vpop.f32.mrf.mxu0
        %v2422 = vadd.f32 0.0, %v2421
        %2423 = vmatmul.f32.gmra.mxu0 %v2309
        %v2424 = vpop.f32.mrf.mxu0
        %v2425 = vadd.f32 0.0, %v2424
        %2426 = vmatmul.f32.gmra.mxu0 %v2312
        %v2427 = vpop.f32.mrf.mxu0
        %v2428 = vadd.f32 0.0, %v2427
        %2429 = vmatmul.f32.gmra.mxu0 %v2315
        %v2430 = vpop.f32.mrf.mxu0
        %v2431 = vadd.f32 0.0, %v2430
        %2432 = vmatmul.f32.gmra.mxu0 %v2318
        %v2433 = vpop.f32.mrf.mxu0
        %v2434 = vadd.f32 0.0, %v2433
        %2435 = vmatmul.f32.gmra.mxu0 %v2321
        %v2436 = vpop.f32.mrf.mxu0
        %v2437 = vadd.f32 0.0, %v2436
        %2438 = vmatmul.f32.gmra.mxu0 %v2324
        %v2439 = vpop.f32.mrf.mxu0
        %v2440 = vadd.f32 0.0, %v2439
        %2441 = vmatmul.f32.gmra.mxu0 %v2327
        %v2442 = vpop.f32.mrf.mxu0
        %v2443 = vadd.f32 0.0, %v2442
        %2444 = vmatmul.f32.gmra.mxu0 %v2330
        %v2445 = vpop.f32.mrf.mxu0
        %v2446 = vadd.f32 0.0, %v2445
        %2447 = vmatmul.f32.gmra.mxu0 %v2333
        %v2448 = vpop.f32.mrf.mxu0
        %v2449 = vadd.f32 0.0, %v2448
        %2450 = vmatmul.f32.gmra.mxu0 %v2336
        %v2451 = vpop.f32.mrf.mxu0
        %v2452 = vadd.f32 0.0, %v2451
        %2453 = vdwg.mxu0
        %v2454 = vadd.f32 %v2176, %v2359
        %v2455 = vadd.f32 %v2177, %v2362
        %v2456 = vadd.f32 %v2178, %v2365
        %v2457 = vadd.f32 %v2179, %v2368
        %v2458 = vadd.f32 %v2180, %v2371
        %v2459 = vadd.f32 %v2181, %v2374
        %v2460 = vadd.f32 %v2182, %v2377
        %v2461 = vadd.f32 %v2183, %v2380
        %v2462 = vadd.f32 %v2184, %v2383
        %v2463 = vadd.f32 %v2185, %v2386
        %v2464 = vadd.f32 %v2186, %v2389
        %v2465 = vadd.f32 %v2187, %v2392
        %v2466 = vadd.f32 %v2188, %v2395
        %v2467 = vadd.f32 %v2189, %v2398
        %v2468 = vadd.f32 %v2190, %v2401
        %v2469 = vadd.f32 %v2191, %v2404
        %v2470 = vadd.f32 %v2192, %v2407
        %v2471 = vadd.f32 %v2193, %v2410
        %v2472 = vadd.f32 %v2194, %v2413
        %v2473 = vadd.f32 %v2195, %v2416
        %v2474 = vadd.f32 %v2196, %v2419
        %v2475 = vadd.f32 %v2197, %v2422
        %v2476 = vadd.f32 %v2198, %v2425
        %v2477 = vadd.f32 %v2199, %v2428
        %v2478 = vadd.f32 %v2200, %v2431
        %v2479 = vadd.f32 %v2201, %v2434
        %v2480 = vadd.f32 %v2202, %v2437
        %v2481 = vadd.f32 %v2203, %v2440
        %v2482 = vadd.f32 %v2204, %v2443
        %v2483 = vadd.f32 %v2205, %v2446
        %v2484 = vadd.f32 %v2206, %v2449
        %v2485 = vadd.f32 %v2207, %v2452
        %v2486 = vld [vmem:[%s1929 + $0x2] sm:$0xff]
        %v2487 = vld [vmem:[%s1929 + $0xa] sm:$0xff]
        %v2488 = vld [vmem:[%s1929 + $0x1a] sm:$0xff]
        %v2489 = vld [vmem:[%s1929 + $0x22] sm:$0xff]
        %v2490 = vld [vmem:[%s1929 + $0x32] sm:$0xff]
        %v2491 = vld [vmem:[%s1929 + $0x3a] sm:$0xff]
        %v2492 = vld [vmem:[%s1929 + $0x4a] sm:$0xff]
        %v2493 = vld [vmem:[%s1929 + $0x52] sm:$0xff]
        %v2494 = vld [vmem:[%s1929 + $0x62] sm:$0xff]
        %v2495 = vld [vmem:[%s1929 + $0x6a] sm:$0xff]
        %v2496 = vld [vmem:[%s1929 + $0x7a] sm:$0xff]
        %v2497 = vld [vmem:[%s1929 + $0x82] sm:$0xff]
        %v2498 = vld [vmem:[%s1929 + $0x92] sm:$0xff]
        %v2499 = vld [vmem:[%s1929 + $0x9a] sm:$0xff]
        %v2500 = vld [vmem:[%s1929 + $0xaa] sm:$0xff]
        %v2501 = vld [vmem:[%s1929 + $0xb2] sm:$0xff]
        %v2502 = vld [vmem:[%s1929 + $0xc2] sm:$0xff]
        %v2503 = vld [vmem:[%s1929 + $0xca] sm:$0xff]
        %v2504 = vld [vmem:[%s1929 + $0xda] sm:$0xff]
        %v2505 = vld [vmem:[%s1929 + $0xe2] sm:$0xff]
        %v2506 = vld [vmem:[%s1929 + $0xf2] sm:$0xff]
        %v2507 = vld [vmem:[%s1929 + $0xfa] sm:$0xff]
        %v2508 = vld [vmem:[%s1929 + $0x10a] sm:$0xff]
        %v2509 = vld [vmem:[%s1929 + $0x112] sm:$0xff]
        %v2510 = vld [vmem:[%s1929 + $0x122] sm:$0xff]
        %v2511 = vld [vmem:[%s1929 + $0x12a] sm:$0xff]
        %v2512 = vld [vmem:[%s1929 + $0x13a] sm:$0xff]
        %v2513 = vld [vmem:[%s1929 + $0x142] sm:$0xff]
        %v2514 = vld [vmem:[%s1929 + $0x152] sm:$0xff]
        %v2515 = vld [vmem:[%s1929 + $0x15a] sm:$0xff]
        %v2516 = vld [vmem:[%s1929 + $0x16a] sm:$0xff]
        %v2517 = vld [vmem:[%s1929 + $0x172] sm:$0xff]
        %s2518 = scalar_lea.vmem %s210, 32
        %v2519 = vld [vmem:[%s2518] sm:$0xf]
        %v2521 = vsel %vm246, %v2486, 0
        %v2524 = vsel %vm246, %v2487, 0
        %v2527 = vsel %vm246, %v2488, 0
        %v2530 = vsel %vm246, %v2489, 0
        %v2533 = vsel %vm246, %v2490, 0
        %v2536 = vsel %vm246, %v2491, 0
        %v2539 = vsel %vm246, %v2492, 0
        %v2542 = vsel %vm246, %v2493, 0
        %v2545 = vsel %vm246, %v2494, 0
        %v2548 = vsel %vm246, %v2495, 0
        %v2551 = vsel %vm246, %v2496, 0
        %v2554 = vsel %vm246, %v2497, 0
        %v2557 = vsel %vm246, %v2498, 0
        %v2560 = vsel %vm246, %v2499, 0
        %v2563 = vsel %vm246, %v2500, 0
        %v2566 = vsel %vm246, %v2501, 0
        %v2569 = vsel %vm246, %v2502, 0
        %v2572 = vsel %vm246, %v2503, 0
        %v2575 = vsel %vm246, %v2504, 0
        %v2578 = vsel %vm246, %v2505, 0
        %v2581 = vsel %vm246, %v2506, 0
        %v2584 = vsel %vm246, %v2507, 0
        %v2587 = vsel %vm246, %v2508, 0
        %v2590 = vsel %vm246, %v2509, 0
        %v2593 = vsel %vm246, %v2510, 0
        %v2596 = vsel %vm246, %v2511, 0
        %v2599 = vsel %vm246, %v2512, 0
        %v2602 = vsel %vm246, %v2513, 0
        %v2605 = vsel %vm246, %v2514, 0
        %v2608 = vsel %vm246, %v2515, 0
        %v2611 = vsel %vm246, %v2516, 0
        %v2614 = vsel %vm246, %v2517, 0
        %v2617 = vsel %vm488, %v2519, 0
        %2619 = vmatpush.msra.mxu0 0.0
        %2620 = vmatpush.msra.mxu0 0.0
        %2621 = vmatpush.msra.mxu0 0.0
        %2622 = vmatpush.msra.mxu0 0.0
        %2623 = vmatpush.msra.mxu0 0.0
        %2624 = vmatpush.msra.mxu0 0.0
        %2625 = vmatpush.msra.mxu0 0.0
        %2626 = vmatpush.msra.mxu0 0.0
        %2627 = vmatpush.msra.mxu0 0.0
        %2628 = vmatpush.msra.mxu0 0.0
        %2629 = vmatpush.msra.mxu0 0.0
        %2630 = vmatpush.msra.mxu0 0.0
        %2631 = vmatpush.msra.mxu0 0.0
        %2632 = vmatpush.msra.mxu0 0.0
        %2633 = vmatpush.msra.mxu0 0.0
        %2634 = vmatpush.msra.mxu0 %v2617
        %2635 = vmatmul.f32.gmra.mxu0 %v2521
        %v2636 = vpop.f32.mrf.mxu0
        %v2637 = vadd.f32 0.0, %v2636
        %2638 = vmatmul.f32.gmra.mxu0 %v2524
        %v2639 = vpop.f32.mrf.mxu0
        %v2640 = vadd.f32 0.0, %v2639
        %2641 = vmatmul.f32.gmra.mxu0 %v2527
        %v2642 = vpop.f32.mrf.mxu0
        %v2643 = vadd.f32 0.0, %v2642
        %2644 = vmatmul.f32.gmra.mxu0 %v2530
        %v2645 = vpop.f32.mrf.mxu0
        %v2646 = vadd.f32 0.0, %v2645
        %2647 = vmatmul.f32.gmra.mxu0 %v2533
        %v2648 = vpop.f32.mrf.mxu0
        %v2649 = vadd.f32 0.0, %v2648
        %2650 = vmatmul.f32.gmra.mxu0 %v2536
        %v2651 = vpop.f32.mrf.mxu0
        %v2652 = vadd.f32 0.0, %v2651
        %2653 = vmatmul.f32.gmra.mxu0 %v2539
        %v2654 = vpop.f32.mrf.mxu0
        %v2655 = vadd.f32 0.0, %v2654
        %2656 = vmatmul.f32.gmra.mxu0 %v2542
        %v2657 = vpop.f32.mrf.mxu0
        %v2658 = vadd.f32 0.0, %v2657
        %2659 = vmatmul.f32.gmra.mxu0 %v2545
        %v2660 = vpop.f32.mrf.mxu0
        %v2661 = vadd.f32 0.0, %v2660
        %2662 = vmatmul.f32.gmra.mxu0 %v2548
        %v2663 = vpop.f32.mrf.mxu0
        %v2664 = vadd.f32 0.0, %v2663
        %2665 = vmatmul.f32.gmra.mxu0 %v2551
        %v2666 = vpop.f32.mrf.mxu0
        %v2667 = vadd.f32 0.0, %v2666
        %2668 = vmatmul.f32.gmra.mxu0 %v2554
        %v2669 = vpop.f32.mrf.mxu0
        %v2670 = vadd.f32 0.0, %v2669
        %2671 = vmatmul.f32.gmra.mxu0 %v2557
        %v2672 = vpop.f32.mrf.mxu0
        %v2673 = vadd.f32 0.0, %v2672
        %2674 = vmatmul.f32.gmra.mxu0 %v2560
        %v2675 = vpop.f32.mrf.mxu0
        %v2676 = vadd.f32 0.0, %v2675
        %2677 = vmatmul.f32.gmra.mxu0 %v2563
        %v2678 = vpop.f32.mrf.mxu0
        %v2679 = vadd.f32 0.0, %v2678
        %2680 = vmatmul.f32.gmra.mxu0 %v2566
        %v2681 = vpop.f32.mrf.mxu0
        %v2682 = vadd.f32 0.0, %v2681
        %2683 = vmatmul.f32.gmra.mxu0 %v2569
        %v2684 = vpop.f32.mrf.mxu0
        %v2685 = vadd.f32 0.0, %v2684
        %2686 = vmatmul.f32.gmra.mxu0 %v2572
        %v2687 = vpop.f32.mrf.mxu0
        %v2688 = vadd.f32 0.0, %v2687
        %2689 = vmatmul.f32.gmra.mxu0 %v2575
        %v2690 = vpop.f32.mrf.mxu0
        %v2691 = vadd.f32 0.0, %v2690
        %2692 = vmatmul.f32.gmra.mxu0 %v2578
        %v2693 = vpop.f32.mrf.mxu0
        %v2694 = vadd.f32 0.0, %v2693
        %2695 = vmatmul.f32.gmra.mxu0 %v2581
        %v2696 = vpop.f32.mrf.mxu0
        %v2697 = vadd.f32 0.0, %v2696
        %2698 = vmatmul.f32.gmra.mxu0 %v2584
        %v2699 = vpop.f32.mrf.mxu0
        %v2700 = vadd.f32 0.0, %v2699
        %2701 = vmatmul.f32.gmra.mxu0 %v2587
        %v2702 = vpop.f32.mrf.mxu0
        %v2703 = vadd.f32 0.0, %v2702
        %2704 = vmatmul.f32.gmra.mxu0 %v2590
        %v2705 = vpop.f32.mrf.mxu0
        %v2706 = vadd.f32 0.0, %v2705
        %2707 = vmatmul.f32.gmra.mxu0 %v2593
        %v2708 = vpop.f32.mrf.mxu0
        %v2709 = vadd.f32 0.0, %v2708
        %2710 = vmatmul.f32.gmra.mxu0 %v2596
        %v2711 = vpop.f32.mrf.mxu0
        %v2712 = vadd.f32 0.0, %v2711
        %2713 = vmatmul.f32.gmra.mxu0 %v2599
        %v2714 = vpop.f32.mrf.mxu0
        %v2715 = vadd.f32 0.0, %v2714
        %2716 = vmatmul.f32.gmra.mxu0 %v2602
        %v2717 = vpop.f32.mrf.mxu0
        %v2718 = vadd.f32 0.0, %v2717
        %2719 = vmatmul.f32.gmra.mxu0 %v2605
        %v2720 = vpop.f32.mrf.mxu0
        %v2721 = vadd.f32 0.0, %v2720
        %2722 = vmatmul.f32.gmra.mxu0 %v2608
        %v2723 = vpop.f32.mrf.mxu0
        %v2724 = vadd.f32 0.0, %v2723
        %2725 = vmatmul.f32.gmra.mxu0 %v2611
        %v2726 = vpop.f32.mrf.mxu0
        %v2727 = vadd.f32 0.0, %v2726
        %2728 = vmatmul.f32.gmra.mxu0 %v2614
        %v2729 = vpop.f32.mrf.mxu0
        %v2730 = vadd.f32 0.0, %v2729
        %2731 = vdwg.mxu0
        %v2732 = vadd.f32 %v2454, %v2637
        %v2733 = vadd.f32 %v2455, %v2640
        %v2734 = vadd.f32 %v2456, %v2643
        %v2735 = vadd.f32 %v2457, %v2646
        %v2736 = vadd.f32 %v2458, %v2649
        %v2737 = vadd.f32 %v2459, %v2652
        %v2738 = vadd.f32 %v2460, %v2655
        %v2739 = vadd.f32 %v2461, %v2658
        %v2740 = vadd.f32 %v2462, %v2661
        %v2741 = vadd.f32 %v2463, %v2664
        %v2742 = vadd.f32 %v2464, %v2667
        %v2743 = vadd.f32 %v2465, %v2670
        %v2744 = vadd.f32 %v2466, %v2673
        %v2745 = vadd.f32 %v2467, %v2676
        %v2746 = vadd.f32 %v2468, %v2679
        %v2747 = vadd.f32 %v2469, %v2682
        %v2748 = vadd.f32 %v2470, %v2685
        %v2749 = vadd.f32 %v2471, %v2688
        %v2750 = vadd.f32 %v2472, %v2691
        %v2751 = vadd.f32 %v2473, %v2694
        %v2752 = vadd.f32 %v2474, %v2697
        %v2753 = vadd.f32 %v2475, %v2700
        %v2754 = vadd.f32 %v2476, %v2703
        %v2755 = vadd.f32 %v2477, %v2706
        %v2756 = vadd.f32 %v2478, %v2709
        %v2757 = vadd.f32 %v2479, %v2712
        %v2758 = vadd.f32 %v2480, %v2715
        %v2759 = vadd.f32 %v2481, %v2718
        %v2760 = vadd.f32 %v2482, %v2721
        %v2761 = vadd.f32 %v2483, %v2724
        %v2762 = vadd.f32 %v2484, %v2727
        %v2763 = vadd.f32 %v2485, %v2730
        %v2764 = vld [vmem:[%s213] sm:$0x1]
        %v2766 = vperm.slane %v2764, 0
        %v2768 = vadd.f32 %v2732, %v2766
        %v2769 = vadd.f32 %v2733, %v2766
        %v2770 = vadd.f32 %v2734, %v2766
        %v2771 = vadd.f32 %v2735, %v2766
        %v2772 = vadd.f32 %v2736, %v2766
        %v2773 = vadd.f32 %v2737, %v2766
        %v2774 = vadd.f32 %v2738, %v2766
        %v2775 = vadd.f32 %v2739, %v2766
        %v2776 = vadd.f32 %v2740, %v2766
        %v2777 = vadd.f32 %v2741, %v2766
        %v2778 = vadd.f32 %v2742, %v2766
        %v2779 = vadd.f32 %v2743, %v2766
        %v2780 = vadd.f32 %v2744, %v2766
        %v2781 = vadd.f32 %v2745, %v2766
        %v2782 = vadd.f32 %v2746, %v2766
        %v2783 = vadd.f32 %v2747, %v2766
        %v2784 = vadd.f32 %v2748, %v2766
        %v2785 = vadd.f32 %v2749, %v2766
        %v2786 = vadd.f32 %v2750, %v2766
        %v2787 = vadd.f32 %v2751, %v2766
        %v2788 = vadd.f32 %v2752, %v2766
        %v2789 = vadd.f32 %v2753, %v2766
        %v2790 = vadd.f32 %v2754, %v2766
        %v2791 = vadd.f32 %v2755, %v2766
        %v2792 = vadd.f32 %v2756, %v2766
        %v2793 = vadd.f32 %v2757, %v2766
        %v2794 = vadd.f32 %v2758, %v2766
        %v2795 = vadd.f32 %v2759, %v2766
        %v2796 = vadd.f32 %v2760, %v2766
        %v2797 = vadd.f32 %v2761, %v2766
        %v2798 = vadd.f32 %v2762, %v2766
        %v2799 = vadd.f32 %v2763, %v2766
        %v2800 = vmul.f32 %v2768, 0.70710677
        %v2801 = vmul.f32 %v2769, 0.70710677
        %v2802 = vmul.f32 %v2770, 0.70710677
        %v2803 = vmul.f32 %v2771, 0.70710677
        %v2804 = vmul.f32 %v2772, 0.70710677
        %v2805 = vmul.f32 %v2773, 0.70710677
        %v2806 = vmul.f32 %v2774, 0.70710677
        %v2807 = vmul.f32 %v2775, 0.70710677
        %v2808 = vmul.f32 %v2776, 0.70710677
        %v2809 = vmul.f32 %v2777, 0.70710677
        %v2810 = vmul.f32 %v2778, 0.70710677
        %v2811 = vmul.f32 %v2779, 0.70710677
        %v2812 = vmul.f32 %v2780, 0.70710677
        %v2813 = vmul.f32 %v2781, 0.70710677
        %v2814 = vmul.f32 %v2782, 0.70710677
        %v2815 = vmul.f32 %v2783, 0.70710677
        %v2816 = vmul.f32 %v2784, 0.70710677
        %v2817 = vmul.f32 %v2785, 0.70710677
        %v2818 = vmul.f32 %v2786, 0.70710677
        %v2819 = vmul.f32 %v2787, 0.70710677
        %v2820 = vmul.f32 %v2788, 0.70710677
        %v2821 = vmul.f32 %v2789, 0.70710677
        %v2822 = vmul.f32 %v2790, 0.70710677
        %v2823 = vmul.f32 %v2791, 0.70710677
        %v2824 = vmul.f32 %v2792, 0.70710677
        %v2825 = vmul.f32 %v2793, 0.70710677
        %v2826 = vmul.f32 %v2794, 0.70710677
        %v2827 = vmul.f32 %v2795, 0.70710677
        %v2828 = vmul.f32 %v2796, 0.70710677
        %v2829 = vmul.f32 %v2797, 0.70710677
        %v2830 = vmul.f32 %v2798, 0.70710677
        %v2831 = vmul.f32 %v2799, 0.70710677
        %v2832 = vand.u32 2147483647, %v2800
        %v2833 = vand.u32 2147483647, %v2801
        %v2834 = vand.u32 2147483647, %v2802
        %v2835 = vand.u32 2147483647, %v2803
        %v2836 = vand.u32 2147483647, %v2804
        %v2837 = vand.u32 2147483647, %v2805
        %v2838 = vand.u32 2147483647, %v2806
        %v2839 = vand.u32 2147483647, %v2807
        %v2840 = vand.u32 2147483647, %v2808
        %v2841 = vand.u32 2147483647, %v2809
        %v2842 = vand.u32 2147483647, %v2810
        %v2843 = vand.u32 2147483647, %v2811
        %v2844 = vand.u32 2147483647, %v2812
        %v2845 = vand.u32 2147483647, %v2813
        %v2846 = vand.u32 2147483647, %v2814
        %v2847 = vand.u32 2147483647, %v2815
        %v2848 = vand.u32 2147483647, %v2816
        %v2849 = vand.u32 2147483647, %v2817
        %v2850 = vand.u32 2147483647, %v2818
        %v2851 = vand.u32 2147483647, %v2819
        %v2852 = vand.u32 2147483647, %v2820
        %v2853 = vand.u32 2147483647, %v2821
        %v2854 = vand.u32 2147483647, %v2822
        %v2855 = vand.u32 2147483647, %v2823
        %v2856 = vand.u32 2147483647, %v2824
        %v2857 = vand.u32 2147483647, %v2825
        %v2858 = vand.u32 2147483647, %v2826
        %v2859 = vand.u32 2147483647, %v2827
        %v2860 = vand.u32 2147483647, %v2828
        %v2861 = vand.u32 2147483647, %v2829
        %v2862 = vand.u32 2147483647, %v2830
        %v2863 = vand.u32 2147483647, %v2831
        %v2864 = vmul.f32 %v2832, 0.3275911
        %v2865 = vmul.f32 %v2833, 0.3275911
        %v2866 = vmul.f32 %v2834, 0.3275911
        %v2867 = vmul.f32 %v2835, 0.3275911
        %v2868 = vmul.f32 %v2836, 0.3275911
        %v2869 = vmul.f32 %v2837, 0.3275911
        %v2870 = vmul.f32 %v2838, 0.3275911
        %v2871 = vmul.f32 %v2839, 0.3275911
        %v2872 = vmul.f32 %v2840, 0.3275911
        %v2873 = vmul.f32 %v2841, 0.3275911
        %v2874 = vmul.f32 %v2842, 0.3275911
        %v2875 = vmul.f32 %v2843, 0.3275911
        %v2876 = vmul.f32 %v2844, 0.3275911
        %v2877 = vmul.f32 %v2845, 0.3275911
        %v2878 = vmul.f32 %v2846, 0.3275911
        %v2879 = vmul.f32 %v2847, 0.3275911
        %v2880 = vmul.f32 %v2848, 0.3275911
        %v2881 = vmul.f32 %v2849, 0.3275911
        %v2882 = vmul.f32 %v2850, 0.3275911
        %v2883 = vmul.f32 %v2851, 0.3275911
        %v2884 = vmul.f32 %v2852, 0.3275911
        %v2885 = vmul.f32 %v2853, 0.3275911
        %v2886 = vmul.f32 %v2854, 0.3275911
        %v2887 = vmul.f32 %v2855, 0.3275911
        %v2888 = vmul.f32 %v2856, 0.3275911
        %v2889 = vmul.f32 %v2857, 0.3275911
        %v2890 = vmul.f32 %v2858, 0.3275911
        %v2891 = vmul.f32 %v2859, 0.3275911
        %v2892 = vmul.f32 %v2860, 0.3275911
        %v2893 = vmul.f32 %v2861, 0.3275911
        %v2894 = vmul.f32 %v2862, 0.3275911
        %v2895 = vmul.f32 %v2863, 0.3275911
        %v2896 = vadd.f32 %v2864, 1.0
        %v2897 = vadd.f32 %v2865, 1.0
        %v2898 = vadd.f32 %v2866, 1.0
        %v2899 = vadd.f32 %v2867, 1.0
        %v2900 = vadd.f32 %v2868, 1.0
        %v2901 = vadd.f32 %v2869, 1.0
        %v2902 = vadd.f32 %v2870, 1.0
        %v2903 = vadd.f32 %v2871, 1.0
        %v2904 = vadd.f32 %v2872, 1.0
        %v2905 = vadd.f32 %v2873, 1.0
        %v2906 = vadd.f32 %v2874, 1.0
        %v2907 = vadd.f32 %v2875, 1.0
        %v2908 = vadd.f32 %v2876, 1.0
        %v2909 = vadd.f32 %v2877, 1.0
        %v2910 = vadd.f32 %v2878, 1.0
        %v2911 = vadd.f32 %v2879, 1.0
        %v2912 = vadd.f32 %v2880, 1.0
        %v2913 = vadd.f32 %v2881, 1.0
        %v2914 = vadd.f32 %v2882, 1.0
        %v2915 = vadd.f32 %v2883, 1.0
        %v2916 = vadd.f32 %v2884, 1.0
        %v2917 = vadd.f32 %v2885, 1.0
        %v2918 = vadd.f32 %v2886, 1.0
        %v2919 = vadd.f32 %v2887, 1.0
        %v2920 = vadd.f32 %v2888, 1.0
        %v2921 = vadd.f32 %v2889, 1.0
        %v2922 = vadd.f32 %v2890, 1.0
        %v2923 = vadd.f32 %v2891, 1.0
        %v2924 = vadd.f32 %v2892, 1.0
        %v2925 = vadd.f32 %v2893, 1.0
        %v2926 = vadd.f32 %v2894, 1.0
        %v2927 = vadd.f32 %v2895, 1.0
        %v2928 = vrcp.pop %v2896
        %v2929 = vmul.f32 %v2896, %v2928
        %v2930 = vsub.f32 1.0, %v2929
        %v2931 = vmul.f32 %v2928, %v2930
        %v2932 = vadd.f32 %v2928, %v2931
        %vm2933 = vweird.f32 %v2896
        %vm2934 = vweird.f32 %v2928
        %vm2935 = vmor %vm2933, %vm2934
        %v2936 = vsel %vm2935, %v2928, %v2932
        %v2937 = vand.u32 2147483647, %v2896
        %vm2938 = vcmp.eq.f32.partialorder %v2937, 8.507059e+37
        %v2939 = vand.u32 %v2896, 2147483648
        %v2940 = vor.u32 1.1754944e-38, %v2939
        %v2941 = vsel %vm2938, %v2940, %v2936
        %v2942 = vmul.f32 1.0, %v2941
        %v2943 = vrcp.pop %v2897
        %v2944 = vmul.f32 %v2897, %v2943
        %v2945 = vsub.f32 1.0, %v2944
        %v2946 = vmul.f32 %v2943, %v2945
        %v2947 = vadd.f32 %v2943, %v2946
        %vm2948 = vweird.f32 %v2897
        %vm2949 = vweird.f32 %v2943
        %vm2950 = vmor %vm2948, %vm2949
        %v2951 = vsel %vm2950, %v2943, %v2947
        %v2952 = vand.u32 2147483647, %v2897
        %vm2953 = vcmp.eq.f32.partialorder %v2952, 8.507059e+37
        %v2954 = vand.u32 %v2897, 2147483648
        %v2955 = vor.u32 1.1754944e-38, %v2954
        %v2956 = vsel %vm2953, %v2955, %v2951
        %v2957 = vmul.f32 1.0, %v2956
        %v2958 = vrcp.pop %v2898
        %v2959 = vmul.f32 %v2898, %v2958
        %v2960 = vsub.f32 1.0, %v2959
        %v2961 = vmul.f32 %v2958, %v2960
        %v2962 = vadd.f32 %v2958, %v2961
        %vm2963 = vweird.f32 %v2898
        %vm2964 = vweird.f32 %v2958
        %vm2965 = vmor %vm2963, %vm2964
        %v2966 = vsel %vm2965, %v2958, %v2962
        %v2967 = vand.u32 2147483647, %v2898
        %vm2968 = vcmp.eq.f32.partialorder %v2967, 8.507059e+37
        %v2969 = vand.u32 %v2898, 2147483648
        %v2970 = vor.u32 1.1754944e-38, %v2969
        %v2971 = vsel %vm2968, %v2970, %v2966
        %v2972 = vmul.f32 1.0, %v2971
        %v2973 = vrcp.pop %v2899
        %v2974 = vmul.f32 %v2899, %v2973
        %v2975 = vsub.f32 1.0, %v2974
        %v2976 = vmul.f32 %v2973, %v2975
        %v2977 = vadd.f32 %v2973, %v2976
        %vm2978 = vweird.f32 %v2899
        %vm2979 = vweird.f32 %v2973
        %vm2980 = vmor %vm2978, %vm2979
        %v2981 = vsel %vm2980, %v2973, %v2977
        %v2982 = vand.u32 2147483647, %v2899
        %vm2983 = vcmp.eq.f32.partialorder %v2982, 8.507059e+37
        %v2984 = vand.u32 %v2899, 2147483648
        %v2985 = vor.u32 1.1754944e-38, %v2984
        %v2986 = vsel %vm2983, %v2985, %v2981
        %v2987 = vmul.f32 1.0, %v2986
        %v2988 = vrcp.pop %v2900
        %v2989 = vmul.f32 %v2900, %v2988
        %v2990 = vsub.f32 1.0, %v2989
        %v2991 = vmul.f32 %v2988, %v2990
        %v2992 = vadd.f32 %v2988, %v2991
        %vm2993 = vweird.f32 %v2900
        %vm2994 = vweird.f32 %v2988
        %vm2995 = vmor %vm2993, %vm2994
        %v2996 = vsel %vm2995, %v2988, %v2992
        %v2997 = vand.u32 2147483647, %v2900
        %vm2998 = vcmp.eq.f32.partialorder %v2997, 8.507059e+37
        %v2999 = vand.u32 %v2900, 2147483648
        %v3000 = vor.u32 1.1754944e-38, %v2999
        %v3001 = vsel %vm2998, %v3000, %v2996
        %v3002 = vmul.f32 1.0, %v3001
        %v3003 = vrcp.pop %v2901
        %v3004 = vmul.f32 %v2901, %v3003
        %v3005 = vsub.f32 1.0, %v3004
        %v3006 = vmul.f32 %v3003, %v3005
        %v3007 = vadd.f32 %v3003, %v3006
        %vm3008 = vweird.f32 %v2901
        %vm3009 = vweird.f32 %v3003
        %vm3010 = vmor %vm3008, %vm3009
        %v3011 = vsel %vm3010, %v3003, %v3007
        %v3012 = vand.u32 2147483647, %v2901
        %vm3013 = vcmp.eq.f32.partialorder %v3012, 8.507059e+37
        %v3014 = vand.u32 %v2901, 2147483648
        %v3015 = vor.u32 1.1754944e-38, %v3014
        %v3016 = vsel %vm3013, %v3015, %v3011
        %v3017 = vmul.f32 1.0, %v3016
        %v3018 = vrcp.pop %v2902
        %v3019 = vmul.f32 %v2902, %v3018
        %v3020 = vsub.f32 1.0, %v3019
        %v3021 = vmul.f32 %v3018, %v3020
        %v3022 = vadd.f32 %v3018, %v3021
        %vm3023 = vweird.f32 %v2902
        %vm3024 = vweird.f32 %v3018
        %vm3025 = vmor %vm3023, %vm3024
        %v3026 = vsel %vm3025, %v3018, %v3022
        %v3027 = vand.u32 2147483647, %v2902
        %vm3028 = vcmp.eq.f32.partialorder %v3027, 8.507059e+37
        %v3029 = vand.u32 %v2902, 2147483648
        %v3030 = vor.u32 1.1754944e-38, %v3029
        %v3031 = vsel %vm3028, %v3030, %v3026
        %v3032 = vmul.f32 1.0, %v3031
        %v3033 = vrcp.pop %v2903
        %v3034 = vmul.f32 %v2903, %v3033
        %v3035 = vsub.f32 1.0, %v3034
        %v3036 = vmul.f32 %v3033, %v3035
        %v3037 = vadd.f32 %v3033, %v3036
        %vm3038 = vweird.f32 %v2903
        %vm3039 = vweird.f32 %v3033
        %vm3040 = vmor %vm3038, %vm3039
        %v3041 = vsel %vm3040, %v3033, %v3037
        %v3042 = vand.u32 2147483647, %v2903
        %vm3043 = vcmp.eq.f32.partialorder %v3042, 8.507059e+37
        %v3044 = vand.u32 %v2903, 2147483648
        %v3045 = vor.u32 1.1754944e-38, %v3044
        %v3046 = vsel %vm3043, %v3045, %v3041
        %v3047 = vmul.f32 1.0, %v3046
        %v3048 = vrcp.pop %v2904
        %v3049 = vmul.f32 %v2904, %v3048
        %v3050 = vsub.f32 1.0, %v3049
        %v3051 = vmul.f32 %v3048, %v3050
        %v3052 = vadd.f32 %v3048, %v3051
        %vm3053 = vweird.f32 %v2904
        %vm3054 = vweird.f32 %v3048
        %vm3055 = vmor %vm3053, %vm3054
        %v3056 = vsel %vm3055, %v3048, %v3052
        %v3057 = vand.u32 2147483647, %v2904
        %vm3058 = vcmp.eq.f32.partialorder %v3057, 8.507059e+37
        %v3059 = vand.u32 %v2904, 2147483648
        %v3060 = vor.u32 1.1754944e-38, %v3059
        %v3061 = vsel %vm3058, %v3060, %v3056
        %v3062 = vmul.f32 1.0, %v3061
        %v3063 = vrcp.pop %v2905
        %v3064 = vmul.f32 %v2905, %v3063
        %v3065 = vsub.f32 1.0, %v3064
        %v3066 = vmul.f32 %v3063, %v3065
        %v3067 = vadd.f32 %v3063, %v3066
        %vm3068 = vweird.f32 %v2905
        %vm3069 = vweird.f32 %v3063
        %vm3070 = vmor %vm3068, %vm3069
        %v3071 = vsel %vm3070, %v3063, %v3067
        %v3072 = vand.u32 2147483647, %v2905
        %vm3073 = vcmp.eq.f32.partialorder %v3072, 8.507059e+37
        %v3074 = vand.u32 %v2905, 2147483648
        %v3075 = vor.u32 1.1754944e-38, %v3074
        %v3076 = vsel %vm3073, %v3075, %v3071
        %v3077 = vmul.f32 1.0, %v3076
        %v3078 = vrcp.pop %v2906
        %v3079 = vmul.f32 %v2906, %v3078
        %v3080 = vsub.f32 1.0, %v3079
        %v3081 = vmul.f32 %v3078, %v3080
        %v3082 = vadd.f32 %v3078, %v3081
        %vm3083 = vweird.f32 %v2906
        %vm3084 = vweird.f32 %v3078
        %vm3085 = vmor %vm3083, %vm3084
        %v3086 = vsel %vm3085, %v3078, %v3082
        %v3087 = vand.u32 2147483647, %v2906
        %vm3088 = vcmp.eq.f32.partialorder %v3087, 8.507059e+37
        %v3089 = vand.u32 %v2906, 2147483648
        %v3090 = vor.u32 1.1754944e-38, %v3089
        %v3091 = vsel %vm3088, %v3090, %v3086
        %v3092 = vmul.f32 1.0, %v3091
        %v3093 = vrcp.pop %v2907
        %v3094 = vmul.f32 %v2907, %v3093
        %v3095 = vsub.f32 1.0, %v3094
        %v3096 = vmul.f32 %v3093, %v3095
        %v3097 = vadd.f32 %v3093, %v3096
        %vm3098 = vweird.f32 %v2907
        %vm3099 = vweird.f32 %v3093
        %vm3100 = vmor %vm3098, %vm3099
        %v3101 = vsel %vm3100, %v3093, %v3097
        %v3102 = vand.u32 2147483647, %v2907
        %vm3103 = vcmp.eq.f32.partialorder %v3102, 8.507059e+37
        %v3104 = vand.u32 %v2907, 2147483648
        %v3105 = vor.u32 1.1754944e-38, %v3104
        %v3106 = vsel %vm3103, %v3105, %v3101
        %v3107 = vmul.f32 1.0, %v3106
        %v3108 = vrcp.pop %v2908
        %v3109 = vmul.f32 %v2908, %v3108
        %v3110 = vsub.f32 1.0, %v3109
        %v3111 = vmul.f32 %v3108, %v3110
        %v3112 = vadd.f32 %v3108, %v3111
        %vm3113 = vweird.f32 %v2908
        %vm3114 = vweird.f32 %v3108
        %vm3115 = vmor %vm3113, %vm3114
        %v3116 = vsel %vm3115, %v3108, %v3112
        %v3117 = vand.u32 2147483647, %v2908
        %vm3118 = vcmp.eq.f32.partialorder %v3117, 8.507059e+37
        %v3119 = vand.u32 %v2908, 2147483648
        %v3120 = vor.u32 1.1754944e-38, %v3119
        %v3121 = vsel %vm3118, %v3120, %v3116
        %v3122 = vmul.f32 1.0, %v3121
        %v3123 = vrcp.pop %v2909
        %v3124 = vmul.f32 %v2909, %v3123
        %v3125 = vsub.f32 1.0, %v3124
        %v3126 = vmul.f32 %v3123, %v3125
        %v3127 = vadd.f32 %v3123, %v3126
        %vm3128 = vweird.f32 %v2909
        %vm3129 = vweird.f32 %v3123
        %vm3130 = vmor %vm3128, %vm3129
        %v3131 = vsel %vm3130, %v3123, %v3127
        %v3132 = vand.u32 2147483647, %v2909
        %vm3133 = vcmp.eq.f32.partialorder %v3132, 8.507059e+37
        %v3134 = vand.u32 %v2909, 2147483648
        %v3135 = vor.u32 1.1754944e-38, %v3134
        %v3136 = vsel %vm3133, %v3135, %v3131
        %v3137 = vmul.f32 1.0, %v3136
        %v3138 = vrcp.pop %v2910
        %v3139 = vmul.f32 %v2910, %v3138
        %v3140 = vsub.f32 1.0, %v3139
        %v3141 = vmul.f32 %v3138, %v3140
        %v3142 = vadd.f32 %v3138, %v3141
        %vm3143 = vweird.f32 %v2910
        %vm3144 = vweird.f32 %v3138
        %vm3145 = vmor %vm3143, %vm3144
        %v3146 = vsel %vm3145, %v3138, %v3142
        %v3147 = vand.u32 2147483647, %v2910
        %vm3148 = vcmp.eq.f32.partialorder %v3147, 8.507059e+37
        %v3149 = vand.u32 %v2910, 2147483648
        %v3150 = vor.u32 1.1754944e-38, %v3149
        %v3151 = vsel %vm3148, %v3150, %v3146
        %v3152 = vmul.f32 1.0, %v3151
        %v3153 = vrcp.pop %v2911
        %v3154 = vmul.f32 %v2911, %v3153
        %v3155 = vsub.f32 1.0, %v3154
        %v3156 = vmul.f32 %v3153, %v3155
        %v3157 = vadd.f32 %v3153, %v3156
        %vm3158 = vweird.f32 %v2911
        %vm3159 = vweird.f32 %v3153
        %vm3160 = vmor %vm3158, %vm3159
        %v3161 = vsel %vm3160, %v3153, %v3157
        %v3162 = vand.u32 2147483647, %v2911
        %vm3163 = vcmp.eq.f32.partialorder %v3162, 8.507059e+37
        %v3164 = vand.u32 %v2911, 2147483648
        %v3165 = vor.u32 1.1754944e-38, %v3164
        %v3166 = vsel %vm3163, %v3165, %v3161
        %v3167 = vmul.f32 1.0, %v3166
        %v3168 = vrcp.pop %v2912
        %v3169 = vmul.f32 %v2912, %v3168
        %v3170 = vsub.f32 1.0, %v3169
        %v3171 = vmul.f32 %v3168, %v3170
        %v3172 = vadd.f32 %v3168, %v3171
        %vm3173 = vweird.f32 %v2912
        %vm3174 = vweird.f32 %v3168
        %vm3175 = vmor %vm3173, %vm3174
        %v3176 = vsel %vm3175, %v3168, %v3172
        %v3177 = vand.u32 2147483647, %v2912
        %vm3178 = vcmp.eq.f32.partialorder %v3177, 8.507059e+37
        %v3179 = vand.u32 %v2912, 2147483648
        %v3180 = vor.u32 1.1754944e-38, %v3179
        %v3181 = vsel %vm3178, %v3180, %v3176
        %v3182 = vmul.f32 1.0, %v3181
        %v3183 = vrcp.pop %v2913
        %v3184 = vmul.f32 %v2913, %v3183
        %v3185 = vsub.f32 1.0, %v3184
        %v3186 = vmul.f32 %v3183, %v3185
        %v3187 = vadd.f32 %v3183, %v3186
        %vm3188 = vweird.f32 %v2913
        %vm3189 = vweird.f32 %v3183
        %vm3190 = vmor %vm3188, %vm3189
        %v3191 = vsel %vm3190, %v3183, %v3187
        %v3192 = vand.u32 2147483647, %v2913
        %vm3193 = vcmp.eq.f32.partialorder %v3192, 8.507059e+37
        %v3194 = vand.u32 %v2913, 2147483648
        %v3195 = vor.u32 1.1754944e-38, %v3194
        %v3196 = vsel %vm3193, %v3195, %v3191
        %v3197 = vmul.f32 1.0, %v3196
        %v3198 = vrcp.pop %v2914
        %v3199 = vmul.f32 %v2914, %v3198
        %v3200 = vsub.f32 1.0, %v3199
        %v3201 = vmul.f32 %v3198, %v3200
        %v3202 = vadd.f32 %v3198, %v3201
        %vm3203 = vweird.f32 %v2914
        %vm3204 = vweird.f32 %v3198
        %vm3205 = vmor %vm3203, %vm3204
        %v3206 = vsel %vm3205, %v3198, %v3202
        %v3207 = vand.u32 2147483647, %v2914
        %vm3208 = vcmp.eq.f32.partialorder %v3207, 8.507059e+37
        %v3209 = vand.u32 %v2914, 2147483648
        %v3210 = vor.u32 1.1754944e-38, %v3209
        %v3211 = vsel %vm3208, %v3210, %v3206
        %v3212 = vmul.f32 1.0, %v3211
        %v3213 = vrcp.pop %v2915
        %v3214 = vmul.f32 %v2915, %v3213
        %v3215 = vsub.f32 1.0, %v3214
        %v3216 = vmul.f32 %v3213, %v3215
        %v3217 = vadd.f32 %v3213, %v3216
        %vm3218 = vweird.f32 %v2915
        %vm3219 = vweird.f32 %v3213
        %vm3220 = vmor %vm3218, %vm3219
        %v3221 = vsel %vm3220, %v3213, %v3217
        %v3222 = vand.u32 2147483647, %v2915
        %vm3223 = vcmp.eq.f32.partialorder %v3222, 8.507059e+37
        %v3224 = vand.u32 %v2915, 2147483648
        %v3225 = vor.u32 1.1754944e-38, %v3224
        %v3226 = vsel %vm3223, %v3225, %v3221
        %v3227 = vmul.f32 1.0, %v3226
        %v3228 = vrcp.pop %v2916
        %v3229 = vmul.f32 %v2916, %v3228
        %v3230 = vsub.f32 1.0, %v3229
        %v3231 = vmul.f32 %v3228, %v3230
        %v3232 = vadd.f32 %v3228, %v3231
        %vm3233 = vweird.f32 %v2916
        %vm3234 = vweird.f32 %v3228
        %vm3235 = vmor %vm3233, %vm3234
        %v3236 = vsel %vm3235, %v3228, %v3232
        %v3237 = vand.u32 2147483647, %v2916
        %vm3238 = vcmp.eq.f32.partialorder %v3237, 8.507059e+37
        %v3239 = vand.u32 %v2916, 2147483648
        %v3240 = vor.u32 1.1754944e-38, %v3239
        %v3241 = vsel %vm3238, %v3240, %v3236
        %v3242 = vmul.f32 1.0, %v3241
        %v3243 = vrcp.pop %v2917
        %v3244 = vmul.f32 %v2917, %v3243
        %v3245 = vsub.f32 1.0, %v3244
        %v3246 = vmul.f32 %v3243, %v3245
        %v3247 = vadd.f32 %v3243, %v3246
        %vm3248 = vweird.f32 %v2917
        %vm3249 = vweird.f32 %v3243
        %vm3250 = vmor %vm3248, %vm3249
        %v3251 = vsel %vm3250, %v3243, %v3247
        %v3252 = vand.u32 2147483647, %v2917
        %vm3253 = vcmp.eq.f32.partialorder %v3252, 8.507059e+37
        %v3254 = vand.u32 %v2917, 2147483648
        %v3255 = vor.u32 1.1754944e-38, %v3254
        %v3256 = vsel %vm3253, %v3255, %v3251
        %v3257 = vmul.f32 1.0, %v3256
        %v3258 = vrcp.pop %v2918
        %v3259 = vmul.f32 %v2918, %v3258
        %v3260 = vsub.f32 1.0, %v3259
        %v3261 = vmul.f32 %v3258, %v3260
        %v3262 = vadd.f32 %v3258, %v3261
        %vm3263 = vweird.f32 %v2918
        %vm3264 = vweird.f32 %v3258
        %vm3265 = vmor %vm3263, %vm3264
        %v3266 = vsel %vm3265, %v3258, %v3262
        %v3267 = vand.u32 2147483647, %v2918
        %vm3268 = vcmp.eq.f32.partialorder %v3267, 8.507059e+37
        %v3269 = vand.u32 %v2918, 2147483648
        %v3270 = vor.u32 1.1754944e-38, %v3269
        %v3271 = vsel %vm3268, %v3270, %v3266
        %v3272 = vmul.f32 1.0, %v3271
        %v3273 = vrcp.pop %v2919
        %v3274 = vmul.f32 %v2919, %v3273
        %v3275 = vsub.f32 1.0, %v3274
        %v3276 = vmul.f32 %v3273, %v3275
        %v3277 = vadd.f32 %v3273, %v3276
        %vm3278 = vweird.f32 %v2919
        %vm3279 = vweird.f32 %v3273
        %vm3280 = vmor %vm3278, %vm3279
        %v3281 = vsel %vm3280, %v3273, %v3277
        %v3282 = vand.u32 2147483647, %v2919
        %vm3283 = vcmp.eq.f32.partialorder %v3282, 8.507059e+37
        %v3284 = vand.u32 %v2919, 2147483648
        %v3285 = vor.u32 1.1754944e-38, %v3284
        %v3286 = vsel %vm3283, %v3285, %v3281
        %v3287 = vmul.f32 1.0, %v3286
        %v3288 = vrcp.pop %v2920
        %v3289 = vmul.f32 %v2920, %v3288
        %v3290 = vsub.f32 1.0, %v3289
        %v3291 = vmul.f32 %v3288, %v3290
        %v3292 = vadd.f32 %v3288, %v3291
        %vm3293 = vweird.f32 %v2920
        %vm3294 = vweird.f32 %v3288
        %vm3295 = vmor %vm3293, %vm3294
        %v3296 = vsel %vm3295, %v3288, %v3292
        %v3297 = vand.u32 2147483647, %v2920
        %vm3298 = vcmp.eq.f32.partialorder %v3297, 8.507059e+37
        %v3299 = vand.u32 %v2920, 2147483648
        %v3300 = vor.u32 1.1754944e-38, %v3299
        %v3301 = vsel %vm3298, %v3300, %v3296
        %v3302 = vmul.f32 1.0, %v3301
        %v3303 = vrcp.pop %v2921
        %v3304 = vmul.f32 %v2921, %v3303
        %v3305 = vsub.f32 1.0, %v3304
        %v3306 = vmul.f32 %v3303, %v3305
        %v3307 = vadd.f32 %v3303, %v3306
        %vm3308 = vweird.f32 %v2921
        %vm3309 = vweird.f32 %v3303
        %vm3310 = vmor %vm3308, %vm3309
        %v3311 = vsel %vm3310, %v3303, %v3307
        %v3312 = vand.u32 2147483647, %v2921
        %vm3313 = vcmp.eq.f32.partialorder %v3312, 8.507059e+37
        %v3314 = vand.u32 %v2921, 2147483648
        %v3315 = vor.u32 1.1754944e-38, %v3314
        %v3316 = vsel %vm3313, %v3315, %v3311
        %v3317 = vmul.f32 1.0, %v3316
        %v3318 = vrcp.pop %v2922
        %v3319 = vmul.f32 %v2922, %v3318
        %v3320 = vsub.f32 1.0, %v3319
        %v3321 = vmul.f32 %v3318, %v3320
        %v3322 = vadd.f32 %v3318, %v3321
        %vm3323 = vweird.f32 %v2922
        %vm3324 = vweird.f32 %v3318
        %vm3325 = vmor %vm3323, %vm3324
        %v3326 = vsel %vm3325, %v3318, %v3322
        %v3327 = vand.u32 2147483647, %v2922
        %vm3328 = vcmp.eq.f32.partialorder %v3327, 8.507059e+37
        %v3329 = vand.u32 %v2922, 2147483648
        %v3330 = vor.u32 1.1754944e-38, %v3329
        %v3331 = vsel %vm3328, %v3330, %v3326
        %v3332 = vmul.f32 1.0, %v3331
        %v3333 = vrcp.pop %v2923
        %v3334 = vmul.f32 %v2923, %v3333
        %v3335 = vsub.f32 1.0, %v3334
        %v3336 = vmul.f32 %v3333, %v3335
        %v3337 = vadd.f32 %v3333, %v3336
        %vm3338 = vweird.f32 %v2923
        %vm3339 = vweird.f32 %v3333
        %vm3340 = vmor %vm3338, %vm3339
        %v3341 = vsel %vm3340, %v3333, %v3337
        %v3342 = vand.u32 2147483647, %v2923
        %vm3343 = vcmp.eq.f32.partialorder %v3342, 8.507059e+37
        %v3344 = vand.u32 %v2923, 2147483648
        %v3345 = vor.u32 1.1754944e-38, %v3344
        %v3346 = vsel %vm3343, %v3345, %v3341
        %v3347 = vmul.f32 1.0, %v3346
        %v3348 = vrcp.pop %v2924
        %v3349 = vmul.f32 %v2924, %v3348
        %v3350 = vsub.f32 1.0, %v3349
        %v3351 = vmul.f32 %v3348, %v3350
        %v3352 = vadd.f32 %v3348, %v3351
        %vm3353 = vweird.f32 %v2924
        %vm3354 = vweird.f32 %v3348
        %vm3355 = vmor %vm3353, %vm3354
        %v3356 = vsel %vm3355, %v3348, %v3352
        %v3357 = vand.u32 2147483647, %v2924
        %vm3358 = vcmp.eq.f32.partialorder %v3357, 8.507059e+37
        %v3359 = vand.u32 %v2924, 2147483648
        %v3360 = vor.u32 1.1754944e-38, %v3359
        %v3361 = vsel %vm3358, %v3360, %v3356
        %v3362 = vmul.f32 1.0, %v3361
        %v3363 = vrcp.pop %v2925
        %v3364 = vmul.f32 %v2925, %v3363
        %v3365 = vsub.f32 1.0, %v3364
        %v3366 = vmul.f32 %v3363, %v3365
        %v3367 = vadd.f32 %v3363, %v3366
        %vm3368 = vweird.f32 %v2925
        %vm3369 = vweird.f32 %v3363
        %vm3370 = vmor %vm3368, %vm3369
        %v3371 = vsel %vm3370, %v3363, %v3367
        %v3372 = vand.u32 2147483647, %v2925
        %vm3373 = vcmp.eq.f32.partialorder %v3372, 8.507059e+37
        %v3374 = vand.u32 %v2925, 2147483648
        %v3375 = vor.u32 1.1754944e-38, %v3374
        %v3376 = vsel %vm3373, %v3375, %v3371
        %v3377 = vmul.f32 1.0, %v3376
        %v3378 = vrcp.pop %v2926
        %v3379 = vmul.f32 %v2926, %v3378
        %v3380 = vsub.f32 1.0, %v3379
        %v3381 = vmul.f32 %v3378, %v3380
        %v3382 = vadd.f32 %v3378, %v3381
        %vm3383 = vweird.f32 %v2926
        %vm3384 = vweird.f32 %v3378
        %vm3385 = vmor %vm3383, %vm3384
        %v3386 = vsel %vm3385, %v3378, %v3382
        %v3387 = vand.u32 2147483647, %v2926
        %vm3388 = vcmp.eq.f32.partialorder %v3387, 8.507059e+37
        %v3389 = vand.u32 %v2926, 2147483648
        %v3390 = vor.u32 1.1754944e-38, %v3389
        %v3391 = vsel %vm3388, %v3390, %v3386
        %v3392 = vmul.f32 1.0, %v3391
        %v3393 = vrcp.pop %v2927
        %v3394 = vmul.f32 %v2927, %v3393
        %v3395 = vsub.f32 1.0, %v3394
        %v3396 = vmul.f32 %v3393, %v3395
        %v3397 = vadd.f32 %v3393, %v3396
        %vm3398 = vweird.f32 %v2927
        %vm3399 = vweird.f32 %v3393
        %vm3400 = vmor %vm3398, %vm3399
        %v3401 = vsel %vm3400, %v3393, %v3397
        %v3402 = vand.u32 2147483647, %v2927
        %vm3403 = vcmp.eq.f32.partialorder %v3402, 8.507059e+37
        %v3404 = vand.u32 %v2927, 2147483648
        %v3405 = vor.u32 1.1754944e-38, %v3404
        %v3406 = vsel %vm3403, %v3405, %v3401
        %v3407 = vmul.f32 1.0, %v3406
        %v3408 = vmul.f32 %v2942, 1.0614054
        %v3409 = vmul.f32 %v2957, 1.0614054
        %v3410 = vmul.f32 %v2972, 1.0614054
        %v3411 = vmul.f32 %v2987, 1.0614054
        %v3412 = vmul.f32 %v3002, 1.0614054
        %v3413 = vmul.f32 %v3017, 1.0614054
        %v3414 = vmul.f32 %v3032, 1.0614054
        %v3415 = vmul.f32 %v3047, 1.0614054
        %v3416 = vmul.f32 %v3062, 1.0614054
        %v3417 = vmul.f32 %v3077, 1.0614054
        %v3418 = vmul.f32 %v3092, 1.0614054
        %v3419 = vmul.f32 %v3107, 1.0614054
        %v3420 = vmul.f32 %v3122, 1.0614054
        %v3421 = vmul.f32 %v3137, 1.0614054
        %v3422 = vmul.f32 %v3152, 1.0614054
        %v3423 = vmul.f32 %v3167, 1.0614054
        %v3424 = vmul.f32 %v3182, 1.0614054
        %v3425 = vmul.f32 %v3197, 1.0614054
        %v3426 = vmul.f32 %v3212, 1.0614054
        %v3427 = vmul.f32 %v3227, 1.0614054
        %v3428 = vmul.f32 %v3242, 1.0614054
        %v3429 = vmul.f32 %v3257, 1.0614054
        %v3430 = vmul.f32 %v3272, 1.0614054
        %v3431 = vmul.f32 %v3287, 1.0614054
        %v3432 = vmul.f32 %v3302, 1.0614054
        %v3433 = vmul.f32 %v3317, 1.0614054
        %v3434 = vmul.f32 %v3332, 1.0614054
        %v3435 = vmul.f32 %v3347, 1.0614054
        %v3436 = vmul.f32 %v3362, 1.0614054
        %v3437 = vmul.f32 %v3377, 1.0614054
        %v3438 = vmul.f32 %v3392, 1.0614054
        %v3439 = vmul.f32 %v3407, 1.0614054
        %v3440 = vadd.f32 %v3408, -1.4531521
        %v3441 = vadd.f32 %v3409, -1.4531521
        %v3442 = vadd.f32 %v3410, -1.4531521
        %v3443 = vadd.f32 %v3411, -1.4531521
        %v3444 = vadd.f32 %v3412, -1.4531521
        %v3445 = vadd.f32 %v3413, -1.4531521
        %v3446 = vadd.f32 %v3414, -1.4531521
        %v3447 = vadd.f32 %v3415, -1.4531521
        %v3448 = vadd.f32 %v3416, -1.4531521
        %v3449 = vadd.f32 %v3417, -1.4531521
        %v3450 = vadd.f32 %v3418, -1.4531521
        %v3451 = vadd.f32 %v3419, -1.4531521
        %v3452 = vadd.f32 %v3420, -1.4531521
        %v3453 = vadd.f32 %v3421, -1.4531521
        %v3454 = vadd.f32 %v3422, -1.4531521
        %v3455 = vadd.f32 %v3423, -1.4531521
        %v3456 = vadd.f32 %v3424, -1.4531521
        %v3457 = vadd.f32 %v3425, -1.4531521
        %v3458 = vadd.f32 %v3426, -1.4531521
        %v3459 = vadd.f32 %v3427, -1.4531521
        %v3460 = vadd.f32 %v3428, -1.4531521
        %v3461 = vadd.f32 %v3429, -1.4531521
        %v3462 = vadd.f32 %v3430, -1.4531521
        %v3463 = vadd.f32 %v3431, -1.4531521
        %v3464 = vadd.f32 %v3432, -1.4531521
        %v3465 = vadd.f32 %v3433, -1.4531521
        %v3466 = vadd.f32 %v3434, -1.4531521
        %v3467 = vadd.f32 %v3435, -1.4531521
        %v3468 = vadd.f32 %v3436, -1.4531521
        %v3469 = vadd.f32 %v3437, -1.4531521
        %v3470 = vadd.f32 %v3438, -1.4531521
        %v3471 = vadd.f32 %v3439, -1.4531521
        %v3472 = vmul.f32 %v2942, %v3440
        %v3473 = vmul.f32 %v2957, %v3441
        %v3474 = vmul.f32 %v2972, %v3442
        %v3475 = vmul.f32 %v2987, %v3443
        %v3476 = vmul.f32 %v3002, %v3444
        %v3477 = vmul.f32 %v3017, %v3445
        %v3478 = vmul.f32 %v3032, %v3446
        %v3479 = vmul.f32 %v3047, %v3447
        %v3480 = vmul.f32 %v3062, %v3448
        %v3481 = vmul.f32 %v3077, %v3449
        %v3482 = vmul.f32 %v3092, %v3450
        %v3483 = vmul.f32 %v3107, %v3451
        %v3484 = vmul.f32 %v3122, %v3452
        %v3485 = vmul.f32 %v3137, %v3453
        %v3486 = vmul.f32 %v3152, %v3454
        %v3487 = vmul.f32 %v3167, %v3455
        %v3488 = vmul.f32 %v3182, %v3456
        %v3489 = vmul.f32 %v3197, %v3457
        %v3490 = vmul.f32 %v3212, %v3458
        %v3491 = vmul.f32 %v3227, %v3459
        %v3492 = vmul.f32 %v3242, %v3460
        %v3493 = vmul.f32 %v3257, %v3461
        %v3494 = vmul.f32 %v3272, %v3462
        %v3495 = vmul.f32 %v3287, %v3463
        %v3496 = vmul.f32 %v3302, %v3464
        %v3497 = vmul.f32 %v3317, %v3465
        %v3498 = vmul.f32 %v3332, %v3466
        %v3499 = vmul.f32 %v3347, %v3467
        %v3500 = vmul.f32 %v3362, %v3468
        %v3501 = vmul.f32 %v3377, %v3469
        %v3502 = vmul.f32 %v3392, %v3470
        %v3503 = vmul.f32 %v3407, %v3471
        %v3504 = vadd.f32 %v3472, 1.4214138
        %v3505 = vadd.f32 %v3473, 1.4214138
        %v3506 = vadd.f32 %v3474, 1.4214138
        %v3507 = vadd.f32 %v3475, 1.4214138
        %v3508 = vadd.f32 %v3476, 1.4214138
        %v3509 = vadd.f32 %v3477, 1.4214138
        %v3510 = vadd.f32 %v3478, 1.4214138
        %v3511 = vadd.f32 %v3479, 1.4214138
        %v3512 = vadd.f32 %v3480, 1.4214138
        %v3513 = vadd.f32 %v3481, 1.4214138
        %v3514 = vadd.f32 %v3482, 1.4214138
        %v3515 = vadd.f32 %v3483, 1.4214138
        %v3516 = vadd.f32 %v3484, 1.4214138
        %v3517 = vadd.f32 %v3485, 1.4214138
        %v3518 = vadd.f32 %v3486, 1.4214138
        %v3519 = vadd.f32 %v3487, 1.4214138
        %v3520 = vadd.f32 %v3488, 1.4214138
        %v3521 = vadd.f32 %v3489, 1.4214138
        %v3522 = vadd.f32 %v3490, 1.4214138
        %v3523 = vadd.f32 %v3491, 1.4214138
        %v3524 = vadd.f32 %v3492, 1.4214138
        %v3525 = vadd.f32 %v3493, 1.4214138
        %v3526 = vadd.f32 %v3494, 1.4214138
        %v3527 = vadd.f32 %v3495, 1.4214138
        %v3528 = vadd.f32 %v3496, 1.4214138
        %v3529 = vadd.f32 %v3497, 1.4214138
        %v3530 = vadd.f32 %v3498, 1.4214138
        %v3531 = vadd.f32 %v3499, 1.4214138
        %v3532 = vadd.f32 %v3500, 1.4214138
        %v3533 = vadd.f32 %v3501, 1.4214138
        %v3534 = vadd.f32 %v3502, 1.4214138
        %v3535 = vadd.f32 %v3503, 1.4214138
        %v3536 = vmul.f32 %v2942, %v3504
        %v3537 = vmul.f32 %v2957, %v3505
        %v3538 = vmul.f32 %v2972, %v3506
        %v3539 = vmul.f32 %v2987, %v3507
        %v3540 = vmul.f32 %v3002, %v3508
        %v3541 = vmul.f32 %v3017, %v3509
        %v3542 = vmul.f32 %v3032, %v3510
        %v3543 = vmul.f32 %v3047, %v3511
        %v3544 = vmul.f32 %v3062, %v3512
        %v3545 = vmul.f32 %v3077, %v3513
        %v3546 = vmul.f32 %v3092, %v3514
        %v3547 = vmul.f32 %v3107, %v3515
        %v3548 = vmul.f32 %v3122, %v3516
        %v3549 = vmul.f32 %v3137, %v3517
        %v3550 = vmul.f32 %v3152, %v3518
        %v3551 = vmul.f32 %v3167, %v3519
        %v3552 = vmul.f32 %v3182, %v3520
        %v3553 = vmul.f32 %v3197, %v3521
        %v3554 = vmul.f32 %v3212, %v3522
        %v3555 = vmul.f32 %v3227, %v3523
        %v3556 = vmul.f32 %v3242, %v3524
        %v3557 = vmul.f32 %v3257, %v3525
        %v3558 = vmul.f32 %v3272, %v3526
        %v3559 = vmul.f32 %v3287, %v3527
        %v3560 = vmul.f32 %v3302, %v3528
        %v3561 = vmul.f32 %v3317, %v3529
        %v3562 = vmul.f32 %v3332, %v3530
        %v3563 = vmul.f32 %v3347, %v3531
        %v3564 = vmul.f32 %v3362, %v3532
        %v3565 = vmul.f32 %v3377, %v3533
        %v3566 = vmul.f32 %v3392, %v3534
        %v3567 = vmul.f32 %v3407, %v3535
        %v3568 = vadd.f32 %v3536, -0.28449672
        %v3569 = vadd.f32 %v3537, -0.28449672
        %v3570 = vadd.f32 %v3538, -0.28449672
        %v3571 = vadd.f32 %v3539, -0.28449672
        %v3572 = vadd.f32 %v3540, -0.28449672
        %v3573 = vadd.f32 %v3541, -0.28449672
        %v3574 = vadd.f32 %v3542, -0.28449672
        %v3575 = vadd.f32 %v3543, -0.28449672
        %v3576 = vadd.f32 %v3544, -0.28449672
        %v3577 = vadd.f32 %v3545, -0.28449672
        %v3578 = vadd.f32 %v3546, -0.28449672
        %v3579 = vadd.f32 %v3547, -0.28449672
        %v3580 = vadd.f32 %v3548, -0.28449672
        %v3581 = vadd.f32 %v3549, -0.28449672
        %v3582 = vadd.f32 %v3550, -0.28449672
        %v3583 = vadd.f32 %v3551, -0.28449672
        %v3584 = vadd.f32 %v3552, -0.28449672
        %v3585 = vadd.f32 %v3553, -0.28449672
        %v3586 = vadd.f32 %v3554, -0.28449672
        %v3587 = vadd.f32 %v3555, -0.28449672
        %v3588 = vadd.f32 %v3556, -0.28449672
        %v3589 = vadd.f32 %v3557, -0.28449672
        %v3590 = vadd.f32 %v3558, -0.28449672
        %v3591 = vadd.f32 %v3559, -0.28449672
        %v3592 = vadd.f32 %v3560, -0.28449672
        %v3593 = vadd.f32 %v3561, -0.28449672
        %v3594 = vadd.f32 %v3562, -0.28449672
        %v3595 = vadd.f32 %v3563, -0.28449672
        %v3596 = vadd.f32 %v3564, -0.28449672
        %v3597 = vadd.f32 %v3565, -0.28449672
        %v3598 = vadd.f32 %v3566, -0.28449672
        %v3599 = vadd.f32 %v3567, -0.28449672
        %v3600 = vmul.f32 %v2942, %v3568
        %v3601 = vmul.f32 %v2957, %v3569
        %v3602 = vmul.f32 %v2972, %v3570
        %v3603 = vmul.f32 %v2987, %v3571
        %v3604 = vmul.f32 %v3002, %v3572
        %v3605 = vmul.f32 %v3017, %v3573
        %v3606 = vmul.f32 %v3032, %v3574
        %v3607 = vmul.f32 %v3047, %v3575
        %v3608 = vmul.f32 %v3062, %v3576
        %v3609 = vmul.f32 %v3077, %v3577
        %v3610 = vmul.f32 %v3092, %v3578
        %v3611 = vmul.f32 %v3107, %v3579
        %v3612 = vmul.f32 %v3122, %v3580
        %v3613 = vmul.f32 %v3137, %v3581
        %v3614 = vmul.f32 %v3152, %v3582
        %v3615 = vmul.f32 %v3167, %v3583
        %v3616 = vmul.f32 %v3182, %v3584
        %v3617 = vmul.f32 %v3197, %v3585
        %v3618 = vmul.f32 %v3212, %v3586
        %v3619 = vmul.f32 %v3227, %v3587
        %v3620 = vmul.f32 %v3242, %v3588
        %v3621 = vmul.f32 %v3257, %v3589
        %v3622 = vmul.f32 %v3272, %v3590
        %v3623 = vmul.f32 %v3287, %v3591
        %v3624 = vmul.f32 %v3302, %v3592
        %v3625 = vmul.f32 %v3317, %v3593
        %v3626 = vmul.f32 %v3332, %v3594
        %v3627 = vmul.f32 %v3347, %v3595
        %v3628 = vmul.f32 %v3362, %v3596
        %v3629 = vmul.f32 %v3377, %v3597
        %v3630 = vmul.f32 %v3392, %v3598
        %v3631 = vmul.f32 %v3407, %v3599
        %v3632 = vadd.f32 %v3600, 0.2548296
        %v3633 = vadd.f32 %v3601, 0.2548296
        %v3634 = vadd.f32 %v3602, 0.2548296
        %v3635 = vadd.f32 %v3603, 0.2548296
        %v3636 = vadd.f32 %v3604, 0.2548296
        %v3637 = vadd.f32 %v3605, 0.2548296
        %v3638 = vadd.f32 %v3606, 0.2548296
        %v3639 = vadd.f32 %v3607, 0.2548296
        %v3640 = vadd.f32 %v3608, 0.2548296
        %v3641 = vadd.f32 %v3609, 0.2548296
        %v3642 = vadd.f32 %v3610, 0.2548296
        %v3643 = vadd.f32 %v3611, 0.2548296
        %v3644 = vadd.f32 %v3612, 0.2548296
        %v3645 = vadd.f32 %v3613, 0.2548296
        %v3646 = vadd.f32 %v3614, 0.2548296
        %v3647 = vadd.f32 %v3615, 0.2548296
        %v3648 = vadd.f32 %v3616, 0.2548296
        %v3649 = vadd.f32 %v3617, 0.2548296
        %v3650 = vadd.f32 %v3618, 0.2548296
        %v3651 = vadd.f32 %v3619, 0.2548296
        %v3652 = vadd.f32 %v3620, 0.2548296
        %v3653 = vadd.f32 %v3621, 0.2548296
        %v3654 = vadd.f32 %v3622, 0.2548296
        %v3655 = vadd.f32 %v3623, 0.2548296
        %v3656 = vadd.f32 %v3624, 0.2548296
        %v3657 = vadd.f32 %v3625, 0.2548296
        %v3658 = vadd.f32 %v3626, 0.2548296
        %v3659 = vadd.f32 %v3627, 0.2548296
        %v3660 = vadd.f32 %v3628, 0.2548296
        %v3661 = vadd.f32 %v3629, 0.2548296
        %v3662 = vadd.f32 %v3630, 0.2548296
        %v3663 = vadd.f32 %v3631, 0.2548296
        %v3664 = vmul.f32 %v2942, %v3632
        %v3665 = vmul.f32 %v2957, %v3633
        %v3666 = vmul.f32 %v2972, %v3634
        %v3667 = vmul.f32 %v2987, %v3635
        %v3668 = vmul.f32 %v3002, %v3636
        %v3669 = vmul.f32 %v3017, %v3637
        %v3670 = vmul.f32 %v3032, %v3638
        %v3671 = vmul.f32 %v3047, %v3639
        %v3672 = vmul.f32 %v3062, %v3640
        %v3673 = vmul.f32 %v3077, %v3641
        %v3674 = vmul.f32 %v3092, %v3642
        %v3675 = vmul.f32 %v3107, %v3643
        %v3676 = vmul.f32 %v3122, %v3644
        %v3677 = vmul.f32 %v3137, %v3645
        %v3678 = vmul.f32 %v3152, %v3646
        %v3679 = vmul.f32 %v3167, %v3647
        %v3680 = vmul.f32 %v3182, %v3648
        %v3681 = vmul.f32 %v3197, %v3649
        %v3682 = vmul.f32 %v3212, %v3650
        %v3683 = vmul.f32 %v3227, %v3651
        %v3684 = vmul.f32 %v3242, %v3652
        %v3685 = vmul.f32 %v3257, %v3653
        %v3686 = vmul.f32 %v3272, %v3654
        %v3687 = vmul.f32 %v3287, %v3655
        %v3688 = vmul.f32 %v3302, %v3656
        %v3689 = vmul.f32 %v3317, %v3657
        %v3690 = vmul.f32 %v3332, %v3658
        %v3691 = vmul.f32 %v3347, %v3659
        %v3692 = vmul.f32 %v3362, %v3660
        %v3693 = vmul.f32 %v3377, %v3661
        %v3694 = vmul.f32 %v3392, %v3662
        %v3695 = vmul.f32 %v3407, %v3663
        %v3696 = vsub.f32 0.0, %v2832
        %v3697 = vsub.f32 0.0, %v2833
        %v3698 = vsub.f32 0.0, %v2834
        %v3699 = vsub.f32 0.0, %v2835
        %v3700 = vsub.f32 0.0, %v2836
        %v3701 = vsub.f32 0.0, %v2837
        %v3702 = vsub.f32 0.0, %v2838
        %v3703 = vsub.f32 0.0, %v2839
        %v3704 = vsub.f32 0.0, %v2840
        %v3705 = vsub.f32 0.0, %v2841
        %v3706 = vsub.f32 0.0, %v2842
        %v3707 = vsub.f32 0.0, %v2843
        %v3708 = vsub.f32 0.0, %v2844
        %v3709 = vsub.f32 0.0, %v2845
        %v3710 = vsub.f32 0.0, %v2846
        %v3711 = vsub.f32 0.0, %v2847
        %v3712 = vsub.f32 0.0, %v2848
        %v3713 = vsub.f32 0.0, %v2849
        %v3714 = vsub.f32 0.0, %v2850
        %v3715 = vsub.f32 0.0, %v2851
        %v3716 = vsub.f32 0.0, %v2852
        %v3717 = vsub.f32 0.0, %v2853
        %v3718 = vsub.f32 0.0, %v2854
        %v3719 = vsub.f32 0.0, %v2855
        %v3720 = vsub.f32 0.0, %v2856
        %v3721 = vsub.f32 0.0, %v2857
        %v3722 = vsub.f32 0.0, %v2858
        %v3723 = vsub.f32 0.0, %v2859
        %v3724 = vsub.f32 0.0, %v2860
        %v3725 = vsub.f32 0.0, %v2861
        %v3726 = vsub.f32 0.0, %v2862
        %v3727 = vsub.f32 0.0, %v2863
        %v3728 = vmul.f32 %v3696, %v2832
        %v3729 = vmul.f32 %v3697, %v2833
        %v3730 = vmul.f32 %v3698, %v2834
        %v3731 = vmul.f32 %v3699, %v2835
        %v3732 = vmul.f32 %v3700, %v2836
        %v3733 = vmul.f32 %v3701, %v2837
        %v3734 = vmul.f32 %v3702, %v2838
        %v3735 = vmul.f32 %v3703, %v2839
        %v3736 = vmul.f32 %v3704, %v2840
        %v3737 = vmul.f32 %v3705, %v2841
        %v3738 = vmul.f32 %v3706, %v2842
        %v3739 = vmul.f32 %v3707, %v2843
        %v3740 = vmul.f32 %v3708, %v2844
        %v3741 = vmul.f32 %v3709, %v2845
        %v3742 = vmul.f32 %v3710, %v2846
        %v3743 = vmul.f32 %v3711, %v2847
        %v3744 = vmul.f32 %v3712, %v2848
        %v3745 = vmul.f32 %v3713, %v2849
        %v3746 = vmul.f32 %v3714, %v2850
        %v3747 = vmul.f32 %v3715, %v2851
        %v3748 = vmul.f32 %v3716, %v2852
        %v3749 = vmul.f32 %v3717, %v2853
        %v3750 = vmul.f32 %v3718, %v2854
        %v3751 = vmul.f32 %v3719, %v2855
        %v3752 = vmul.f32 %v3720, %v2856
        %v3753 = vmul.f32 %v3721, %v2857
        %v3754 = vmul.f32 %v3722, %v2858
        %v3755 = vmul.f32 %v3723, %v2859
        %v3756 = vmul.f32 %v3724, %v2860
        %v3757 = vmul.f32 %v3725, %v2861
        %v3758 = vmul.f32 %v3726, %v2862
        %v3759 = vmul.f32 %v3727, %v2863
        %v3760 = vmul.f32 %v3728, 1.442695
        %v3761 = vpow.pop %v3760
        %v3762 = vmul.f32 %v3729, 1.442695
        %v3763 = vpow.pop %v3762
        %v3764 = vmul.f32 %v3730, 1.442695
        %v3765 = vpow.pop %v3764
        %v3766 = vmul.f32 %v3731, 1.442695
        %v3767 = vpow.pop %v3766
        %v3768 = vmul.f32 %v3732, 1.442695
        %v3769 = vpow.pop %v3768
        %v3770 = vmul.f32 %v3733, 1.442695
        %v3771 = vpow.pop %v3770
        %v3772 = vmul.f32 %v3734, 1.442695
        %v3773 = vpow.pop %v3772
        %v3774 = vmul.f32 %v3735, 1.442695
        %v3775 = vpow.pop %v3774
        %v3776 = vmul.f32 %v3736, 1.442695
        %v3777 = vpow.pop %v3776
        %v3778 = vmul.f32 %v3737, 1.442695
        %v3779 = vpow.pop %v3778
        %v3780 = vmul.f32 %v3738, 1.442695
        %v3781 = vpow.pop %v3780
        %v3782 = vmul.f32 %v3739, 1.442695
        %v3783 = vpow.pop %v3782
        %v3784 = vmul.f32 %v3740, 1.442695
        %v3785 = vpow.pop %v3784
        %v3786 = vmul.f32 %v3741, 1.442695
        %v3787 = vpow.pop %v3786
        %v3788 = vmul.f32 %v3742, 1.442695
        %v3789 = vpow.pop %v3788
        %v3790 = vmul.f32 %v3743, 1.442695
        %v3791 = vpow.pop %v3790
        %v3792 = vmul.f32 %v3744, 1.442695
        %v3793 = vpow.pop %v3792
        %v3794 = vmul.f32 %v3745, 1.442695
        %v3795 = vpow.pop %v3794
        %v3796 = vmul.f32 %v3746, 1.442695
        %v3797 = vpow.pop %v3796
        %v3798 = vmul.f32 %v3747, 1.442695
        %v3799 = vpow.pop %v3798
        %v3800 = vmul.f32 %v3748, 1.442695
        %v3801 = vpow.pop %v3800
        %v3802 = vmul.f32 %v3749, 1.442695
        %v3803 = vpow.pop %v3802
        %v3804 = vmul.f32 %v3750, 1.442695
        %v3805 = vpow.pop %v3804
        %v3806 = vmul.f32 %v3751, 1.442695
        %v3807 = vpow.pop %v3806
        %v3808 = vmul.f32 %v3752, 1.442695
        %v3809 = vpow.pop %v3808
        %v3810 = vmul.f32 %v3753, 1.442695
        %v3811 = vpow.pop %v3810
        %v3812 = vmul.f32 %v3754, 1.442695
        %v3813 = vpow.pop %v3812
        %v3814 = vmul.f32 %v3755, 1.442695
        %v3815 = vpow.pop %v3814
        %v3816 = vmul.f32 %v3756, 1.442695
        %v3817 = vpow.pop %v3816
        %v3818 = vmul.f32 %v3757, 1.442695
        %v3819 = vpow.pop %v3818
        %v3820 = vmul.f32 %v3758, 1.442695
        %v3821 = vpow.pop %v3820
        %v3822 = vmul.f32 %v3759, 1.442695
        %v3823 = vpow.pop %v3822
        %v3824 = vmul.f32 %v3664, %v3761
        %v3825 = vmul.f32 %v3665, %v3763
        %v3826 = vmul.f32 %v3666, %v3765
        %v3827 = vmul.f32 %v3667, %v3767
        %v3828 = vmul.f32 %v3668, %v3769
        %v3829 = vmul.f32 %v3669, %v3771
        %v3830 = vmul.f32 %v3670, %v3773
        %v3831 = vmul.f32 %v3671, %v3775
        %v3832 = vmul.f32 %v3672, %v3777
        %v3833 = vmul.f32 %v3673, %v3779
        %v3834 = vmul.f32 %v3674, %v3781
        %v3835 = vmul.f32 %v3675, %v3783
        %v3836 = vmul.f32 %v3676, %v3785
        %v3837 = vmul.f32 %v3677, %v3787
        %v3838 = vmul.f32 %v3678, %v3789
        %v3839 = vmul.f32 %v3679, %v3791
        %v3840 = vmul.f32 %v3680, %v3793
        %v3841 = vmul.f32 %v3681, %v3795
        %v3842 = vmul.f32 %v3682, %v3797
        %v3843 = vmul.f32 %v3683, %v3799
        %v3844 = vmul.f32 %v3684, %v3801
        %v3845 = vmul.f32 %v3685, %v3803
        %v3846 = vmul.f32 %v3686, %v3805
        %v3847 = vmul.f32 %v3687, %v3807
        %v3848 = vmul.f32 %v3688, %v3809
        %v3849 = vmul.f32 %v3689, %v3811
        %v3850 = vmul.f32 %v3690, %v3813
        %v3851 = vmul.f32 %v3691, %v3815
        %v3852 = vmul.f32 %v3692, %v3817
        %v3853 = vmul.f32 %v3693, %v3819
        %v3854 = vmul.f32 %v3694, %v3821
        %v3855 = vmul.f32 %v3695, %v3823
        %v3856 = vsub.f32 1.0, %v3824
        %v3857 = vsub.f32 1.0, %v3825
        %v3858 = vsub.f32 1.0, %v3826
        %v3859 = vsub.f32 1.0, %v3827
        %v3860 = vsub.f32 1.0, %v3828
        %v3861 = vsub.f32 1.0, %v3829
        %v3862 = vsub.f32 1.0, %v3830
        %v3863 = vsub.f32 1.0, %v3831
        %v3864 = vsub.f32 1.0, %v3832
        %v3865 = vsub.f32 1.0, %v3833
        %v3866 = vsub.f32 1.0, %v3834
        %v3867 = vsub.f32 1.0, %v3835
        %v3868 = vsub.f32 1.0, %v3836
        %v3869 = vsub.f32 1.0, %v3837
        %v3870 = vsub.f32 1.0, %v3838
        %v3871 = vsub.f32 1.0, %v3839
        %v3872 = vsub.f32 1.0, %v3840
        %v3873 = vsub.f32 1.0, %v3841
        %v3874 = vsub.f32 1.0, %v3842
        %v3875 = vsub.f32 1.0, %v3843
        %v3876 = vsub.f32 1.0, %v3844
        %v3877 = vsub.f32 1.0, %v3845
        %v3878 = vsub.f32 1.0, %v3846
        %v3879 = vsub.f32 1.0, %v3847
        %v3880 = vsub.f32 1.0, %v3848
        %v3881 = vsub.f32 1.0, %v3849
        %v3882 = vsub.f32 1.0, %v3850
        %v3883 = vsub.f32 1.0, %v3851
        %v3884 = vsub.f32 1.0, %v3852
        %v3885 = vsub.f32 1.0, %v3853
        %v3886 = vsub.f32 1.0, %v3854
        %v3887 = vsub.f32 1.0, %v3855
        %vm3888 = vcmp.ge.f32.partialorder %v2800, 0.0
        %vm3889 = vcmp.ge.f32.partialorder %v2801, 0.0
        %vm3890 = vcmp.ge.f32.partialorder %v2802, 0.0
        %vm3891 = vcmp.ge.f32.partialorder %v2803, 0.0
        %vm3892 = vcmp.ge.f32.partialorder %v2804, 0.0
        %vm3893 = vcmp.ge.f32.partialorder %v2805, 0.0
        %vm3894 = vcmp.ge.f32.partialorder %v2806, 0.0
        %vm3895 = vcmp.ge.f32.partialorder %v2807, 0.0
        %vm3896 = vcmp.ge.f32.partialorder %v2808, 0.0
        %vm3897 = vcmp.ge.f32.partialorder %v2809, 0.0
        %vm3898 = vcmp.ge.f32.partialorder %v2810, 0.0
        %vm3899 = vcmp.ge.f32.partialorder %v2811, 0.0
        %vm3900 = vcmp.ge.f32.partialorder %v2812, 0.0
        %vm3901 = vcmp.ge.f32.partialorder %v2813, 0.0
        %vm3902 = vcmp.ge.f32.partialorder %v2814, 0.0
        %vm3903 = vcmp.ge.f32.partialorder %v2815, 0.0
        %vm3904 = vcmp.ge.f32.partialorder %v2816, 0.0
        %vm3905 = vcmp.ge.f32.partialorder %v2817, 0.0
        %vm3906 = vcmp.ge.f32.partialorder %v2818, 0.0
        %vm3907 = vcmp.ge.f32.partialorder %v2819, 0.0
        %vm3908 = vcmp.ge.f32.partialorder %v2820, 0.0
        %vm3909 = vcmp.ge.f32.partialorder %v2821, 0.0
        %vm3910 = vcmp.ge.f32.partialorder %v2822, 0.0
        %vm3911 = vcmp.ge.f32.partialorder %v2823, 0.0
        %vm3912 = vcmp.ge.f32.partialorder %v2824, 0.0
        %vm3913 = vcmp.ge.f32.partialorder %v2825, 0.0
        %vm3914 = vcmp.ge.f32.partialorder %v2826, 0.0
        %vm3915 = vcmp.ge.f32.partialorder %v2827, 0.0
        %vm3916 = vcmp.ge.f32.partialorder %v2828, 0.0
        %vm3917 = vcmp.ge.f32.partialorder %v2829, 0.0
        %vm3918 = vcmp.ge.f32.partialorder %v2830, 0.0
        %vm3919 = vcmp.ge.f32.partialorder %v2831, 0.0
        %v3920 = vsub.f32 0.0, %v3856
        %v3921 = vsub.f32 0.0, %v3857
        %v3922 = vsub.f32 0.0, %v3858
        %v3923 = vsub.f32 0.0, %v3859
        %v3924 = vsub.f32 0.0, %v3860
        %v3925 = vsub.f32 0.0, %v3861
        %v3926 = vsub.f32 0.0, %v3862
        %v3927 = vsub.f32 0.0, %v3863
        %v3928 = vsub.f32 0.0, %v3864
        %v3929 = vsub.f32 0.0, %v3865
        %v3930 = vsub.f32 0.0, %v3866
        %v3931 = vsub.f32 0.0, %v3867
        %v3932 = vsub.f32 0.0, %v3868
        %v3933 = vsub.f32 0.0, %v3869
        %v3934 = vsub.f32 0.0, %v3870
        %v3935 = vsub.f32 0.0, %v3871
        %v3936 = vsub.f32 0.0, %v3872
        %v3937 = vsub.f32 0.0, %v3873
        %v3938 = vsub.f32 0.0, %v3874
        %v3939 = vsub.f32 0.0, %v3875
        %v3940 = vsub.f32 0.0, %v3876
        %v3941 = vsub.f32 0.0, %v3877
        %v3942 = vsub.f32 0.0, %v3878
        %v3943 = vsub.f32 0.0, %v3879
        %v3944 = vsub.f32 0.0, %v3880
        %v3945 = vsub.f32 0.0, %v3881
        %v3946 = vsub.f32 0.0, %v3882
        %v3947 = vsub.f32 0.0, %v3883
        %v3948 = vsub.f32 0.0, %v3884
        %v3949 = vsub.f32 0.0, %v3885
        %v3950 = vsub.f32 0.0, %v3886
        %v3951 = vsub.f32 0.0, %v3887
        %v3952 = vsel %vm3888, %v3856, %v3920
        %v3953 = vsel %vm3889, %v3857, %v3921
        %v3954 = vsel %vm3890, %v3858, %v3922
        %v3955 = vsel %vm3891, %v3859, %v3923
        %v3956 = vsel %vm3892, %v3860, %v3924
        %v3957 = vsel %vm3893, %v3861, %v3925
        %v3958 = vsel %vm3894, %v3862, %v3926
        %v3959 = vsel %vm3895, %v3863, %v3927
        %v3960 = vsel %vm3896, %v3864, %v3928
        %v3961 = vsel %vm3897, %v3865, %v3929
        %v3962 = vsel %vm3898, %v3866, %v3930
        %v3963 = vsel %vm3899, %v3867, %v3931
        %v3964 = vsel %vm3900, %v3868, %v3932
        %v3965 = vsel %vm3901, %v3869, %v3933
        %v3966 = vsel %vm3902, %v3870, %v3934
        %v3967 = vsel %vm3903, %v3871, %v3935
        %v3968 = vsel %vm3904, %v3872, %v3936
        %v3969 = vsel %vm3905, %v3873, %v3937
        %v3970 = vsel %vm3906, %v3874, %v3938
        %v3971 = vsel %vm3907, %v3875, %v3939
        %v3972 = vsel %vm3908, %v3876, %v3940
        %v3973 = vsel %vm3909, %v3877, %v3941
        %v3974 = vsel %vm3910, %v3878, %v3942
        %v3975 = vsel %vm3911, %v3879, %v3943
        %v3976 = vsel %vm3912, %v3880, %v3944
        %v3977 = vsel %vm3913, %v3881, %v3945
        %v3978 = vsel %vm3914, %v3882, %v3946
        %v3979 = vsel %vm3915, %v3883, %v3947
        %v3980 = vsel %vm3916, %v3884, %v3948
        %v3981 = vsel %vm3917, %v3885, %v3949
        %v3982 = vsel %vm3918, %v3886, %v3950
        %v3983 = vsel %vm3919, %v3887, %v3951
        %v3984 = vmul.f32 %v2768, 0.5
        %v3985 = vmul.f32 %v2769, 0.5
        %v3986 = vmul.f32 %v2770, 0.5
        %v3987 = vmul.f32 %v2771, 0.5
        %v3988 = vmul.f32 %v2772, 0.5
        %v3989 = vmul.f32 %v2773, 0.5
        %v3990 = vmul.f32 %v2774, 0.5
        %v3991 = vmul.f32 %v2775, 0.5
        %v3992 = vmul.f32 %v2776, 0.5
        %v3993 = vmul.f32 %v2777, 0.5
        %v3994 = vmul.f32 %v2778, 0.5
        %v3995 = vmul.f32 %v2779, 0.5
        %v3996 = vmul.f32 %v2780, 0.5
        %v3997 = vmul.f32 %v2781, 0.5
        %v3998 = vmul.f32 %v2782, 0.5
        %v3999 = vmul.f32 %v2783, 0.5
        %v4000 = vmul.f32 %v2784, 0.5
        %v4001 = vmul.f32 %v2785, 0.5
        %v4002 = vmul.f32 %v2786, 0.5
        %v4003 = vmul.f32 %v2787, 0.5
        %v4004 = vmul.f32 %v2788, 0.5
        %v4005 = vmul.f32 %v2789, 0.5
        %v4006 = vmul.f32 %v2790, 0.5
        %v4007 = vmul.f32 %v2791, 0.5
        %v4008 = vmul.f32 %v2792, 0.5
        %v4009 = vmul.f32 %v2793, 0.5
        %v4010 = vmul.f32 %v2794, 0.5
        %v4011 = vmul.f32 %v2795, 0.5
        %v4012 = vmul.f32 %v2796, 0.5
        %v4013 = vmul.f32 %v2797, 0.5
        %v4014 = vmul.f32 %v2798, 0.5
        %v4015 = vmul.f32 %v2799, 0.5
        %v4016 = vadd.f32 %v3952, 1.0
        %v4017 = vadd.f32 %v3953, 1.0
        %v4018 = vadd.f32 %v3954, 1.0
        %v4019 = vadd.f32 %v3955, 1.0
        %v4020 = vadd.f32 %v3956, 1.0
        %v4021 = vadd.f32 %v3957, 1.0
        %v4022 = vadd.f32 %v3958, 1.0
        %v4023 = vadd.f32 %v3959, 1.0
        %v4024 = vadd.f32 %v3960, 1.0
        %v4025 = vadd.f32 %v3961, 1.0
        %v4026 = vadd.f32 %v3962, 1.0
        %v4027 = vadd.f32 %v3963, 1.0
        %v4028 = vadd.f32 %v3964, 1.0
        %v4029 = vadd.f32 %v3965, 1.0
        %v4030 = vadd.f32 %v3966, 1.0
        %v4031 = vadd.f32 %v3967, 1.0
        %v4032 = vadd.f32 %v3968, 1.0
        %v4033 = vadd.f32 %v3969, 1.0
        %v4034 = vadd.f32 %v3970, 1.0
        %v4035 = vadd.f32 %v3971, 1.0
        %v4036 = vadd.f32 %v3972, 1.0
        %v4037 = vadd.f32 %v3973, 1.0
        %v4038 = vadd.f32 %v3974, 1.0
        %v4039 = vadd.f32 %v3975, 1.0
        %v4040 = vadd.f32 %v3976, 1.0
        %v4041 = vadd.f32 %v3977, 1.0
        %v4042 = vadd.f32 %v3978, 1.0
        %v4043 = vadd.f32 %v3979, 1.0
        %v4044 = vadd.f32 %v3980, 1.0
        %v4045 = vadd.f32 %v3981, 1.0
        %v4046 = vadd.f32 %v3982, 1.0
        %v4047 = vadd.f32 %v3983, 1.0
        %v4048 = vmul.f32 %v3984, %v4016
        %v4049 = vmul.f32 %v3985, %v4017
        %v4050 = vmul.f32 %v3986, %v4018
        %v4051 = vmul.f32 %v3987, %v4019
        %v4052 = vmul.f32 %v3988, %v4020
        %v4053 = vmul.f32 %v3989, %v4021
        %v4054 = vmul.f32 %v3990, %v4022
        %v4055 = vmul.f32 %v3991, %v4023
        %v4056 = vmul.f32 %v3992, %v4024
        %v4057 = vmul.f32 %v3993, %v4025
        %v4058 = vmul.f32 %v3994, %v4026
        %v4059 = vmul.f32 %v3995, %v4027
        %v4060 = vmul.f32 %v3996, %v4028
        %v4061 = vmul.f32 %v3997, %v4029
        %v4062 = vmul.f32 %v3998, %v4030
        %v4063 = vmul.f32 %v3999, %v4031
        %v4064 = vmul.f32 %v4000, %v4032
        %v4065 = vmul.f32 %v4001, %v4033
        %v4066 = vmul.f32 %v4002, %v4034
        %v4067 = vmul.f32 %v4003, %v4035
        %v4068 = vmul.f32 %v4004, %v4036
        %v4069 = vmul.f32 %v4005, %v4037
        %v4070 = vmul.f32 %v4006, %v4038
        %v4071 = vmul.f32 %v4007, %v4039
        %v4072 = vmul.f32 %v4008, %v4040
        %v4073 = vmul.f32 %v4009, %v4041
        %v4074 = vmul.f32 %v4010, %v4042
        %v4075 = vmul.f32 %v4011, %v4043
        %v4076 = vmul.f32 %v4012, %v4044
        %v4077 = vmul.f32 %v4013, %v4045
        %v4078 = vmul.f32 %v4014, %v4046
        %v4079 = vmul.f32 %v4015, %v4047
        %vm4080 = vcmask 261120
        %4081 = vst.msk [vmem:[%s201] sm:$0xff] %vm4080, %v4048
        %4082 = vst.msk [vmem:[%s201 + $0x8] sm:$0xff] %vm4080, %v4049
        %4083 = vst.msk [vmem:[%s201 + $0x10] sm:$0xff] %vm4080, %v4050
        %4084 = vst.msk [vmem:[%s201 + $0x18] sm:$0xff] %vm4080, %v4051
        %4085 = vst.msk [vmem:[%s201 + $0x20] sm:$0xff] %vm4080, %v4052
        %4086 = vst.msk [vmem:[%s201 + $0x28] sm:$0xff] %vm4080, %v4053
        %4087 = vst.msk [vmem:[%s201 + $0x30] sm:$0xff] %vm4080, %v4054
        %4088 = vst.msk [vmem:[%s201 + $0x38] sm:$0xff] %vm4080, %v4055
        %4089 = vst.msk [vmem:[%s201 + $0x40] sm:$0xff] %vm4080, %v4056
        %4090 = vst.msk [vmem:[%s201 + $0x48] sm:$0xff] %vm4080, %v4057
        %4091 = vst.msk [vmem:[%s201 + $0x50] sm:$0xff] %vm4080, %v4058
        %4092 = vst.msk [vmem:[%s201 + $0x58] sm:$0xff] %vm4080, %v4059
        %4093 = vst.msk [vmem:[%s201 + $0x60] sm:$0xff] %vm4080, %v4060
        %4094 = vst.msk [vmem:[%s201 + $0x68] sm:$0xff] %vm4080, %v4061
        %4095 = vst.msk [vmem:[%s201 + $0x70] sm:$0xff] %vm4080, %v4062
        %4096 = vst.msk [vmem:[%s201 + $0x78] sm:$0xff] %vm4080, %v4063
        %4097 = vst.msk [vmem:[%s201 + $0x80] sm:$0xff] %vm4080, %v4064
        %4098 = vst.msk [vmem:[%s201 + $0x88] sm:$0xff] %vm4080, %v4065
        %4099 = vst.msk [vmem:[%s201 + $0x90] sm:$0xff] %vm4080, %v4066
        %4100 = vst.msk [vmem:[%s201 + $0x98] sm:$0xff] %vm4080, %v4067
        %4101 = vst.msk [vmem:[%s201 + $0xa0] sm:$0xff] %vm4080, %v4068
        %4102 = vst.msk [vmem:[%s201 + $0xa8] sm:$0xff] %vm4080, %v4069
        %4103 = vst.msk [vmem:[%s201 + $0xb0] sm:$0xff] %vm4080, %v4070
        %4104 = vst.msk [vmem:[%s201 + $0xb8] sm:$0xff] %vm4080, %v4071
        %4105 = vst.msk [vmem:[%s201 + $0xc0] sm:$0xff] %vm4080, %v4072
        %4106 = vst.msk [vmem:[%s201 + $0xc8] sm:$0xff] %vm4080, %v4073
        %4107 = vst.msk [vmem:[%s201 + $0xd0] sm:$0xff] %vm4080, %v4074
        %4108 = vst.msk [vmem:[%s201 + $0xd8] sm:$0xff] %vm4080, %v4075
        %4109 = vst.msk [vmem:[%s201 + $0xe0] sm:$0xff] %vm4080, %v4076
        %4110 = vst.msk [vmem:[%s201 + $0xe8] sm:$0xff] %vm4080, %v4077
        %4111 = vst.msk [vmem:[%s201 + $0xf0] sm:$0xff] %vm4080, %v4078
        %4112 = vst.msk [vmem:[%s201 + $0xf8] sm:$0xff] %vm4080, %v4079
        %s4113 = sand.u32 %s117, 1
        %s4114 = scalar_lea.sflag [#allocation4], %s4113
        %s4115 = sand.u32 %s117, 1
        %s4116 = smul.addr %s4115, 256
        %s4117 = scalar_lea.vmem [#allocation3], %s4116
        // Predicated region
        $region33: #{tpu_custom_call.1} parent=31 // pred_check
          %p4118 = pneg %p127
        $region34: #{tpu_custom_call.1} parent=31 // pred_check_branch
          %4120 = sbr.rel (%p4118) target = $region36
        $region35: #{tpu_custom_call.1} parent=31 // pred_region
          %4122 = vsyncadd %s4114, 0
          %s4123 = smul.addr %s21, 32
          %s4124 = sadd.s32 %s22, %s4123
          %s4125 = smul.addr %s4124, 8
          %s4126 = scalar_lea.hbm %s3, %s4125
          %s4127 = sshll.u32 %s4117, 4
          %s4128 = int_to_ptr.vmem [resolvable:$true] %s4127
          %s4129 = sshll.u32 %s4126, 4
          %s4130 = int_to_ptr.hbm [resolvable:$true] %s4129
          %4135 = dma.vmem_to_hbm [thread:$0]  %s4128, 4096, %s4130, %s4114, 128, 128, 8
        $region36: #{tpu_custom_call.1} parent=31 // pred_fallthru
          _
      $region32: #{tpu_custom_call.1} parent=5 // pred_fallthru
        _
      %p4136 = scmp.le.s32.totalorder 2, %s12
      // Predicated region
      $region37: #{tpu_custom_call.1} parent=5 // pred_check
        %p4137 = pneg %p4136
      $region38: #{tpu_custom_call.1} parent=5 // pred_check_branch
        %4139 = sbr.rel (%p4137) target = $region40
      $region39: #{tpu_custom_call.1} parent=5 // pred_region
        %s4140 = ssub.s32 %s12, 2
        // Predicated region
        $region41: #{tpu_custom_call.1} parent=39 // pred_check
          %p4141 = pneg %p133
        $region42: #{tpu_custom_call.1} parent=39 // pred_check_branch
          %4143 = sbr.rel (%p4141) target = $region44
        $region43: #{tpu_custom_call.1} parent=39 // pred_region
          %s4144 = sand.u32 %s118, 1
          %s4145 = scalar_lea.sflag [#allocation4], %s4144
          %s4146 = sand.u32 %s118, 1
          %s4147 = smul.addr %s4146, 256
          %s4148 = scalar_lea.vmem [#allocation3], %s4147
          %4150 = dma.done %s4145, 4096
        $region44: #{tpu_custom_call.1} parent=39 // pred_fallthru
          _
      $region40: #{tpu_custom_call.1} parent=5 // pred_fallthru
        _
    $region6: #{tpu_custom_call.1} parent=1 // loop_footer
      %s16 = sadd.s32 1, %s12
    $region7: #{tpu_custom_call.1} parent=1 // loop_footer_branch
      %11 = sbr.rel target = $region3
    $region8: #{tpu_custom_call.1} parent=1 // loop_exit
      _
    %4151 = vsyncpa [#allocation4], 1
    %s4152 = scalar_lea.sflag [#allocation4], 1
    %4153 = vsyncpa %s4152, 1

</llo_original>
